<compile_context>
chip_gen: v6e
topology: v6e:2x2x1
jax: 0.10.0
libtpu: 0.0.40
codegen_flags: <defaults>
</compile_context>

<pallas_src>
import functools
import math

import jax
import jax.numpy as jnp
from jax.experimental import pallas as pl
from jax.experimental.pallas import tpu as pltpu


# Geometry constants for the 28x28 MNIST LeNet (fc1 = 320 = 20*4*4 hard-codes 28x28).
_K = 5            # conv kernel size
_C1, _C2 = 10, 20  # conv output channels
_H1 = 24          # conv1 output spatial (28 - 5 + 1)
_S1 = 6           # stride-2 polyphase spatial size of the pooled 12x12 map
_NCLS = 10
_FC1_OUT = 50
_K1P = 32         # conv1 contraction dim padded 25 -> 32


# ------------------------------ fused kernel --------------------------------

def _lenet_kernel(patches1_ref, w1_ref, b1_ref, w2_ref, b2_ref,
                  w3_ref, b3_ref, w4_ref, b4_ref, out_ref, *, n):
    f32 = jnp.float32
    bf16 = jnp.bfloat16

    # ---- conv1: one MXU matmul covering all 16 (oh%4, ow%4) phase groups -------
    # rows of patches1 are ordered (a, b, sh, sw, n) with oh = 4*sh + a, ow = 4*sw + b
    y1 = jnp.dot(patches1_ref[...], w1_ref[...],
                 preferred_element_type=f32)                       # (16*36n, 10)
    gsz = 36 * n

    def group(a, b):                                               # (36n, 10), rows (sh, sw, n)
        g = a * 4 + b
        return y1[g * gsz:(g + 1) * gsz, :]

    # ---- 2x2 max-pool + bias + ReLU.  Result is kept as the four stride-2
    #      polyphase components of the pooled 12x12 map (exactly what conv2's
    #      in-VMEM im2col needs): p1[ra*2+rb] rows are (sh, sw, n), sh, sw in [0,6).
    p1 = []
    for ra in range(2):
        for rb in range(2):
            m = jnp.maximum(
                jnp.maximum(group(2 * ra, 2 * rb), group(2 * ra, 2 * rb + 1)),
                jnp.maximum(group(2 * ra + 1, 2 * rb), group(2 * ra + 1, 2 * rb + 1)))
            p1.append(jnp.maximum(m + b1_ref[...], 0.0))           # (36n, 10) f32

    # ---- conv2 im2col, built fully in VMEM from static row slices ---------------
    # piece[(ra, rb, qh, qw)][(ph, pw, n), c1] = pooled_p1[n, c1, 2*(ph+qh)+ra, 2*(pw+qw)+rb]
    pieces = {}
    for ra in range(2):
        for rb in range(2):
            src = p1[ra * 2 + rb]
            for qh in range(3):
                for qw in range(3):
                    rows = [src[((ph + qh) * _S1 + qw) * n:
                                ((ph + qh) * _S1 + qw) * n + 4 * n, :]
                            for ph in range(4)]
                    pieces[(ra, rb, qh, qw)] = jnp.concatenate(rows, axis=0)  # (16n, 10)

    # ---- conv2 + 2x2 max-pool: one matmul per pooling phase, pooled by max ------
    p2 = None
    for dh in range(2):
        for dw in range(2):
            cols = []
            for i in range(_K):
                for j in range(_K):
                    ra, qh = (dh + i) % 2, (dh + i) // 2
                    rb, qw = (dw + j) % 2, (dw + j) // 2
                    cols.append(pieces[(ra, rb, qh, qw)])
            patches2 = jnp.concatenate(cols, axis=-1).astype(bf16)  # (16n, 250)
            y2 = jnp.dot(patches2, w2_ref[...],
                         preferred_element_type=f32)                # (16n, 20)
            p2 = y2 if p2 is None else jnp.maximum(p2, y2)
    # TODO(synk): Dropout2d / dropout are treated as inference-mode identity (no RNG mask).
    p2 = jnp.maximum(p2 + b2_ref[...], 0.0)                         # (16n, 20), rows (ph, pw, n)

    # ---- flatten (c2, ph, pw) -> 320 per sample (fc1 weight pre-permuted to match) ----
    fc1_in = jnp.concatenate([p2[s * n:(s + 1) * n, :] for s in range(16)],
                             axis=-1).astype(bf16)                  # (n, 320)
    h = jnp.dot(fc1_in, w3_ref[...], preferred_element_type=f32) + b3_ref[...]
    h = jnp.maximum(h, 0.0).astype(bf16)                            # (n, 50)

    # ---- fc2 + log_softmax ------------------------------------------------------
    logits = jnp.dot(h, w4_ref[...], preferred_element_type=f32) + b4_ref[...]  # (n, 10)
    mx = jnp.max(logits, axis=-1, keepdims=True)
    z = logits - mx
    lse = jnp.log(jnp.sum(jnp.exp(z), axis=-1, keepdims=True))
    out_ref[...] = (z - lse).astype(out_ref.dtype)


# ------------------------------ host-side glue -------------------------------

def _prep_input(x):
    """x: (N, 1, 28, 28) f32 -> conv1 im2col patches (16*36*N, 32) bf16.

    Rows are grouped by the conv1-output phase (oh % 4, ow % 4) so that each
    phase group is a contiguous 36*N-row block inside the fused kernel.
    """
    n = x.shape[0]
    xs = x[:, 0]                                                    # (N, 28, 28)
    cols = jnp.stack([xs[:, i:i + _H1, j:j + _H1]
                      for i in range(_K) for j in range(_K)], axis=-1)  # (N, 24, 24, 25)
    cols = cols.reshape(n, _S1, 4, _S1, 4, _K * _K)                 # (n, sh, a, sw, b, k)
    cols = cols.transpose(2, 4, 1, 3, 0, 5)                         # (a, b, sh, sw, n, k)
    patches = cols.reshape(16 * _S1 * _S1 * n, _K * _K)
    patches = jnp.pad(patches, ((0, 0), (0, _K1P - _K * _K)))       # K: 25 -> 32
    return patches.astype(jnp.bfloat16)


def prepare_params(params):
    """One-time packing: flatten/permute/pre-transpose weights, cast to bf16."""
    bf = jnp.bfloat16
    # conv1: rows k = i*5 + j (padded to 32), cols c1
    w1 = params["conv1_w"].reshape(_C1, _K * _K).T
    w1 = jnp.pad(w1, ((0, _K1P - _K * _K), (0, 0)))                 # (32, 10)
    # conv2: rows (i*5 + j)*10 + c1, cols c2  (matches in-kernel patch concat order)
    w2 = params["conv2_w"].transpose(2, 3, 1, 0).reshape(_K * _K * _C1, _C2)   # (250, 20)
    # fc1: permuted so row = s*20 + c2 where s = ph*4 + pw matches the fused flatten
    w3 = params["fc1_w"].reshape(_FC1_OUT, _C2, 16).transpose(2, 1, 0)
    w3 = w3.reshape(16 * _C2, _FC1_OUT)                             # (320, 50)
    w4 = params["fc2_w"].T                                          # (50, 10)
    return {
        "w1": w1.astype(bf), "b1": params["conv1_b"].reshape(1, _C1),
        "w2": w2.astype(bf), "b2": params["conv2_b"].reshape(1, _C2),
        "w3": w3.astype(bf), "b3": params["fc1_b"].reshape(1, _FC1_OUT),
        "w4": w4.astype(bf), "b4": params["fc2_b"].reshape(1, _NCLS),
    }


def _full_spec(shape):
    return pl.BlockSpec(shape, lambda i: (0,) * len(shape))


def lenet_forward(prepped, x):
    """log_softmax(LeNet(x)) — single fused Pallas kernel, eval mode."""
    n = x.shape[0]
    assert x.shape[1:] == (1, 28, 28), x.shape
    patches1 = _prep_input(x)
    args = (patches1, prepped["w1"], prepped["b1"], prepped["w2"], prepped["b2"],
            prepped["w3"], prepped["b3"], prepped["w4"], prepped["b4"])
    return pl.pallas_call(
        functools.partial(_lenet_kernel, n=n),
        out_shape=jax.ShapeDtypeStruct((n, _NCLS), jnp.float32),
        grid=(1,),
        in_specs=[_full_spec(a.shape) for a in args],
        out_specs=_full_spec((n, _NCLS)),
        compiler_params=pltpu.CompilerParams(dimension_semantics=("arbitrary",)),
    )(*args)


# ------------------------------ reference & init -----------------------------

def _reference_forward(params, x):
    """Pure-JAX/XLA f32 reference of the PyTorch module (eval mode)."""
    dn = ("NCHW", "OIHW", "NCHW")
    y = jax.lax.conv_general_dilated(x, params["conv1_w"], (1, 1), "VALID",
                                     dimension_numbers=dn)
    y = y + params["conv1_b"][None, :, None, None]
    y = jax.lax.reduce_window(y, -jnp.inf, jax.lax.max, (1, 1, 2, 2), (1, 1, 2, 2), "VALID")
    y = jnp.maximum(y, 0.0)
    y = jax.lax.conv_general_dilated(y, params["conv2_w"], (1, 1), "VALID",
                                     dimension_numbers=dn)
    y = y + params["conv2_b"][None, :, None, None]
    y = jax.lax.reduce_window(y, -jnp.inf, jax.lax.max, (1, 1, 2, 2), (1, 1, 2, 2), "VALID")
    y = jnp.maximum(y, 0.0)
    y = y.reshape(x.shape[0], -1)
    y = jnp.maximum(y @ params["fc1_w"].T + params["fc1_b"], 0.0)
    y = y @ params["fc2_w"].T + params["fc2_b"]
    return jax.nn.log_softmax(y, axis=-1)


def init_params(key):
    """Deterministic PyTorch-default-style uniform(-1/sqrt(fan_in), ...) init."""
    ks = jax.random.split(key, 8)

    def u(k, shape, fan_in):
        bound = 1.0 / math.sqrt(fan_in)
        return jax.random.uniform(k, shape, jnp.float32, -bound, bound)

    return {
        "conv1_w": u(ks[0], (10, 1, 5, 5), 1 * 5 * 5),
        "conv1_b": u(ks[1], (10,), 1 * 5 * 5),
        "conv2_w": u(ks[2], (20, 10, 5, 5), 10 * 5 * 5),
        "conv2_b": u(ks[3], (20,), 10 * 5 * 5),
        "fc1_w":   u(ks[4], (50, 320), 320),
        "fc1_b":   u(ks[5], (50,), 320),
        "fc2_w":   u(ks[6], (10, 50), 50),
        "fc2_b":   u(ks[7], (10,), 50),
    }


if __name__ == "__main__":
    key = jax.random.PRNGKey(0)
    pkey, xkey = jax.random.split(key)
    params = init_params(pkey)
    prepped = prepare_params(params)          # one-time weight packing (not in hot path)
    # MNIST-shaped input: the module's hard-coded fc1 (320 = 20*4*4) requires 28x28.
    x = jax.random.normal(xkey, (2, 1, 28, 28), dtype=jnp.float32)

    fwd = jax.jit(lenet_forward)
    logp = jax.block_until_ready(fwd(prepped, x))

    assert logp.shape == (2, 10), logp.shape
    assert logp.dtype == jnp.float32
    # log_softmax sanity: exp(log-probs) rows sum to 1
    row_sums = jnp.exp(logp).sum(axis=1)
    assert bool(jnp.allclose(row_sums, 1.0, atol=1e-3)), row_sums
    # end-to-end check vs f32 XLA reference (tolerance covers bf16 matmul operands)
    ref = _reference_forward(params, x)
    assert bool(jnp.allclose(logp, ref, atol=1e-1)), (logp, ref)
    print("KERNEL_OK")
</pallas_src>

<mosaic_0001>
module attributes {stable_mosaic.version = 11 : i64} {
  func.func @_lenet_kernel(%arg0: i32, %arg1: memref<1152x32xbf16, #tpu.memory_space<vmem>>, %arg2: memref<32x10xbf16, #tpu.memory_space<vmem>>, %arg3: memref<1x10xf32, #tpu.memory_space<vmem>>, %arg4: memref<250x20xbf16, #tpu.memory_space<vmem>>, %arg5: memref<1x20xf32, #tpu.memory_space<vmem>>, %arg6: memref<320x50xbf16, #tpu.memory_space<vmem>>, %arg7: memref<1x50xf32, #tpu.memory_space<vmem>>, %arg8: memref<50x10xbf16, #tpu.memory_space<vmem>>, %arg9: memref<1x10xf32, #tpu.memory_space<vmem>>, %arg10: memref<2x10xf32, #tpu.memory_space<vmem>>) attributes {dimension_semantics = [#tpu.dimension_semantics<arbitrary>], iteration_bounds = array<i64: 1>, scalar_prefetch = 0 : i64, scratch_operands = 0 : i64, tpu.core_type = #tpu.core_type<tc>, window_params = [{pipeline_mode = #tpu.pipeline_mode<synchronous>, transform_indices = @transform_0, window_bounds = array<i64: 1152, 32>}, {pipeline_mode = #tpu.pipeline_mode<synchronous>, transform_indices = @transform_1, window_bounds = array<i64: 32, 10>}, {pipeline_mode = #tpu.pipeline_mode<synchronous>, transform_indices = @transform_2, window_bounds = array<i64: 1, 10>}, {pipeline_mode = #tpu.pipeline_mode<synchronous>, transform_indices = @transform_3, window_bounds = array<i64: 250, 20>}, {pipeline_mode = #tpu.pipeline_mode<synchronous>, transform_indices = @transform_4, window_bounds = array<i64: 1, 20>}, {pipeline_mode = #tpu.pipeline_mode<synchronous>, transform_indices = @transform_5, window_bounds = array<i64: 320, 50>}, {pipeline_mode = #tpu.pipeline_mode<synchronous>, transform_indices = @transform_6, window_bounds = array<i64: 1, 50>}, {pipeline_mode = #tpu.pipeline_mode<synchronous>, transform_indices = @transform_7, window_bounds = array<i64: 50, 10>}, {pipeline_mode = #tpu.pipeline_mode<synchronous>, transform_indices = @transform_8, window_bounds = array<i64: 1, 10>}, {pipeline_mode = #tpu.pipeline_mode<synchronous>, transform_indices = @transform_9, window_bounds = array<i64: 2, 10>}]} {
    %c0 = arith.constant 0 : index
    %c0_0 = arith.constant 0 : index
    %0 = vector.load %arg1[%c0, %c0_0] : memref<1152x32xbf16, #tpu.memory_space<vmem>>, vector<1152x32xbf16>
    %c0_1 = arith.constant 0 : index
    %c0_2 = arith.constant 0 : index
    %1 = vector.load %arg2[%c0_1, %c0_2] : memref<32x10xbf16, #tpu.memory_space<vmem>>, vector<32x10xbf16>
    %cst = arith.constant dense<0.000000e+00> : vector<1152x10xf32>
    %2 = tpu.matmul %0, %1, %cst {dimension_numbers = #tpu.dot_dimension_numbers<[1], [0], [0], [1], [0, 0, 1, 1], [], []>} : vector<1152x32xbf16>, vector<32x10xbf16>, vector<1152x10xf32> -> vector<1152x10xf32>
    %3 = vector.extract_strided_slice %2 {offsets = [0, 0], sizes = [72, 10], strides = [1, 1]} : vector<1152x10xf32> to vector<72x10xf32>
    %4 = vector.extract_strided_slice %2 {offsets = [72, 0], sizes = [72, 10], strides = [1, 1]} : vector<1152x10xf32> to vector<72x10xf32>
    %5 = arith.maximumf %3, %4 : vector<72x10xf32>
    %6 = vector.extract_strided_slice %2 {offsets = [288, 0], sizes = [72, 10], strides = [1, 1]} : vector<1152x10xf32> to vector<72x10xf32>
    %7 = vector.extract_strided_slice %2 {offsets = [360, 0], sizes = [72, 10], strides = [1, 1]} : vector<1152x10xf32> to vector<72x10xf32>
    %8 = arith.maximumf %6, %7 : vector<72x10xf32>
    %9 = arith.maximumf %5, %8 : vector<72x10xf32>
    %c0_3 = arith.constant 0 : index
    %c0_4 = arith.constant 0 : index
    %10 = vector.load %arg3[%c0_3, %c0_4] : memref<1x10xf32, #tpu.memory_space<vmem>>, vector<1x10xf32>
    %11 = vector.broadcast %10 : vector<1x10xf32> to vector<72x10xf32>
    %12 = arith.addf %9, %11 : vector<72x10xf32>
    %cst_5 = arith.constant 0.000000e+00 : f32
    %13 = vector.broadcast %cst_5 : f32 to vector<72x10xf32>
    %14 = arith.maximumf %12, %13 : vector<72x10xf32>
    %15 = vector.extract_strided_slice %2 {offsets = [144, 0], sizes = [72, 10], strides = [1, 1]} : vector<1152x10xf32> to vector<72x10xf32>
    %16 = vector.extract_strided_slice %2 {offsets = [216, 0], sizes = [72, 10], strides = [1, 1]} : vector<1152x10xf32> to vector<72x10xf32>
    %17 = arith.maximumf %15, %16 : vector<72x10xf32>
    %18 = vector.extract_strided_slice %2 {offsets = [432, 0], sizes = [72, 10], strides = [1, 1]} : vector<1152x10xf32> to vector<72x10xf32>
    %19 = vector.extract_strided_slice %2 {offsets = [504, 0], sizes = [72, 10], strides = [1, 1]} : vector<1152x10xf32> to vector<72x10xf32>
    %20 = arith.maximumf %18, %19 : vector<72x10xf32>
    %21 = arith.maximumf %17, %20 : vector<72x10xf32>
    %c0_6 = arith.constant 0 : index
    %c0_7 = arith.constant 0 : index
    %22 = vector.load %arg3[%c0_6, %c0_7] : memref<1x10xf32, #tpu.memory_space<vmem>>, vector<1x10xf32>
    %23 = vector.broadcast %22 : vector<1x10xf32> to vector<72x10xf32>
    %24 = arith.addf %21, %23 : vector<72x10xf32>
    %cst_8 = arith.constant 0.000000e+00 : f32
    %25 = vector.broadcast %cst_8 : f32 to vector<72x10xf32>
    %26 = arith.maximumf %24, %25 : vector<72x10xf32>
    %27 = vector.extract_strided_slice %2 {offsets = [576, 0], sizes = [72, 10], strides = [1, 1]} : vector<1152x10xf32> to vector<72x10xf32>
    %28 = vector.extract_strided_slice %2 {offsets = [648, 0], sizes = [72, 10], strides = [1, 1]} : vector<1152x10xf32> to vector<72x10xf32>
    %29 = arith.maximumf %27, %28 : vector<72x10xf32>
    %30 = vector.extract_strided_slice %2 {offsets = [864, 0], sizes = [72, 10], strides = [1, 1]} : vector<1152x10xf32> to vector<72x10xf32>
    %31 = vector.extract_strided_slice %2 {offsets = [936, 0], sizes = [72, 10], strides = [1, 1]} : vector<1152x10xf32> to vector<72x10xf32>
    %32 = arith.maximumf %30, %31 : vector<72x10xf32>
    %33 = arith.maximumf %29, %32 : vector<72x10xf32>
    %c0_9 = arith.constant 0 : index
    %c0_10 = arith.constant 0 : index
    %34 = vector.load %arg3[%c0_9, %c0_10] : memref<1x10xf32, #tpu.memory_space<vmem>>, vector<1x10xf32>
    %35 = vector.broadcast %34 : vector<1x10xf32> to vector<72x10xf32>
    %36 = arith.addf %33, %35 : vector<72x10xf32>
    %cst_11 = arith.constant 0.000000e+00 : f32
    %37 = vector.broadcast %cst_11 : f32 to vector<72x10xf32>
    %38 = arith.maximumf %36, %37 : vector<72x10xf32>
    %39 = vector.extract_strided_slice %2 {offsets = [720, 0], sizes = [72, 10], strides = [1, 1]} : vector<1152x10xf32> to vector<72x10xf32>
    %40 = vector.extract_strided_slice %2 {offsets = [792, 0], sizes = [72, 10], strides = [1, 1]} : vector<1152x10xf32> to vector<72x10xf32>
    %41 = arith.maximumf %39, %40 : vector<72x10xf32>
    %42 = vector.extract_strided_slice %2 {offsets = [1008, 0], sizes = [72, 10], strides = [1, 1]} : vector<1152x10xf32> to vector<72x10xf32>
    %43 = vector.extract_strided_slice %2 {offsets = [1080, 0], sizes = [72, 10], strides = [1, 1]} : vector<1152x10xf32> to vector<72x10xf32>
    %44 = arith.maximumf %42, %43 : vector<72x10xf32>
    %45 = arith.maximumf %41, %44 : vector<72x10xf32>
    %c0_12 = arith.constant 0 : index
    %c0_13 = arith.constant 0 : index
    %46 = vector.load %arg3[%c0_12, %c0_13] : memref<1x10xf32, #tpu.memory_space<vmem>>, vector<1x10xf32>
    %47 = vector.broadcast %46 : vector<1x10xf32> to vector<72x10xf32>
    %48 = arith.addf %45, %47 : vector<72x10xf32>
    %cst_14 = arith.constant 0.000000e+00 : f32
    %49 = vector.broadcast %cst_14 : f32 to vector<72x10xf32>
    %50 = arith.maximumf %48, %49 : vector<72x10xf32>
    %51 = vector.extract_strided_slice %14 {offsets = [0, 0], sizes = [8, 10], strides = [1, 1]} : vector<72x10xf32> to vector<8x10xf32>
    %52 = vector.extract_strided_slice %14 {offsets = [12, 0], sizes = [8, 10], strides = [1, 1]} : vector<72x10xf32> to vector<8x10xf32>
    %53 = vector.extract_strided_slice %14 {offsets = [24, 0], sizes = [8, 10], strides = [1, 1]} : vector<72x10xf32> to vector<8x10xf32>
    %54 = vector.extract_strided_slice %14 {offsets = [36, 0], sizes = [8, 10], strides = [1, 1]} : vector<72x10xf32> to vector<8x10xf32>
    %55 = tpu.concatenate %51, %52, %53, %54 in 0 : vector<8x10xf32>, vector<8x10xf32>, vector<8x10xf32>, vector<8x10xf32> -> vector<32x10xf32>
    %56 = vector.extract_strided_slice %14 {offsets = [2, 0], sizes = [8, 10], strides = [1, 1]} : vector<72x10xf32> to vector<8x10xf32>
    %57 = vector.extract_strided_slice %14 {offsets = [14, 0], sizes = [8, 10], strides = [1, 1]} : vector<72x10xf32> to vector<8x10xf32>
    %58 = vector.extract_strided_slice %14 {offsets = [26, 0], sizes = [8, 10], strides = [1, 1]} : vector<72x10xf32> to vector<8x10xf32>
    %59 = vector.extract_strided_slice %14 {offsets = [38, 0], sizes = [8, 10], strides = [1, 1]} : vector<72x10xf32> to vector<8x10xf32>
    %60 = tpu.concatenate %56, %57, %58, %59 in 0 : vector<8x10xf32>, vector<8x10xf32>, vector<8x10xf32>, vector<8x10xf32> -> vector<32x10xf32>
    %61 = vector.extract_strided_slice %14 {offsets = [4, 0], sizes = [8, 10], strides = [1, 1]} : vector<72x10xf32> to vector<8x10xf32>
    %62 = vector.extract_strided_slice %14 {offsets = [16, 0], sizes = [8, 10], strides = [1, 1]} : vector<72x10xf32> to vector<8x10xf32>
    %63 = vector.extract_strided_slice %14 {offsets = [28, 0], sizes = [8, 10], strides = [1, 1]} : vector<72x10xf32> to vector<8x10xf32>
    %64 = vector.extract_strided_slice %14 {offsets = [40, 0], sizes = [8, 10], strides = [1, 1]} : vector<72x10xf32> to vector<8x10xf32>
    %65 = tpu.concatenate %61, %62, %63, %64 in 0 : vector<8x10xf32>, vector<8x10xf32>, vector<8x10xf32>, vector<8x10xf32> -> vector<32x10xf32>
    %66 = vector.extract_strided_slice %14 {offsets = [12, 0], sizes = [8, 10], strides = [1, 1]} : vector<72x10xf32> to vector<8x10xf32>
    %67 = vector.extract_strided_slice %14 {offsets = [24, 0], sizes = [8, 10], strides = [1, 1]} : vector<72x10xf32> to vector<8x10xf32>
    %68 = vector.extract_strided_slice %14 {offsets = [36, 0], sizes = [8, 10], strides = [1, 1]} : vector<72x10xf32> to vector<8x10xf32>
    %69 = vector.extract_strided_slice %14 {offsets = [48, 0], sizes = [8, 10], strides = [1, 1]} : vector<72x10xf32> to vector<8x10xf32>
    %70 = tpu.concatenate %66, %67, %68, %69 in 0 : vector<8x10xf32>, vector<8x10xf32>, vector<8x10xf32>, vector<8x10xf32> -> vector<32x10xf32>
    %71 = vector.extract_strided_slice %14 {offsets = [14, 0], sizes = [8, 10], strides = [1, 1]} : vector<72x10xf32> to vector<8x10xf32>
    %72 = vector.extract_strided_slice %14 {offsets = [26, 0], sizes = [8, 10], strides = [1, 1]} : vector<72x10xf32> to vector<8x10xf32>
    %73 = vector.extract_strided_slice %14 {offsets = [38, 0], sizes = [8, 10], strides = [1, 1]} : vector<72x10xf32> to vector<8x10xf32>
    %74 = vector.extract_strided_slice %14 {offsets = [50, 0], sizes = [8, 10], strides = [1, 1]} : vector<72x10xf32> to vector<8x10xf32>
    %75 = tpu.concatenate %71, %72, %73, %74 in 0 : vector<8x10xf32>, vector<8x10xf32>, vector<8x10xf32>, vector<8x10xf32> -> vector<32x10xf32>
    %76 = vector.extract_strided_slice %14 {offsets = [16, 0], sizes = [8, 10], strides = [1, 1]} : vector<72x10xf32> to vector<8x10xf32>
    %77 = vector.extract_strided_slice %14 {offsets = [28, 0], sizes = [8, 10], strides = [1, 1]} : vector<72x10xf32> to vector<8x10xf32>
    %78 = vector.extract_strided_slice %14 {offsets = [40, 0], sizes = [8, 10], strides = [1, 1]} : vector<72x10xf32> to vector<8x10xf32>
    %79 = vector.extract_strided_slice %14 {offsets = [52, 0], sizes = [8, 10], strides = [1, 1]} : vector<72x10xf32> to vector<8x10xf32>
    %80 = tpu.concatenate %76, %77, %78, %79 in 0 : vector<8x10xf32>, vector<8x10xf32>, vector<8x10xf32>, vector<8x10xf32> -> vector<32x10xf32>
    %81 = vector.extract_strided_slice %14 {offsets = [24, 0], sizes = [8, 10], strides = [1, 1]} : vector<72x10xf32> to vector<8x10xf32>
    %82 = vector.extract_strided_slice %14 {offsets = [36, 0], sizes = [8, 10], strides = [1, 1]} : vector<72x10xf32> to vector<8x10xf32>
    %83 = vector.extract_strided_slice %14 {offsets = [48, 0], sizes = [8, 10], strides = [1, 1]} : vector<72x10xf32> to vector<8x10xf32>
    %84 = vector.extract_strided_slice %14 {offsets = [60, 0], sizes = [8, 10], strides = [1, 1]} : vector<72x10xf32> to vector<8x10xf32>
    %85 = tpu.concatenate %81, %82, %83, %84 in 0 : vector<8x10xf32>, vector<8x10xf32>, vector<8x10xf32>, vector<8x10xf32> -> vector<32x10xf32>
    %86 = vector.extract_strided_slice %14 {offsets = [26, 0], sizes = [8, 10], strides = [1, 1]} : vector<72x10xf32> to vector<8x10xf32>
    %87 = vector.extract_strided_slice %14 {offsets = [38, 0], sizes = [8, 10], strides = [1, 1]} : vector<72x10xf32> to vector<8x10xf32>
    %88 = vector.extract_strided_slice %14 {offsets = [50, 0], sizes = [8, 10], strides = [1, 1]} : vector<72x10xf32> to vector<8x10xf32>
    %89 = vector.extract_strided_slice %14 {offsets = [62, 0], sizes = [8, 10], strides = [1, 1]} : vector<72x10xf32> to vector<8x10xf32>
    %90 = tpu.concatenate %86, %87, %88, %89 in 0 : vector<8x10xf32>, vector<8x10xf32>, vector<8x10xf32>, vector<8x10xf32> -> vector<32x10xf32>
    %91 = vector.extract_strided_slice %14 {offsets = [28, 0], sizes = [8, 10], strides = [1, 1]} : vector<72x10xf32> to vector<8x10xf32>
    %92 = vector.extract_strided_slice %14 {offsets = [40, 0], sizes = [8, 10], strides = [1, 1]} : vector<72x10xf32> to vector<8x10xf32>
    %93 = vector.extract_strided_slice %14 {offsets = [52, 0], sizes = [8, 10], strides = [1, 1]} : vector<72x10xf32> to vector<8x10xf32>
    %94 = vector.extract_strided_slice %14 {offsets = [64, 0], sizes = [8, 10], strides = [1, 1]} : vector<72x10xf32> to vector<8x10xf32>
    %95 = tpu.concatenate %91, %92, %93, %94 in 0 : vector<8x10xf32>, vector<8x10xf32>, vector<8x10xf32>, vector<8x10xf32> -> vector<32x10xf32>
    %96 = vector.extract_strided_slice %26 {offsets = [0, 0], sizes = [8, 10], strides = [1, 1]} : vector<72x10xf32> to vector<8x10xf32>
    %97 = vector.extract_strided_slice %26 {offsets = [12, 0], sizes = [8, 10], strides = [1, 1]} : vector<72x10xf32> to vector<8x10xf32>
    %98 = vector.extract_strided_slice %26 {offsets = [24, 0], sizes = [8, 10], strides = [1, 1]} : vector<72x10xf32> to vector<8x10xf32>
    %99 = vector.extract_strided_slice %26 {offsets = [36, 0], sizes = [8, 10], strides = [1, 1]} : vector<72x10xf32> to vector<8x10xf32>
    %100 = tpu.concatenate %96, %97, %98, %99 in 0 : vector<8x10xf32>, vector<8x10xf32>, vector<8x10xf32>, vector<8x10xf32> -> vector<32x10xf32>
    %101 = vector.extract_strided_slice %26 {offsets = [2, 0], sizes = [8, 10], strides = [1, 1]} : vector<72x10xf32> to vector<8x10xf32>
    %102 = vector.extract_strided_slice %26 {offsets = [14, 0], sizes = [8, 10], strides = [1, 1]} : vector<72x10xf32> to vector<8x10xf32>
    %103 = vector.extract_strided_slice %26 {offsets = [26, 0], sizes = [8, 10], strides = [1, 1]} : vector<72x10xf32> to vector<8x10xf32>
    %104 = vector.extract_strided_slice %26 {offsets = [38, 0], sizes = [8, 10], strides = [1, 1]} : vector<72x10xf32> to vector<8x10xf32>
    %105 = tpu.concatenate %101, %102, %103, %104 in 0 : vector<8x10xf32>, vector<8x10xf32>, vector<8x10xf32>, vector<8x10xf32> -> vector<32x10xf32>
    %106 = vector.extract_strided_slice %26 {offsets = [4, 0], sizes = [8, 10], strides = [1, 1]} : vector<72x10xf32> to vector<8x10xf32>
    %107 = vector.extract_strided_slice %26 {offsets = [16, 0], sizes = [8, 10], strides = [1, 1]} : vector<72x10xf32> to vector<8x10xf32>
    %108 = vector.extract_strided_slice %26 {offsets = [28, 0], sizes = [8, 10], strides = [1, 1]} : vector<72x10xf32> to vector<8x10xf32>
    %109 = vector.extract_strided_slice %26 {offsets = [40, 0], sizes = [8, 10], strides = [1, 1]} : vector<72x10xf32> to vector<8x10xf32>
    %110 = tpu.concatenate %106, %107, %108, %109 in 0 : vector<8x10xf32>, vector<8x10xf32>, vector<8x10xf32>, vector<8x10xf32> -> vector<32x10xf32>
    %111 = vector.extract_strided_slice %26 {offsets = [12, 0], sizes = [8, 10], strides = [1, 1]} : vector<72x10xf32> to vector<8x10xf32>
    %112 = vector.extract_strided_slice %26 {offsets = [24, 0], sizes = [8, 10], strides = [1, 1]} : vector<72x10xf32> to vector<8x10xf32>
    %113 = vector.extract_strided_slice %26 {offsets = [36, 0], sizes = [8, 10], strides = [1, 1]} : vector<72x10xf32> to vector<8x10xf32>
    %114 = vector.extract_strided_slice %26 {offsets = [48, 0], sizes = [8, 10], strides = [1, 1]} : vector<72x10xf32> to vector<8x10xf32>
    %115 = tpu.concatenate %111, %112, %113, %114 in 0 : vector<8x10xf32>, vector<8x10xf32>, vector<8x10xf32>, vector<8x10xf32> -> vector<32x10xf32>
    %116 = vector.extract_strided_slice %26 {offsets = [14, 0], sizes = [8, 10], strides = [1, 1]} : vector<72x10xf32> to vector<8x10xf32>
    %117 = vector.extract_strided_slice %26 {offsets = [26, 0], sizes = [8, 10], strides = [1, 1]} : vector<72x10xf32> to vector<8x10xf32>
    %118 = vector.extract_strided_slice %26 {offsets = [38, 0], sizes = [8, 10], strides = [1, 1]} : vector<72x10xf32> to vector<8x10xf32>
    %119 = vector.extract_strided_slice %26 {offsets = [50, 0], sizes = [8, 10], strides = [1, 1]} : vector<72x10xf32> to vector<8x10xf32>
    %120 = tpu.concatenate %116, %117, %118, %119 in 0 : vector<8x10xf32>, vector<8x10xf32>, vector<8x10xf32>, vector<8x10xf32> -> vector<32x10xf32>
    %121 = vector.extract_strided_slice %26 {offsets = [16, 0], sizes = [8, 10], strides = [1, 1]} : vector<72x10xf32> to vector<8x10xf32>
    %122 = vector.extract_strided_slice %26 {offsets = [28, 0], sizes = [8, 10], strides = [1, 1]} : vector<72x10xf32> to vector<8x10xf32>
    %123 = vector.extract_strided_slice %26 {offsets = [40, 0], sizes = [8, 10], strides = [1, 1]} : vector<72x10xf32> to vector<8x10xf32>
    %124 = vector.extract_strided_slice %26 {offsets = [52, 0], sizes = [8, 10], strides = [1, 1]} : vector<72x10xf32> to vector<8x10xf32>
    %125 = tpu.concatenate %121, %122, %123, %124 in 0 : vector<8x10xf32>, vector<8x10xf32>, vector<8x10xf32>, vector<8x10xf32> -> vector<32x10xf32>
    %126 = vector.extract_strided_slice %26 {offsets = [24, 0], sizes = [8, 10], strides = [1, 1]} : vector<72x10xf32> to vector<8x10xf32>
    %127 = vector.extract_strided_slice %26 {offsets = [36, 0], sizes = [8, 10], strides = [1, 1]} : vector<72x10xf32> to vector<8x10xf32>
    %128 = vector.extract_strided_slice %26 {offsets = [48, 0], sizes = [8, 10], strides = [1, 1]} : vector<72x10xf32> to vector<8x10xf32>
    %129 = vector.extract_strided_slice %26 {offsets = [60, 0], sizes = [8, 10], strides = [1, 1]} : vector<72x10xf32> to vector<8x10xf32>
    %130 = tpu.concatenate %126, %127, %128, %129 in 0 : vector<8x10xf32>, vector<8x10xf32>, vector<8x10xf32>, vector<8x10xf32> -> vector<32x10xf32>
    %131 = vector.extract_strided_slice %26 {offsets = [26, 0], sizes = [8, 10], strides = [1, 1]} : vector<72x10xf32> to vector<8x10xf32>
    %132 = vector.extract_strided_slice %26 {offsets = [38, 0], sizes = [8, 10], strides = [1, 1]} : vector<72x10xf32> to vector<8x10xf32>
    %133 = vector.extract_strided_slice %26 {offsets = [50, 0], sizes = [8, 10], strides = [1, 1]} : vector<72x10xf32> to vector<8x10xf32>
    %134 = vector.extract_strided_slice %26 {offsets = [62, 0], sizes = [8, 10], strides = [1, 1]} : vector<72x10xf32> to vector<8x10xf32>
    %135 = tpu.concatenate %131, %132, %133, %134 in 0 : vector<8x10xf32>, vector<8x10xf32>, vector<8x10xf32>, vector<8x10xf32> -> vector<32x10xf32>
    %136 = vector.extract_strided_slice %26 {offsets = [28, 0], sizes = [8, 10], strides = [1, 1]} : vector<72x10xf32> to vector<8x10xf32>
    %137 = vector.extract_strided_slice %26 {offsets = [40, 0], sizes = [8, 10], strides = [1, 1]} : vector<72x10xf32> to vector<8x10xf32>
    %138 = vector.extract_strided_slice %26 {offsets = [52, 0], sizes = [8, 10], strides = [1, 1]} : vector<72x10xf32> to vector<8x10xf32>
    %139 = vector.extract_strided_slice %26 {offsets = [64, 0], sizes = [8, 10], strides = [1, 1]} : vector<72x10xf32> to vector<8x10xf32>
    %140 = tpu.concatenate %136, %137, %138, %139 in 0 : vector<8x10xf32>, vector<8x10xf32>, vector<8x10xf32>, vector<8x10xf32> -> vector<32x10xf32>
    %141 = vector.extract_strided_slice %38 {offsets = [0, 0], sizes = [8, 10], strides = [1, 1]} : vector<72x10xf32> to vector<8x10xf32>
    %142 = vector.extract_strided_slice %38 {offsets = [12, 0], sizes = [8, 10], strides = [1, 1]} : vector<72x10xf32> to vector<8x10xf32>
    %143 = vector.extract_strided_slice %38 {offsets = [24, 0], sizes = [8, 10], strides = [1, 1]} : vector<72x10xf32> to vector<8x10xf32>
    %144 = vector.extract_strided_slice %38 {offsets = [36, 0], sizes = [8, 10], strides = [1, 1]} : vector<72x10xf32> to vector<8x10xf32>
    %145 = tpu.concatenate %141, %142, %143, %144 in 0 : vector<8x10xf32>, vector<8x10xf32>, vector<8x10xf32>, vector<8x10xf32> -> vector<32x10xf32>
    %146 = vector.extract_strided_slice %38 {offsets = [2, 0], sizes = [8, 10], strides = [1, 1]} : vector<72x10xf32> to vector<8x10xf32>
    %147 = vector.extract_strided_slice %38 {offsets = [14, 0], sizes = [8, 10], strides = [1, 1]} : vector<72x10xf32> to vector<8x10xf32>
    %148 = vector.extract_strided_slice %38 {offsets = [26, 0], sizes = [8, 10], strides = [1, 1]} : vector<72x10xf32> to vector<8x10xf32>
    %149 = vector.extract_strided_slice %38 {offsets = [38, 0], sizes = [8, 10], strides = [1, 1]} : vector<72x10xf32> to vector<8x10xf32>
    %150 = tpu.concatenate %146, %147, %148, %149 in 0 : vector<8x10xf32>, vector<8x10xf32>, vector<8x10xf32>, vector<8x10xf32> -> vector<32x10xf32>
    %151 = vector.extract_strided_slice %38 {offsets = [4, 0], sizes = [8, 10], strides = [1, 1]} : vector<72x10xf32> to vector<8x10xf32>
    %152 = vector.extract_strided_slice %38 {offsets = [16, 0], sizes = [8, 10], strides = [1, 1]} : vector<72x10xf32> to vector<8x10xf32>
    %153 = vector.extract_strided_slice %38 {offsets = [28, 0], sizes = [8, 10], strides = [1, 1]} : vector<72x10xf32> to vector<8x10xf32>
    %154 = vector.extract_strided_slice %38 {offsets = [40, 0], sizes = [8, 10], strides = [1, 1]} : vector<72x10xf32> to vector<8x10xf32>
    %155 = tpu.concatenate %151, %152, %153, %154 in 0 : vector<8x10xf32>, vector<8x10xf32>, vector<8x10xf32>, vector<8x10xf32> -> vector<32x10xf32>
    %156 = vector.extract_strided_slice %38 {offsets = [12, 0], sizes = [8, 10], strides = [1, 1]} : vector<72x10xf32> to vector<8x10xf32>
    %157 = vector.extract_strided_slice %38 {offsets = [24, 0], sizes = [8, 10], strides = [1, 1]} : vector<72x10xf32> to vector<8x10xf32>
    %158 = vector.extract_strided_slice %38 {offsets = [36, 0], sizes = [8, 10], strides = [1, 1]} : vector<72x10xf32> to vector<8x10xf32>
    %159 = vector.extract_strided_slice %38 {offsets = [48, 0], sizes = [8, 10], strides = [1, 1]} : vector<72x10xf32> to vector<8x10xf32>
    %160 = tpu.concatenate %156, %157, %158, %159 in 0 : vector<8x10xf32>, vector<8x10xf32>, vector<8x10xf32>, vector<8x10xf32> -> vector<32x10xf32>
    %161 = vector.extract_strided_slice %38 {offsets = [14, 0], sizes = [8, 10], strides = [1, 1]} : vector<72x10xf32> to vector<8x10xf32>
    %162 = vector.extract_strided_slice %38 {offsets = [26, 0], sizes = [8, 10], strides = [1, 1]} : vector<72x10xf32> to vector<8x10xf32>
    %163 = vector.extract_strided_slice %38 {offsets = [38, 0], sizes = [8, 10], strides = [1, 1]} : vector<72x10xf32> to vector<8x10xf32>
    %164 = vector.extract_strided_slice %38 {offsets = [50, 0], sizes = [8, 10], strides = [1, 1]} : vector<72x10xf32> to vector<8x10xf32>
    %165 = tpu.concatenate %161, %162, %163, %164 in 0 : vector<8x10xf32>, vector<8x10xf32>, vector<8x10xf32>, vector<8x10xf32> -> vector<32x10xf32>
    %166 = vector.extract_strided_slice %38 {offsets = [16, 0], sizes = [8, 10], strides = [1, 1]} : vector<72x10xf32> to vector<8x10xf32>
    %167 = vector.extract_strided_slice %38 {offsets = [28, 0], sizes = [8, 10], strides = [1, 1]} : vector<72x10xf32> to vector<8x10xf32>
    %168 = vector.extract_strided_slice %38 {offsets = [40, 0], sizes = [8, 10], strides = [1, 1]} : vector<72x10xf32> to vector<8x10xf32>
    %169 = vector.extract_strided_slice %38 {offsets = [52, 0], sizes = [8, 10], strides = [1, 1]} : vector<72x10xf32> to vector<8x10xf32>
    %170 = tpu.concatenate %166, %167, %168, %169 in 0 : vector<8x10xf32>, vector<8x10xf32>, vector<8x10xf32>, vector<8x10xf32> -> vector<32x10xf32>
    %171 = vector.extract_strided_slice %38 {offsets = [24, 0], sizes = [8, 10], strides = [1, 1]} : vector<72x10xf32> to vector<8x10xf32>
    %172 = vector.extract_strided_slice %38 {offsets = [36, 0], sizes = [8, 10], strides = [1, 1]} : vector<72x10xf32> to vector<8x10xf32>
    %173 = vector.extract_strided_slice %38 {offsets = [48, 0], sizes = [8, 10], strides = [1, 1]} : vector<72x10xf32> to vector<8x10xf32>
    %174 = vector.extract_strided_slice %38 {offsets = [60, 0], sizes = [8, 10], strides = [1, 1]} : vector<72x10xf32> to vector<8x10xf32>
    %175 = tpu.concatenate %171, %172, %173, %174 in 0 : vector<8x10xf32>, vector<8x10xf32>, vector<8x10xf32>, vector<8x10xf32> -> vector<32x10xf32>
    %176 = vector.extract_strided_slice %38 {offsets = [26, 0], sizes = [8, 10], strides = [1, 1]} : vector<72x10xf32> to vector<8x10xf32>
    %177 = vector.extract_strided_slice %38 {offsets = [38, 0], sizes = [8, 10], strides = [1, 1]} : vector<72x10xf32> to vector<8x10xf32>
    %178 = vector.extract_strided_slice %38 {offsets = [50, 0], sizes = [8, 10], strides = [1, 1]} : vector<72x10xf32> to vector<8x10xf32>
    %179 = vector.extract_strided_slice %38 {offsets = [62, 0], sizes = [8, 10], strides = [1, 1]} : vector<72x10xf32> to vector<8x10xf32>
    %180 = tpu.concatenate %176, %177, %178, %179 in 0 : vector<8x10xf32>, vector<8x10xf32>, vector<8x10xf32>, vector<8x10xf32> -> vector<32x10xf32>
    %181 = vector.extract_strided_slice %38 {offsets = [28, 0], sizes = [8, 10], strides = [1, 1]} : vector<72x10xf32> to vector<8x10xf32>
    %182 = vector.extract_strided_slice %38 {offsets = [40, 0], sizes = [8, 10], strides = [1, 1]} : vector<72x10xf32> to vector<8x10xf32>
    %183 = vector.extract_strided_slice %38 {offsets = [52, 0], sizes = [8, 10], strides = [1, 1]} : vector<72x10xf32> to vector<8x10xf32>
    %184 = vector.extract_strided_slice %38 {offsets = [64, 0], sizes = [8, 10], strides = [1, 1]} : vector<72x10xf32> to vector<8x10xf32>
    %185 = tpu.concatenate %181, %182, %183, %184 in 0 : vector<8x10xf32>, vector<8x10xf32>, vector<8x10xf32>, vector<8x10xf32> -> vector<32x10xf32>
    %186 = vector.extract_strided_slice %50 {offsets = [0, 0], sizes = [8, 10], strides = [1, 1]} : vector<72x10xf32> to vector<8x10xf32>
    %187 = vector.extract_strided_slice %50 {offsets = [12, 0], sizes = [8, 10], strides = [1, 1]} : vector<72x10xf32> to vector<8x10xf32>
    %188 = vector.extract_strided_slice %50 {offsets = [24, 0], sizes = [8, 10], strides = [1, 1]} : vector<72x10xf32> to vector<8x10xf32>
    %189 = vector.extract_strided_slice %50 {offsets = [36, 0], sizes = [8, 10], strides = [1, 1]} : vector<72x10xf32> to vector<8x10xf32>
    %190 = tpu.concatenate %186, %187, %188, %189 in 0 : vector<8x10xf32>, vector<8x10xf32>, vector<8x10xf32>, vector<8x10xf32> -> vector<32x10xf32>
    %191 = vector.extract_strided_slice %50 {offsets = [2, 0], sizes = [8, 10], strides = [1, 1]} : vector<72x10xf32> to vector<8x10xf32>
    %192 = vector.extract_strided_slice %50 {offsets = [14, 0], sizes = [8, 10], strides = [1, 1]} : vector<72x10xf32> to vector<8x10xf32>
    %193 = vector.extract_strided_slice %50 {offsets = [26, 0], sizes = [8, 10], strides = [1, 1]} : vector<72x10xf32> to vector<8x10xf32>
    %194 = vector.extract_strided_slice %50 {offsets = [38, 0], sizes = [8, 10], strides = [1, 1]} : vector<72x10xf32> to vector<8x10xf32>
    %195 = tpu.concatenate %191, %192, %193, %194 in 0 : vector<8x10xf32>, vector<8x10xf32>, vector<8x10xf32>, vector<8x10xf32> -> vector<32x10xf32>
    %196 = vector.extract_strided_slice %50 {offsets = [4, 0], sizes = [8, 10], strides = [1, 1]} : vector<72x10xf32> to vector<8x10xf32>
    %197 = vector.extract_strided_slice %50 {offsets = [16, 0], sizes = [8, 10], strides = [1, 1]} : vector<72x10xf32> to vector<8x10xf32>
    %198 = vector.extract_strided_slice %50 {offsets = [28, 0], sizes = [8, 10], strides = [1, 1]} : vector<72x10xf32> to vector<8x10xf32>
    %199 = vector.extract_strided_slice %50 {offsets = [40, 0], sizes = [8, 10], strides = [1, 1]} : vector<72x10xf32> to vector<8x10xf32>
    %200 = tpu.concatenate %196, %197, %198, %199 in 0 : vector<8x10xf32>, vector<8x10xf32>, vector<8x10xf32>, vector<8x10xf32> -> vector<32x10xf32>
    %201 = vector.extract_strided_slice %50 {offsets = [12, 0], sizes = [8, 10], strides = [1, 1]} : vector<72x10xf32> to vector<8x10xf32>
    %202 = vector.extract_strided_slice %50 {offsets = [24, 0], sizes = [8, 10], strides = [1, 1]} : vector<72x10xf32> to vector<8x10xf32>
    %203 = vector.extract_strided_slice %50 {offsets = [36, 0], sizes = [8, 10], strides = [1, 1]} : vector<72x10xf32> to vector<8x10xf32>
    %204 = vector.extract_strided_slice %50 {offsets = [48, 0], sizes = [8, 10], strides = [1, 1]} : vector<72x10xf32> to vector<8x10xf32>
    %205 = tpu.concatenate %201, %202, %203, %204 in 0 : vector<8x10xf32>, vector<8x10xf32>, vector<8x10xf32>, vector<8x10xf32> -> vector<32x10xf32>
    %206 = vector.extract_strided_slice %50 {offsets = [14, 0], sizes = [8, 10], strides = [1, 1]} : vector<72x10xf32> to vector<8x10xf32>
    %207 = vector.extract_strided_slice %50 {offsets = [26, 0], sizes = [8, 10], strides = [1, 1]} : vector<72x10xf32> to vector<8x10xf32>
    %208 = vector.extract_strided_slice %50 {offsets = [38, 0], sizes = [8, 10], strides = [1, 1]} : vector<72x10xf32> to vector<8x10xf32>
    %209 = vector.extract_strided_slice %50 {offsets = [50, 0], sizes = [8, 10], strides = [1, 1]} : vector<72x10xf32> to vector<8x10xf32>
    %210 = tpu.concatenate %206, %207, %208, %209 in 0 : vector<8x10xf32>, vector<8x10xf32>, vector<8x10xf32>, vector<8x10xf32> -> vector<32x10xf32>
    %211 = vector.extract_strided_slice %50 {offsets = [16, 0], sizes = [8, 10], strides = [1, 1]} : vector<72x10xf32> to vector<8x10xf32>
    %212 = vector.extract_strided_slice %50 {offsets = [28, 0], sizes = [8, 10], strides = [1, 1]} : vector<72x10xf32> to vector<8x10xf32>
    %213 = vector.extract_strided_slice %50 {offsets = [40, 0], sizes = [8, 10], strides = [1, 1]} : vector<72x10xf32> to vector<8x10xf32>
    %214 = vector.extract_strided_slice %50 {offsets = [52, 0], sizes = [8, 10], strides = [1, 1]} : vector<72x10xf32> to vector<8x10xf32>
    %215 = tpu.concatenate %211, %212, %213, %214 in 0 : vector<8x10xf32>, vector<8x10xf32>, vector<8x10xf32>, vector<8x10xf32> -> vector<32x10xf32>
    %216 = vector.extract_strided_slice %50 {offsets = [24, 0], sizes = [8, 10], strides = [1, 1]} : vector<72x10xf32> to vector<8x10xf32>
    %217 = vector.extract_strided_slice %50 {offsets = [36, 0], sizes = [8, 10], strides = [1, 1]} : vector<72x10xf32> to vector<8x10xf32>
    %218 = vector.extract_strided_slice %50 {offsets = [48, 0], sizes = [8, 10], strides = [1, 1]} : vector<72x10xf32> to vector<8x10xf32>
    %219 = vector.extract_strided_slice %50 {offsets = [60, 0], sizes = [8, 10], strides = [1, 1]} : vector<72x10xf32> to vector<8x10xf32>
    %220 = tpu.concatenate %216, %217, %218, %219 in 0 : vector<8x10xf32>, vector<8x10xf32>, vector<8x10xf32>, vector<8x10xf32> -> vector<32x10xf32>
    %221 = vector.extract_strided_slice %50 {offsets = [26, 0], sizes = [8, 10], strides = [1, 1]} : vector<72x10xf32> to vector<8x10xf32>
    %222 = vector.extract_strided_slice %50 {offsets = [38, 0], sizes = [8, 10], strides = [1, 1]} : vector<72x10xf32> to vector<8x10xf32>
    %223 = vector.extract_strided_slice %50 {offsets = [50, 0], sizes = [8, 10], strides = [1, 1]} : vector<72x10xf32> to vector<8x10xf32>
    %224 = vector.extract_strided_slice %50 {offsets = [62, 0], sizes = [8, 10], strides = [1, 1]} : vector<72x10xf32> to vector<8x10xf32>
    %225 = tpu.concatenate %221, %222, %223, %224 in 0 : vector<8x10xf32>, vector<8x10xf32>, vector<8x10xf32>, vector<8x10xf32> -> vector<32x10xf32>
    %226 = vector.extract_strided_slice %50 {offsets = [28, 0], sizes = [8, 10], strides = [1, 1]} : vector<72x10xf32> to vector<8x10xf32>
    %227 = vector.extract_strided_slice %50 {offsets = [40, 0], sizes = [8, 10], strides = [1, 1]} : vector<72x10xf32> to vector<8x10xf32>
    %228 = vector.extract_strided_slice %50 {offsets = [52, 0], sizes = [8, 10], strides = [1, 1]} : vector<72x10xf32> to vector<8x10xf32>
    %229 = vector.extract_strided_slice %50 {offsets = [64, 0], sizes = [8, 10], strides = [1, 1]} : vector<72x10xf32> to vector<8x10xf32>
    %230 = tpu.concatenate %226, %227, %228, %229 in 0 : vector<8x10xf32>, vector<8x10xf32>, vector<8x10xf32>, vector<8x10xf32> -> vector<32x10xf32>
    %231 = tpu.concatenate %55, %100, %60, %105, %65, %145, %190, %150, %195, %155, %70, %115, %75, %120, %80, %160 in 1 : vector<32x10xf32>, vector<32x10xf32>, vector<32x10xf32>, vector<32x10xf32>, vector<32x10xf32>, vector<32x10xf32>, vector<32x10xf32>, vector<32x10xf32>, vector<32x10xf32>, vector<32x10xf32>, vector<32x10xf32>, vector<32x10xf32>, vector<32x10xf32>, vector<32x10xf32>, vector<32x10xf32>, vector<32x10xf32> -> vector<32x160xf32>
    %232 = tpu.concatenate %205, %165, %210, %170, %85, %130, %90, %135, %95 in 1 : vector<32x10xf32>, vector<32x10xf32>, vector<32x10xf32>, vector<32x10xf32>, vector<32x10xf32>, vector<32x10xf32>, vector<32x10xf32>, vector<32x10xf32>, vector<32x10xf32> -> vector<32x90xf32>
    %233 = tpu.concatenate %231, %232 in 1 : vector<32x160xf32>, vector<32x90xf32> -> vector<32x250xf32>
    %234 = arith.truncf %233 : vector<32x250xf32> to vector<32x250xbf16>
    %c0_15 = arith.constant 0 : index
    %c0_16 = arith.constant 0 : index
    %235 = vector.load %arg4[%c0_15, %c0_16] : memref<250x20xbf16, #tpu.memory_space<vmem>>, vector<250x20xbf16>
    %cst_17 = arith.constant dense<0.000000e+00> : vector<32x20xf32>
    %236 = tpu.matmul %234, %235, %cst_17 {dimension_numbers = #tpu.dot_dimension_numbers<[1], [0], [0], [1], [0, 0, 1, 1], [], []>} : vector<32x250xbf16>, vector<250x20xbf16>, vector<32x20xf32> -> vector<32x20xf32>
    %237 = tpu.concatenate %100, %60, %105, %65, %110, %190, %150, %195, %155, %200, %115, %75, %120, %80, %125, %205 in 1 : vector<32x10xf32>, vector<32x10xf32>, vector<32x10xf32>, vector<32x10xf32>, vector<32x10xf32>, vector<32x10xf32>, vector<32x10xf32>, vector<32x10xf32>, vector<32x10xf32>, vector<32x10xf32>, vector<32x10xf32>, vector<32x10xf32>, vector<32x10xf32>, vector<32x10xf32>, vector<32x10xf32>, vector<32x10xf32> -> vector<32x160xf32>
    %238 = tpu.concatenate %165, %210, %170, %215, %130, %90, %135, %95, %140 in 1 : vector<32x10xf32>, vector<32x10xf32>, vector<32x10xf32>, vector<32x10xf32>, vector<32x10xf32>, vector<32x10xf32>, vector<32x10xf32>, vector<32x10xf32>, vector<32x10xf32> -> vector<32x90xf32>
    %239 = tpu.concatenate %237, %238 in 1 : vector<32x160xf32>, vector<32x90xf32> -> vector<32x250xf32>
    %240 = arith.truncf %239 : vector<32x250xf32> to vector<32x250xbf16>
    %c0_18 = arith.constant 0 : index
    %c0_19 = arith.constant 0 : index
    %241 = vector.load %arg4[%c0_18, %c0_19] : memref<250x20xbf16, #tpu.memory_space<vmem>>, vector<250x20xbf16>
    %cst_20 = arith.constant dense<0.000000e+00> : vector<32x20xf32>
    %242 = tpu.matmul %240, %241, %cst_20 {dimension_numbers = #tpu.dot_dimension_numbers<[1], [0], [0], [1], [0, 0, 1, 1], [], []>} : vector<32x250xbf16>, vector<250x20xbf16>, vector<32x20xf32> -> vector<32x20xf32>
    %243 = arith.maximumf %236, %242 : vector<32x20xf32>
    %244 = tpu.concatenate %145, %190, %150, %195, %155, %70, %115, %75, %120, %80, %160, %205, %165, %210, %170, %85 in 1 : vector<32x10xf32>, vector<32x10xf32>, vector<32x10xf32>, vector<32x10xf32>, vector<32x10xf32>, vector<32x10xf32>, vector<32x10xf32>, vector<32x10xf32>, vector<32x10xf32>, vector<32x10xf32>, vector<32x10xf32>, vector<32x10xf32>, vector<32x10xf32>, vector<32x10xf32>, vector<32x10xf32>, vector<32x10xf32> -> vector<32x160xf32>
    %245 = tpu.concatenate %130, %90, %135, %95, %175, %220, %180, %225, %185 in 1 : vector<32x10xf32>, vector<32x10xf32>, vector<32x10xf32>, vector<32x10xf32>, vector<32x10xf32>, vector<32x10xf32>, vector<32x10xf32>, vector<32x10xf32>, vector<32x10xf32> -> vector<32x90xf32>
    %246 = tpu.concatenate %244, %245 in 1 : vector<32x160xf32>, vector<32x90xf32> -> vector<32x250xf32>
    %247 = arith.truncf %246 : vector<32x250xf32> to vector<32x250xbf16>
    %c0_21 = arith.constant 0 : index
    %c0_22 = arith.constant 0 : index
    %248 = vector.load %arg4[%c0_21, %c0_22] : memref<250x20xbf16, #tpu.memory_space<vmem>>, vector<250x20xbf16>
    %cst_23 = arith.constant dense<0.000000e+00> : vector<32x20xf32>
    %249 = tpu.matmul %247, %248, %cst_23 {dimension_numbers = #tpu.dot_dimension_numbers<[1], [0], [0], [1], [0, 0, 1, 1], [], []>} : vector<32x250xbf16>, vector<250x20xbf16>, vector<32x20xf32> -> vector<32x20xf32>
    %250 = arith.maximumf %243, %249 : vector<32x20xf32>
    %251 = tpu.concatenate %190, %150, %195, %155, %200, %115, %75, %120, %80, %125, %205, %165, %210, %170, %215, %130 in 1 : vector<32x10xf32>, vector<32x10xf32>, vector<32x10xf32>, vector<32x10xf32>, vector<32x10xf32>, vector<32x10xf32>, vector<32x10xf32>, vector<32x10xf32>, vector<32x10xf32>, vector<32x10xf32>, vector<32x10xf32>, vector<32x10xf32>, vector<32x10xf32>, vector<32x10xf32>, vector<32x10xf32>, vector<32x10xf32> -> vector<32x160xf32>
    %252 = tpu.concatenate %90, %135, %95, %140, %220, %180, %225, %185, %230 in 1 : vector<32x10xf32>, vector<32x10xf32>, vector<32x10xf32>, vector<32x10xf32>, vector<32x10xf32>, vector<32x10xf32>, vector<32x10xf32>, vector<32x10xf32>, vector<32x10xf32> -> vector<32x90xf32>
    %253 = tpu.concatenate %251, %252 in 1 : vector<32x160xf32>, vector<32x90xf32> -> vector<32x250xf32>
    %254 = arith.truncf %253 : vector<32x250xf32> to vector<32x250xbf16>
    %c0_24 = arith.constant 0 : index
    %c0_25 = arith.constant 0 : index
    %255 = vector.load %arg4[%c0_24, %c0_25] : memref<250x20xbf16, #tpu.memory_space<vmem>>, vector<250x20xbf16>
    %cst_26 = arith.constant dense<0.000000e+00> : vector<32x20xf32>
    %256 = tpu.matmul %254, %255, %cst_26 {dimension_numbers = #tpu.dot_dimension_numbers<[1], [0], [0], [1], [0, 0, 1, 1], [], []>} : vector<32x250xbf16>, vector<250x20xbf16>, vector<32x20xf32> -> vector<32x20xf32>
    %257 = arith.maximumf %250, %256 : vector<32x20xf32>
    %c0_27 = arith.constant 0 : index
    %c0_28 = arith.constant 0 : index
    %258 = vector.load %arg5[%c0_27, %c0_28] : memref<1x20xf32, #tpu.memory_space<vmem>>, vector<1x20xf32>
    %259 = vector.broadcast %258 : vector<1x20xf32> to vector<32x20xf32>
    %260 = arith.addf %257, %259 : vector<32x20xf32>
    %cst_29 = arith.constant 0.000000e+00 : f32
    %261 = vector.broadcast %cst_29 : f32 to vector<32x20xf32>
    %262 = arith.maximumf %260, %261 : vector<32x20xf32>
    %263 = vector.extract_strided_slice %262 {offsets = [0, 0], sizes = [2, 20], strides = [1, 1]} : vector<32x20xf32> to vector<2x20xf32>
    %264 = vector.extract_strided_slice %262 {offsets = [2, 0], sizes = [2, 20], strides = [1, 1]} : vector<32x20xf32> to vector<2x20xf32>
    %265 = vector.extract_strided_slice %262 {offsets = [4, 0], sizes = [2, 20], strides = [1, 1]} : vector<32x20xf32> to vector<2x20xf32>
    %266 = vector.extract_strided_slice %262 {offsets = [6, 0], sizes = [2, 20], strides = [1, 1]} : vector<32x20xf32> to vector<2x20xf32>
    %267 = vector.extract_strided_slice %262 {offsets = [8, 0], sizes = [2, 20], strides = [1, 1]} : vector<32x20xf32> to vector<2x20xf32>
    %268 = vector.extract_strided_slice %262 {offsets = [10, 0], sizes = [2, 20], strides = [1, 1]} : vector<32x20xf32> to vector<2x20xf32>
    %269 = vector.extract_strided_slice %262 {offsets = [12, 0], sizes = [2, 20], strides = [1, 1]} : vector<32x20xf32> to vector<2x20xf32>
    %270 = vector.extract_strided_slice %262 {offsets = [14, 0], sizes = [2, 20], strides = [1, 1]} : vector<32x20xf32> to vector<2x20xf32>
    %271 = vector.extract_strided_slice %262 {offsets = [16, 0], sizes = [2, 20], strides = [1, 1]} : vector<32x20xf32> to vector<2x20xf32>
    %272 = vector.extract_strided_slice %262 {offsets = [18, 0], sizes = [2, 20], strides = [1, 1]} : vector<32x20xf32> to vector<2x20xf32>
    %273 = vector.extract_strided_slice %262 {offsets = [20, 0], sizes = [2, 20], strides = [1, 1]} : vector<32x20xf32> to vector<2x20xf32>
    %274 = vector.extract_strided_slice %262 {offsets = [22, 0], sizes = [2, 20], strides = [1, 1]} : vector<32x20xf32> to vector<2x20xf32>
    %275 = vector.extract_strided_slice %262 {offsets = [24, 0], sizes = [2, 20], strides = [1, 1]} : vector<32x20xf32> to vector<2x20xf32>
    %276 = vector.extract_strided_slice %262 {offsets = [26, 0], sizes = [2, 20], strides = [1, 1]} : vector<32x20xf32> to vector<2x20xf32>
    %277 = vector.extract_strided_slice %262 {offsets = [28, 0], sizes = [2, 20], strides = [1, 1]} : vector<32x20xf32> to vector<2x20xf32>
    %278 = vector.extract_strided_slice %262 {offsets = [30, 0], sizes = [2, 20], strides = [1, 1]} : vector<32x20xf32> to vector<2x20xf32>
    %279 = tpu.concatenate %263, %264, %265, %266, %267, %268, %269, %270, %271, %272, %273, %274, %275, %276, %277, %278 in 1 : vector<2x20xf32>, vector<2x20xf32>, vector<2x20xf32>, vector<2x20xf32>, vector<2x20xf32>, vector<2x20xf32>, vector<2x20xf32>, vector<2x20xf32>, vector<2x20xf32>, vector<2x20xf32>, vector<2x20xf32>, vector<2x20xf32>, vector<2x20xf32>, vector<2x20xf32>, vector<2x20xf32>, vector<2x20xf32> -> vector<2x320xf32>
    %280 = arith.truncf %279 : vector<2x320xf32> to vector<2x320xbf16>
    %c0_30 = arith.constant 0 : index
    %c0_31 = arith.constant 0 : index
    %281 = vector.load %arg6[%c0_30, %c0_31] : memref<320x50xbf16, #tpu.memory_space<vmem>>, vector<320x50xbf16>
    %cst_32 = arith.constant dense<0.000000e+00> : vector<2x50xf32>
    %282 = tpu.matmul %280, %281, %cst_32 {dimension_numbers = #tpu.dot_dimension_numbers<[1], [0], [0], [1], [0, 0, 1, 1], [], []>} : vector<2x320xbf16>, vector<320x50xbf16>, vector<2x50xf32> -> vector<2x50xf32>
    %c0_33 = arith.constant 0 : index
    %c0_34 = arith.constant 0 : index
    %283 = vector.load %arg7[%c0_33, %c0_34] : memref<1x50xf32, #tpu.memory_space<vmem>>, vector<1x50xf32>
    %284 = vector.broadcast %283 : vector<1x50xf32> to vector<2x50xf32>
    %285 = arith.addf %282, %284 : vector<2x50xf32>
    %cst_35 = arith.constant 0.000000e+00 : f32
    %286 = vector.broadcast %cst_35 : f32 to vector<2x50xf32>
    %287 = arith.maximumf %285, %286 : vector<2x50xf32>
    %288 = arith.truncf %287 : vector<2x50xf32> to vector<2x50xbf16>
    %c0_36 = arith.constant 0 : index
    %c0_37 = arith.constant 0 : index
    %289 = vector.load %arg8[%c0_36, %c0_37] : memref<50x10xbf16, #tpu.memory_space<vmem>>, vector<50x10xbf16>
    %cst_38 = arith.constant dense<0.000000e+00> : vector<2x10xf32>
    %290 = tpu.matmul %288, %289, %cst_38 {dimension_numbers = #tpu.dot_dimension_numbers<[1], [0], [0], [1], [0, 0, 1, 1], [], []>} : vector<2x50xbf16>, vector<50x10xbf16>, vector<2x10xf32> -> vector<2x10xf32>
    %c0_39 = arith.constant 0 : index
    %c0_40 = arith.constant 0 : index
    %291 = vector.load %arg9[%c0_39, %c0_40] : memref<1x10xf32, #tpu.memory_space<vmem>>, vector<1x10xf32>
    %292 = vector.broadcast %291 : vector<1x10xf32> to vector<2x10xf32>
    %293 = arith.addf %290, %292 : vector<2x10xf32>
    %cst_41 = arith.constant dense<0xFF800000> : vector<2xf32>
    %294 = vector.multi_reduction <maximumf>, %293, %cst_41 [1] : vector<2x10xf32> to vector<2xf32>
    %295 = vector.shape_cast %294 : vector<2xf32> to vector<2x1xf32>
    %296 = vector.broadcast %295 : vector<2x1xf32> to vector<2x10xf32>
    %297 = arith.subf %293, %296 : vector<2x10xf32>
    %298 = math.exp %297 : vector<2x10xf32>
    %cst_42 = arith.constant dense<0.000000e+00> : vector<2xf32>
    %299 = vector.multi_reduction <add>, %298, %cst_42 [1] : vector<2x10xf32> to vector<2xf32>
    %300 = vector.shape_cast %299 : vector<2xf32> to vector<2x1xf32>
    %301 = math.log %300 : vector<2x1xf32>
    %302 = vector.broadcast %301 : vector<2x1xf32> to vector<2x10xf32>
    %303 = arith.subf %297, %302 : vector<2x10xf32>
    %c0_43 = arith.constant 0 : index
    %c0_44 = arith.constant 0 : index
    %304 = vector.load %arg10[%c0_43, %c0_44] : memref<2x10xf32, #tpu.memory_space<vmem>>, vector<2x10xf32>
    tpu.vector_store %arg10[%c0_43, %c0_44], %303 {strides = array<i32>} : memref<2x10xf32, #tpu.memory_space<vmem>>, vector<2x10xf32>,
    return
  }
  func.func @transform_0(%arg0: i32) -> (i32, i32) {
    %c0_i32 = arith.constant 0 : i32
    %c0_i32_0 = arith.constant 0 : i32
    %c0_i32_1 = arith.constant 0 : i32
    return %c0_i32, %c0_i32_0 : i32, i32
  }
  func.func @transform_1(%arg0: i32) -> (i32, i32) {
    %c0_i32 = arith.constant 0 : i32
    %c0_i32_0 = arith.constant 0 : i32
    %c0_i32_1 = arith.constant 0 : i32
    return %c0_i32, %c0_i32_0 : i32, i32
  }
  func.func @transform_2(%arg0: i32) -> (i32, i32) {
    %c0_i32 = arith.constant 0 : i32
    %c0_i32_0 = arith.constant 0 : i32
    %c0_i32_1 = arith.constant 0 : i32
    return %c0_i32, %c0_i32_0 : i32, i32
  }
  func.func @transform_3(%arg0: i32) -> (i32, i32) {
    %c0_i32 = arith.constant 0 : i32
    %c0_i32_0 = arith.constant 0 : i32
    %c0_i32_1 = arith.constant 0 : i32
    return %c0_i32, %c0_i32_0 : i32, i32
  }
  func.func @transform_4(%arg0: i32) -> (i32, i32) {
    %c0_i32 = arith.constant 0 : i32
    %c0_i32_0 = arith.constant 0 : i32
    %c0_i32_1 = arith.constant 0 : i32
    return %c0_i32, %c0_i32_0 : i32, i32
  }
  func.func @transform_5(%arg0: i32) -> (i32, i32) {
    %c0_i32 = arith.constant 0 : i32
    %c0_i32_0 = arith.constant 0 : i32
    %c0_i32_1 = arith.constant 0 : i32
    return %c0_i32, %c0_i32_0 : i32, i32
  }
  func.func @transform_6(%arg0: i32) -> (i32, i32) {
    %c0_i32 = arith.constant 0 : i32
    %c0_i32_0 = arith.constant 0 : i32
    %c0_i32_1 = arith.constant 0 : i32
    return %c0_i32, %c0_i32_0 : i32, i32
  }
  func.func @transform_7(%arg0: i32) -> (i32, i32) {
    %c0_i32 = arith.constant 0 : i32
    %c0_i32_0 = arith.constant 0 : i32
    %c0_i32_1 = arith.constant 0 : i32
    return %c0_i32, %c0_i32_0 : i32, i32
  }
  func.func @transform_8(%arg0: i32) -> (i32, i32) {
    %c0_i32 = arith.constant 0 : i32
    %c0_i32_0 = arith.constant 0 : i32
    %c0_i32_1 = arith.constant 0 : i32
    return %c0_i32, %c0_i32_0 : i32, i32
  }
  func.func @transform_9(%arg0: i32) -> (i32, i32) {
    %c0_i32 = arith.constant 0 : i32
    %c0_i32_0 = arith.constant 0 : i32
    %c0_i32_1 = arith.constant 0 : i32
    return %c0_i32, %c0_i32_0 : i32, i32
  }
}

</mosaic_0001>

<llo_original>
// kernel: lenet_forward.1
$region0: #{lenet_forward.1}
  #allocation0 [shape = 'u32[]', space=smem, size = 0x4, offset = 0x4, fixed_abs, tag = 'smem constant byte address 0x4 - core index']
  #allocation1 [shape = 'u32[144,128]{1,0:T(1,128)}', space=vmem, size = 0x12000, scoped, tag = 'internal scratch']
  %s0 = inlined_call_operand.vmem [shape: bf16[1152,32], index: 0, kind: input, shape index: {}]
  %s1 = inlined_call_operand.vmem [shape: bf16[32,10], index: 1, kind: input, shape index: {}]
  %s2 = inlined_call_operand.vmem [shape: f32[1,10], index: 2, kind: input, shape index: {}]
  %s3 = inlined_call_operand.vmem [shape: bf16[250,20], index: 3, kind: input, shape index: {}]
  %s4 = inlined_call_operand.vmem [shape: f32[1,20], index: 4, kind: input, shape index: {}]
  %s5 = inlined_call_operand.vmem [shape: bf16[320,50], index: 5, kind: input, shape index: {}]
  %s6 = inlined_call_operand.vmem [shape: f32[1,50], index: 6, kind: input, shape index: {}]
  %s7 = inlined_call_operand.vmem [shape: bf16[50,10], index: 7, kind: input, shape index: {}]
  %s8 = inlined_call_operand.vmem [shape: f32[1,10], index: 8, kind: input, shape index: {}]
  %s9 = inlined_call_operand.hbm [shape: f32[2,10], index: 9, kind: output, shape index: {}]
  %s10 = sld [smem:[#allocation0]]
  $region46: #{lenet_forward.1} parent=0
    _
  %s12 = ssub.s32 1, %s10
  %s13 = scalar_select 0, %s12, %s10
  $region1: #{lenet_forward.1} parent=0
    #allocation2 [shape = 'u8[1024]{0}', space=vmem, size = 0x400, scoped, tag = 'output window, operand 0, single buffered']
    #allocation3 [shape = 's32[1]{0}', space=sflag, size = 0x4, scoped, tag = 'scoped memory for lenet_forward.1']
    %14 = vsyncpa [#allocation3], 0
    // Predicated region
    $region2: #{lenet_forward.1} parent=1 // pred_check
      _
    $region3: #{lenet_forward.1} parent=1 // pred_check_branch
      %16 = sbr.rel (0) target = $region5
    $region4: #{lenet_forward.1} parent=1 // pred_region
      _
    $region5: #{lenet_forward.1} parent=1 // pred_fallthru
      _
    // Predicated region
    $region6: #{lenet_forward.1} parent=1 // pred_check
      _
    $region7: #{lenet_forward.1} parent=1 // pred_check_branch
      %18 = sbr.rel (0) target = $region9
    $region8: #{lenet_forward.1} parent=1 // pred_region
      _
    $region9: #{lenet_forward.1} parent=1 // pred_fallthru
      _
    // Predicated region
    $region10: #{lenet_forward.1} parent=1 // pred_check
      _
    $region11: #{lenet_forward.1} parent=1 // pred_check_branch
      %20 = sbr.rel (0) target = $region13
    $region12: #{lenet_forward.1} parent=1 // pred_region
      _
    $region13: #{lenet_forward.1} parent=1 // pred_fallthru
      _
    // Predicated region
    $region14: #{lenet_forward.1} parent=1 // pred_check
      _
    $region15: #{lenet_forward.1} parent=1 // pred_check_branch
      %22 = sbr.rel (0) target = $region17
    $region16: #{lenet_forward.1} parent=1 // pred_region
      _
    $region17: #{lenet_forward.1} parent=1 // pred_fallthru
      _
    // Predicated region
    $region18: #{lenet_forward.1} parent=1 // pred_check
      _
    $region19: #{lenet_forward.1} parent=1 // pred_check_branch
      %24 = sbr.rel (0) target = $region21
    $region20: #{lenet_forward.1} parent=1 // pred_region
      _
    $region21: #{lenet_forward.1} parent=1 // pred_fallthru
      _
    // Predicated region
    $region22: #{lenet_forward.1} parent=1 // pred_check
      _
    $region23: #{lenet_forward.1} parent=1 // pred_check_branch
      %26 = sbr.rel (0) target = $region25
    $region24: #{lenet_forward.1} parent=1 // pred_region
      _
    $region25: #{lenet_forward.1} parent=1 // pred_fallthru
      _
    // Predicated region
    $region26: #{lenet_forward.1} parent=1 // pred_check
      _
    $region27: #{lenet_forward.1} parent=1 // pred_check_branch
      %28 = sbr.rel (0) target = $region29
    $region28: #{lenet_forward.1} parent=1 // pred_region
      _
    $region29: #{lenet_forward.1} parent=1 // pred_fallthru
      _
    // Predicated region
    $region30: #{lenet_forward.1} parent=1 // pred_check
      _
    $region31: #{lenet_forward.1} parent=1 // pred_check_branch
      %30 = sbr.rel (0) target = $region33
    $region32: #{lenet_forward.1} parent=1 // pred_region
      _
    $region33: #{lenet_forward.1} parent=1 // pred_fallthru
      _
    // Predicated region
    $region34: #{lenet_forward.1} parent=1 // pred_check
      _
    $region35: #{lenet_forward.1} parent=1 // pred_check_branch
      %32 = sbr.rel (0) target = $region37
    $region36: #{lenet_forward.1} parent=1 // pred_region
      _
    $region37: #{lenet_forward.1} parent=1 // pred_fallthru
      _
    %v34 = vld [vmem:[%s0] sm:$0xf]
    %v35 = vld [vmem:[%s0 + $0x4] sm:$0xf]
    %v36 = vld [vmem:[%s0 + $0x8] sm:$0xf]
    %v37 = vld [vmem:[%s0 + $0xc] sm:$0xf]
    %v38 = vld [vmem:[%s0 + $0x10] sm:$0xf]
    %v39 = vld [vmem:[%s0 + $0x14] sm:$0xf]
    %v40 = vld [vmem:[%s0 + $0x18] sm:$0xf]
    %v41 = vld [vmem:[%s0 + $0x1c] sm:$0xf]
    %v42 = vld [vmem:[%s0 + $0x20] sm:$0xf]
    %v43 = vld [vmem:[%s0 + $0x24] sm:$0xf]
    %v44 = vld [vmem:[%s0 + $0x28] sm:$0xf]
    %v45 = vld [vmem:[%s0 + $0x2c] sm:$0xf]
    %v46 = vld [vmem:[%s0 + $0x30] sm:$0xf]
    %v47 = vld [vmem:[%s0 + $0x34] sm:$0xf]
    %v48 = vld [vmem:[%s0 + $0x38] sm:$0xf]
    %v49 = vld [vmem:[%s0 + $0x3c] sm:$0xf]
    %v50 = vld [vmem:[%s0 + $0x40] sm:$0xf]
    %v51 = vld [vmem:[%s0 + $0x44] sm:$0xf]
    %v52 = vld [vmem:[%s0 + $0x48] sm:$0xf]
    %v53 = vld [vmem:[%s0 + $0x4c] sm:$0xf]
    %v54 = vld [vmem:[%s0 + $0x50] sm:$0xf]
    %v55 = vld [vmem:[%s0 + $0x54] sm:$0xf]
    %v56 = vld [vmem:[%s0 + $0x58] sm:$0xf]
    %v57 = vld [vmem:[%s0 + $0x5c] sm:$0xf]
    %v58 = vld [vmem:[%s0 + $0x60] sm:$0xf]
    %v59 = vld [vmem:[%s0 + $0x64] sm:$0xf]
    %v60 = vld [vmem:[%s0 + $0x68] sm:$0xf]
    %v61 = vld [vmem:[%s0 + $0x6c] sm:$0xf]
    %v62 = vld [vmem:[%s0 + $0x70] sm:$0xf]
    %v63 = vld [vmem:[%s0 + $0x74] sm:$0xf]
    %v64 = vld [vmem:[%s0 + $0x78] sm:$0xf]
    %v65 = vld [vmem:[%s0 + $0x7c] sm:$0xf]
    %v66 = vld [vmem:[%s0 + $0x80] sm:$0xf]
    %v67 = vld [vmem:[%s0 + $0x84] sm:$0xf]
    %v68 = vld [vmem:[%s0 + $0x88] sm:$0xf]
    %v69 = vld [vmem:[%s0 + $0x8c] sm:$0xf]
    %v70 = vld [vmem:[%s0 + $0x90] sm:$0xf]
    %v71 = vld [vmem:[%s0 + $0x94] sm:$0xf]
    %v72 = vld [vmem:[%s0 + $0x98] sm:$0xf]
    %v73 = vld [vmem:[%s0 + $0x9c] sm:$0xf]
    %v74 = vld [vmem:[%s0 + $0xa0] sm:$0xf]
    %v75 = vld [vmem:[%s0 + $0xa4] sm:$0xf]
    %v76 = vld [vmem:[%s0 + $0xa8] sm:$0xf]
    %v77 = vld [vmem:[%s0 + $0xac] sm:$0xf]
    %v78 = vld [vmem:[%s0 + $0xb0] sm:$0xf]
    %v79 = vld [vmem:[%s0 + $0xb4] sm:$0xf]
    %v80 = vld [vmem:[%s0 + $0xb8] sm:$0xf]
    %v81 = vld [vmem:[%s0 + $0xbc] sm:$0xf]
    %v82 = vld [vmem:[%s0 + $0xc0] sm:$0xf]
    %v83 = vld [vmem:[%s0 + $0xc4] sm:$0xf]
    %v84 = vld [vmem:[%s0 + $0xc8] sm:$0xf]
    %v85 = vld [vmem:[%s0 + $0xcc] sm:$0xf]
    %v86 = vld [vmem:[%s0 + $0xd0] sm:$0xf]
    %v87 = vld [vmem:[%s0 + $0xd4] sm:$0xf]
    %v88 = vld [vmem:[%s0 + $0xd8] sm:$0xf]
    %v89 = vld [vmem:[%s0 + $0xdc] sm:$0xf]
    %v90 = vld [vmem:[%s0 + $0xe0] sm:$0xf]
    %v91 = vld [vmem:[%s0 + $0xe4] sm:$0xf]
    %v92 = vld [vmem:[%s0 + $0xe8] sm:$0xf]
    %v93 = vld [vmem:[%s0 + $0xec] sm:$0xf]
    %v94 = vld [vmem:[%s0 + $0xf0] sm:$0xf]
    %v95 = vld [vmem:[%s0 + $0xf4] sm:$0xf]
    %v96 = vld [vmem:[%s0 + $0xf8] sm:$0xf]
    %v97 = vld [vmem:[%s0 + $0xfc] sm:$0xf]
    %v98 = vld [vmem:[%s0 + $0x100] sm:$0xf]
    %v99 = vld [vmem:[%s0 + $0x104] sm:$0xf]
    %v100 = vld [vmem:[%s0 + $0x108] sm:$0xf]
    %v101 = vld [vmem:[%s0 + $0x10c] sm:$0xf]
    %v102 = vld [vmem:[%s0 + $0x110] sm:$0xf]
    %v103 = vld [vmem:[%s0 + $0x114] sm:$0xf]
    %v104 = vld [vmem:[%s0 + $0x118] sm:$0xf]
    %v105 = vld [vmem:[%s0 + $0x11c] sm:$0xf]
    %v106 = vld [vmem:[%s0 + $0x120] sm:$0xf]
    %v107 = vld [vmem:[%s0 + $0x124] sm:$0xf]
    %v108 = vld [vmem:[%s0 + $0x128] sm:$0xf]
    %v109 = vld [vmem:[%s0 + $0x12c] sm:$0xf]
    %v110 = vld [vmem:[%s0 + $0x130] sm:$0xf]
    %v111 = vld [vmem:[%s0 + $0x134] sm:$0xf]
    %v112 = vld [vmem:[%s0 + $0x138] sm:$0xf]
    %v113 = vld [vmem:[%s0 + $0x13c] sm:$0xf]
    %v114 = vld [vmem:[%s0 + $0x140] sm:$0xf]
    %v115 = vld [vmem:[%s0 + $0x144] sm:$0xf]
    %v116 = vld [vmem:[%s0 + $0x148] sm:$0xf]
    %v117 = vld [vmem:[%s0 + $0x14c] sm:$0xf]
    %v118 = vld [vmem:[%s0 + $0x150] sm:$0xf]
    %v119 = vld [vmem:[%s0 + $0x154] sm:$0xf]
    %v120 = vld [vmem:[%s0 + $0x158] sm:$0xf]
    %v121 = vld [vmem:[%s0 + $0x15c] sm:$0xf]
    %v122 = vld [vmem:[%s0 + $0x160] sm:$0xf]
    %v123 = vld [vmem:[%s0 + $0x164] sm:$0xf]
    %v124 = vld [vmem:[%s0 + $0x168] sm:$0xf]
    %v125 = vld [vmem:[%s0 + $0x16c] sm:$0xf]
    %v126 = vld [vmem:[%s0 + $0x170] sm:$0xf]
    %v127 = vld [vmem:[%s0 + $0x174] sm:$0xf]
    %v128 = vld [vmem:[%s0 + $0x178] sm:$0xf]
    %v129 = vld [vmem:[%s0 + $0x17c] sm:$0xf]
    %v130 = vld [vmem:[%s0 + $0x180] sm:$0xf]
    %v131 = vld [vmem:[%s0 + $0x184] sm:$0xf]
    %v132 = vld [vmem:[%s0 + $0x188] sm:$0xf]
    %v133 = vld [vmem:[%s0 + $0x18c] sm:$0xf]
    %v134 = vld [vmem:[%s0 + $0x190] sm:$0xf]
    %v135 = vld [vmem:[%s0 + $0x194] sm:$0xf]
    %v136 = vld [vmem:[%s0 + $0x198] sm:$0xf]
    %v137 = vld [vmem:[%s0 + $0x19c] sm:$0xf]
    %v138 = vld [vmem:[%s0 + $0x1a0] sm:$0xf]
    %v139 = vld [vmem:[%s0 + $0x1a4] sm:$0xf]
    %v140 = vld [vmem:[%s0 + $0x1a8] sm:$0xf]
    %v141 = vld [vmem:[%s0 + $0x1ac] sm:$0xf]
    %v142 = vld [vmem:[%s0 + $0x1b0] sm:$0xf]
    %v143 = vld [vmem:[%s0 + $0x1b4] sm:$0xf]
    %v144 = vld [vmem:[%s0 + $0x1b8] sm:$0xf]
    %v145 = vld [vmem:[%s0 + $0x1bc] sm:$0xf]
    %v146 = vld [vmem:[%s0 + $0x1c0] sm:$0xf]
    %v147 = vld [vmem:[%s0 + $0x1c4] sm:$0xf]
    %v148 = vld [vmem:[%s0 + $0x1c8] sm:$0xf]
    %v149 = vld [vmem:[%s0 + $0x1cc] sm:$0xf]
    %v150 = vld [vmem:[%s0 + $0x1d0] sm:$0xf]
    %v151 = vld [vmem:[%s0 + $0x1d4] sm:$0xf]
    %v152 = vld [vmem:[%s0 + $0x1d8] sm:$0xf]
    %v153 = vld [vmem:[%s0 + $0x1dc] sm:$0xf]
    %v154 = vld [vmem:[%s0 + $0x1e0] sm:$0xf]
    %v155 = vld [vmem:[%s0 + $0x1e4] sm:$0xf]
    %v156 = vld [vmem:[%s0 + $0x1e8] sm:$0xf]
    %v157 = vld [vmem:[%s0 + $0x1ec] sm:$0xf]
    %v158 = vld [vmem:[%s0 + $0x1f0] sm:$0xf]
    %v159 = vld [vmem:[%s0 + $0x1f4] sm:$0xf]
    %v160 = vld [vmem:[%s0 + $0x1f8] sm:$0xf]
    %v161 = vld [vmem:[%s0 + $0x1fc] sm:$0xf]
    %v162 = vld [vmem:[%s0 + $0x200] sm:$0xf]
    %v163 = vld [vmem:[%s0 + $0x204] sm:$0xf]
    %v164 = vld [vmem:[%s0 + $0x208] sm:$0xf]
    %v165 = vld [vmem:[%s0 + $0x20c] sm:$0xf]
    %v166 = vld [vmem:[%s0 + $0x210] sm:$0xf]
    %v167 = vld [vmem:[%s0 + $0x214] sm:$0xf]
    %v168 = vld [vmem:[%s0 + $0x218] sm:$0xf]
    %v169 = vld [vmem:[%s0 + $0x21c] sm:$0xf]
    %v170 = vld [vmem:[%s0 + $0x220] sm:$0xf]
    %v171 = vld [vmem:[%s0 + $0x224] sm:$0xf]
    %v172 = vld [vmem:[%s0 + $0x228] sm:$0xf]
    %v173 = vld [vmem:[%s0 + $0x22c] sm:$0xf]
    %v174 = vld [vmem:[%s0 + $0x230] sm:$0xf]
    %v175 = vld [vmem:[%s0 + $0x234] sm:$0xf]
    %v176 = vld [vmem:[%s0 + $0x238] sm:$0xf]
    %v177 = vld [vmem:[%s0 + $0x23c] sm:$0xf]
    %v178 = vld [vmem:[%s1] sm:$0xf]
    %v179 = vld [vmem:[%s1 + $0x4] sm:$0xf]
    %v180 = vld [vmem:[%s1 + $0x8] sm:$0xf]
    %v181 = vld [vmem:[%s1 + $0xc] sm:$0xf]
    %v326 = vunpack.c.l.b16 %v34
    %v327 = vunpack.c.l.b16 %v35
    %v328 = vunpack.c.l.b16 %v36
    %v329 = vunpack.c.l.b16 %v37
    %v330 = vunpack.c.l.b16 %v38
    %v331 = vunpack.c.l.b16 %v39
    %v332 = vunpack.c.l.b16 %v40
    %v333 = vunpack.c.l.b16 %v41
    %v334 = vunpack.c.l.b16 %v42
    %v335 = vunpack.c.l.b16 %v43
    %v336 = vunpack.c.l.b16 %v44
    %v337 = vunpack.c.l.b16 %v45
    %v338 = vunpack.c.l.b16 %v46
    %v339 = vunpack.c.l.b16 %v47
    %v340 = vunpack.c.l.b16 %v48
    %v341 = vunpack.c.l.b16 %v49
    %v342 = vunpack.c.l.b16 %v50
    %v343 = vunpack.c.l.b16 %v51
    %v344 = vunpack.c.l.b16 %v52
    %v345 = vunpack.c.l.b16 %v53
    %v346 = vunpack.c.l.b16 %v54
    %v347 = vunpack.c.l.b16 %v55
    %v348 = vunpack.c.l.b16 %v56
    %v349 = vunpack.c.l.b16 %v57
    %v350 = vunpack.c.l.b16 %v58
    %v351 = vunpack.c.l.b16 %v59
    %v352 = vunpack.c.l.b16 %v60
    %v353 = vunpack.c.l.b16 %v61
    %v354 = vunpack.c.l.b16 %v62
    %v355 = vunpack.c.l.b16 %v63
    %v356 = vunpack.c.l.b16 %v64
    %v357 = vunpack.c.l.b16 %v65
    %v358 = vunpack.c.l.b16 %v66
    %v359 = vunpack.c.l.b16 %v67
    %v360 = vunpack.c.l.b16 %v68
    %v361 = vunpack.c.l.b16 %v69
    %v362 = vunpack.c.l.b16 %v70
    %v363 = vunpack.c.l.b16 %v71
    %v364 = vunpack.c.l.b16 %v72
    %v365 = vunpack.c.l.b16 %v73
    %v366 = vunpack.c.l.b16 %v74
    %v367 = vunpack.c.l.b16 %v75
    %v368 = vunpack.c.l.b16 %v76
    %v369 = vunpack.c.l.b16 %v77
    %v370 = vunpack.c.l.b16 %v78
    %v371 = vunpack.c.l.b16 %v79
    %v372 = vunpack.c.l.b16 %v80
    %v373 = vunpack.c.l.b16 %v81
    %v374 = vunpack.c.l.b16 %v82
    %v375 = vunpack.c.l.b16 %v83
    %v376 = vunpack.c.l.b16 %v84
    %v377 = vunpack.c.l.b16 %v85
    %v378 = vunpack.c.l.b16 %v86
    %v379 = vunpack.c.l.b16 %v87
    %v380 = vunpack.c.l.b16 %v88
    %v381 = vunpack.c.l.b16 %v89
    %v382 = vunpack.c.l.b16 %v90
    %v383 = vunpack.c.l.b16 %v91
    %v384 = vunpack.c.l.b16 %v92
    %v385 = vunpack.c.l.b16 %v93
    %v386 = vunpack.c.l.b16 %v94
    %v387 = vunpack.c.l.b16 %v95
    %v388 = vunpack.c.l.b16 %v96
    %v389 = vunpack.c.l.b16 %v97
    %v390 = vunpack.c.l.b16 %v98
    %v391 = vunpack.c.l.b16 %v99
    %v392 = vunpack.c.l.b16 %v100
    %v393 = vunpack.c.l.b16 %v101
    %v394 = vunpack.c.l.b16 %v102
    %v395 = vunpack.c.l.b16 %v103
    %v396 = vunpack.c.l.b16 %v104
    %v397 = vunpack.c.l.b16 %v105
    %v398 = vunpack.c.l.b16 %v106
    %v399 = vunpack.c.l.b16 %v107
    %v400 = vunpack.c.l.b16 %v108
    %v401 = vunpack.c.l.b16 %v109
    %v402 = vunpack.c.l.b16 %v110
    %v403 = vunpack.c.l.b16 %v111
    %v404 = vunpack.c.l.b16 %v112
    %v405 = vunpack.c.l.b16 %v113
    %v406 = vunpack.c.l.b16 %v114
    %v407 = vunpack.c.l.b16 %v115
    %v408 = vunpack.c.l.b16 %v116
    %v409 = vunpack.c.l.b16 %v117
    %v410 = vunpack.c.l.b16 %v118
    %v411 = vunpack.c.l.b16 %v119
    %v412 = vunpack.c.l.b16 %v120
    %v413 = vunpack.c.l.b16 %v121
    %v414 = vunpack.c.l.b16 %v122
    %v415 = vunpack.c.l.b16 %v123
    %v416 = vunpack.c.l.b16 %v124
    %v417 = vunpack.c.l.b16 %v125
    %v418 = vunpack.c.l.b16 %v126
    %v419 = vunpack.c.l.b16 %v127
    %v420 = vunpack.c.l.b16 %v128
    %v421 = vunpack.c.l.b16 %v129
    %v422 = vunpack.c.l.b16 %v130
    %v423 = vunpack.c.l.b16 %v131
    %v424 = vunpack.c.l.b16 %v132
    %v425 = vunpack.c.l.b16 %v133
    %v426 = vunpack.c.l.b16 %v134
    %v427 = vunpack.c.l.b16 %v135
    %v428 = vunpack.c.l.b16 %v136
    %v429 = vunpack.c.l.b16 %v137
    %v430 = vunpack.c.l.b16 %v138
    %v431 = vunpack.c.l.b16 %v139
    %v432 = vunpack.c.l.b16 %v140
    %v433 = vunpack.c.l.b16 %v141
    %v434 = vunpack.c.l.b16 %v142
    %v435 = vunpack.c.l.b16 %v143
    %v436 = vunpack.c.l.b16 %v144
    %v437 = vunpack.c.l.b16 %v145
    %v438 = vunpack.c.l.b16 %v146
    %v439 = vunpack.c.l.b16 %v147
    %v440 = vunpack.c.l.b16 %v148
    %v441 = vunpack.c.l.b16 %v149
    %v442 = vunpack.c.l.b16 %v150
    %v443 = vunpack.c.l.b16 %v151
    %v444 = vunpack.c.l.b16 %v152
    %v445 = vunpack.c.l.b16 %v153
    %v446 = vunpack.c.l.b16 %v154
    %v447 = vunpack.c.l.b16 %v155
    %v448 = vunpack.c.l.b16 %v156
    %v449 = vunpack.c.l.b16 %v157
    %v450 = vunpack.c.l.b16 %v158
    %v451 = vunpack.c.l.b16 %v159
    %v452 = vunpack.c.l.b16 %v160
    %v453 = vunpack.c.l.b16 %v161
    %v454 = vunpack.c.l.b16 %v162
    %v455 = vunpack.c.l.b16 %v163
    %v456 = vunpack.c.l.b16 %v164
    %v457 = vunpack.c.l.b16 %v165
    %v458 = vunpack.c.l.b16 %v166
    %v459 = vunpack.c.l.b16 %v167
    %v460 = vunpack.c.l.b16 %v168
    %v461 = vunpack.c.l.b16 %v169
    %v462 = vunpack.c.l.b16 %v170
    %v463 = vunpack.c.l.b16 %v171
    %v464 = vunpack.c.l.b16 %v172
    %v465 = vunpack.c.l.b16 %v173
    %v466 = vunpack.c.l.b16 %v174
    %v467 = vunpack.c.l.b16 %v175
    %v468 = vunpack.c.l.b16 %v176
    %v469 = vunpack.c.l.b16 %v177
    %v470 = vpack.c.b16 %v327, %v326
    %v471 = vpack.c.b16 %v329, %v328
    %v472 = vpack.c.b16 %v331, %v330
    %v473 = vpack.c.b16 %v333, %v332
    %v474 = vpack.c.b16 %v335, %v334
    %v475 = vpack.c.b16 %v337, %v336
    %v476 = vpack.c.b16 %v339, %v338
    %v477 = vpack.c.b16 %v341, %v340
    %v478 = vpack.c.b16 %v343, %v342
    %v479 = vpack.c.b16 %v345, %v344
    %v480 = vpack.c.b16 %v347, %v346
    %v481 = vpack.c.b16 %v349, %v348
    %v482 = vpack.c.b16 %v351, %v350
    %v483 = vpack.c.b16 %v353, %v352
    %v484 = vpack.c.b16 %v355, %v354
    %v485 = vpack.c.b16 %v357, %v356
    %v486 = vpack.c.b16 %v359, %v358
    %v487 = vpack.c.b16 %v361, %v360
    %v488 = vpack.c.b16 %v363, %v362
    %v489 = vpack.c.b16 %v365, %v364
    %v490 = vpack.c.b16 %v367, %v366
    %v491 = vpack.c.b16 %v369, %v368
    %v492 = vpack.c.b16 %v371, %v370
    %v493 = vpack.c.b16 %v373, %v372
    %v494 = vpack.c.b16 %v375, %v374
    %v495 = vpack.c.b16 %v377, %v376
    %v496 = vpack.c.b16 %v379, %v378
    %v497 = vpack.c.b16 %v381, %v380
    %v498 = vpack.c.b16 %v383, %v382
    %v499 = vpack.c.b16 %v385, %v384
    %v500 = vpack.c.b16 %v387, %v386
    %v501 = vpack.c.b16 %v389, %v388
    %v502 = vpack.c.b16 %v391, %v390
    %v503 = vpack.c.b16 %v393, %v392
    %v504 = vpack.c.b16 %v395, %v394
    %v505 = vpack.c.b16 %v397, %v396
    %v506 = vpack.c.b16 %v399, %v398
    %v507 = vpack.c.b16 %v401, %v400
    %v508 = vpack.c.b16 %v403, %v402
    %v509 = vpack.c.b16 %v405, %v404
    %v510 = vpack.c.b16 %v407, %v406
    %v511 = vpack.c.b16 %v409, %v408
    %v512 = vpack.c.b16 %v411, %v410
    %v513 = vpack.c.b16 %v413, %v412
    %v514 = vpack.c.b16 %v415, %v414
    %v515 = vpack.c.b16 %v417, %v416
    %v516 = vpack.c.b16 %v419, %v418
    %v517 = vpack.c.b16 %v421, %v420
    %v518 = vpack.c.b16 %v423, %v422
    %v519 = vpack.c.b16 %v425, %v424
    %v520 = vpack.c.b16 %v427, %v426
    %v521 = vpack.c.b16 %v429, %v428
    %v522 = vpack.c.b16 %v431, %v430
    %v523 = vpack.c.b16 %v433, %v432
    %v524 = vpack.c.b16 %v435, %v434
    %v525 = vpack.c.b16 %v437, %v436
    %v526 = vpack.c.b16 %v439, %v438
    %v527 = vpack.c.b16 %v441, %v440
    %v528 = vpack.c.b16 %v443, %v442
    %v529 = vpack.c.b16 %v445, %v444
    %v530 = vpack.c.b16 %v447, %v446
    %v531 = vpack.c.b16 %v449, %v448
    %v532 = vpack.c.b16 %v451, %v450
    %v533 = vpack.c.b16 %v453, %v452
    %v534 = vpack.c.b16 %v455, %v454
    %v535 = vpack.c.b16 %v457, %v456
    %v536 = vpack.c.b16 %v459, %v458
    %v537 = vpack.c.b16 %v461, %v460
    %v538 = vpack.c.b16 %v463, %v462
    %v539 = vpack.c.b16 %v465, %v464
    %v540 = vpack.c.b16 %v467, %v466
    %v541 = vpack.c.b16 %v469, %v468
    %v546 = vunpack.c.l.b16 %v178
    %v547 = vunpack.c.l.b16 %v179
    %v548 = vunpack.c.l.b16 %v180
    %v549 = vunpack.c.l.b16 %v181
    %v550 = vpack.c.b16 %v547, %v546
    %v551 = vpack.c.b16 %v549, %v548
    %vm554 = vcmask 261120
    %v556 = vsel %vm554, %v470, 0
    %v559 = vsel %vm554, %v471, 0
    %v562 = vsel %vm554, %v472, 0
    %v565 = vsel %vm554, %v473, 0
    %v568 = vsel %vm554, %v474, 0
    %v571 = vsel %vm554, %v475, 0
    %v574 = vsel %vm554, %v476, 0
    %v577 = vsel %vm554, %v477, 0
    %v580 = vsel %vm554, %v478, 0
    %v583 = vsel %vm554, %v479, 0
    %v586 = vsel %vm554, %v480, 0
    %v589 = vsel %vm554, %v481, 0
    %v592 = vsel %vm554, %v482, 0
    %v595 = vsel %vm554, %v483, 0
    %v598 = vsel %vm554, %v484, 0
    %v601 = vsel %vm554, %v485, 0
    %v604 = vsel %vm554, %v486, 0
    %v607 = vsel %vm554, %v487, 0
    %v610 = vsel %vm554, %v488, 0
    %v613 = vsel %vm554, %v489, 0
    %v616 = vsel %vm554, %v490, 0
    %v619 = vsel %vm554, %v491, 0
    %v622 = vsel %vm554, %v492, 0
    %v625 = vsel %vm554, %v493, 0
    %v628 = vsel %vm554, %v494, 0
    %v631 = vsel %vm554, %v495, 0
    %v634 = vsel %vm554, %v496, 0
    %v637 = vsel %vm554, %v497, 0
    %v640 = vsel %vm554, %v498, 0
    %v643 = vsel %vm554, %v499, 0
    %v646 = vsel %vm554, %v500, 0
    %v649 = vsel %vm554, %v501, 0
    %v652 = vsel %vm554, %v502, 0
    %v655 = vsel %vm554, %v503, 0
    %v658 = vsel %vm554, %v504, 0
    %v661 = vsel %vm554, %v505, 0
    %v664 = vsel %vm554, %v506, 0
    %v667 = vsel %vm554, %v507, 0
    %v670 = vsel %vm554, %v508, 0
    %v673 = vsel %vm554, %v509, 0
    %v676 = vsel %vm554, %v510, 0
    %v679 = vsel %vm554, %v511, 0
    %v682 = vsel %vm554, %v512, 0
    %v685 = vsel %vm554, %v513, 0
    %v688 = vsel %vm554, %v514, 0
    %v691 = vsel %vm554, %v515, 0
    %v694 = vsel %vm554, %v516, 0
    %v697 = vsel %vm554, %v517, 0
    %v700 = vsel %vm554, %v518, 0
    %v703 = vsel %vm554, %v519, 0
    %v706 = vsel %vm554, %v520, 0
    %v709 = vsel %vm554, %v521, 0
    %v712 = vsel %vm554, %v522, 0
    %v715 = vsel %vm554, %v523, 0
    %v718 = vsel %vm554, %v524, 0
    %v721 = vsel %vm554, %v525, 0
    %v724 = vsel %vm554, %v526, 0
    %v727 = vsel %vm554, %v527, 0
    %v730 = vsel %vm554, %v528, 0
    %v733 = vsel %vm554, %v529, 0
    %v736 = vsel %vm554, %v530, 0
    %v739 = vsel %vm554, %v531, 0
    %v742 = vsel %vm554, %v532, 0
    %v745 = vsel %vm554, %v533, 0
    %v748 = vsel %vm554, %v534, 0
    %v751 = vsel %vm554, %v535, 0
    %v754 = vsel %vm554, %v536, 0
    %v757 = vsel %vm554, %v537, 0
    %v760 = vsel %vm554, %v538, 0
    %v763 = vsel %vm554, %v539, 0
    %v766 = vsel %vm554, %v540, 0
    %v769 = vsel %vm554, %v541, 0
    %771 = vmatprep.subr.bf16.mxu0 0
    %772 = vmatpush1.bf16.msra.mxu0 0
    %773 = vmatprep.subr.bf16.mxu0 0
    %774 = vmatpush1.bf16.msra.mxu0 0
    %775 = vmatprep.subr.bf16.mxu0 0
    %776 = vmatpush1.bf16.msra.mxu0 0
    %777 = vmatprep.subr.bf16.mxu0 0
    %778 = vmatpush1.bf16.msra.mxu0 0
    %779 = vmatprep.subr.bf16.mxu0 0
    %780 = vmatpush1.bf16.msra.mxu0 0
    %781 = vmatprep.subr.bf16.mxu0 0
    %782 = vmatpush1.bf16.msra.mxu0 0
    %783 = vmatprep.subr.bf16.mxu0 0
    %784 = vmatpush1.bf16.msra.mxu0 %v551
    %785 = vmatprep.subr.bf16.mxu0 0
    %786 = vmatpush1.bf16.msra.mxu0 %v550
    %787 = vmatprep.subr.bf16.mxu0 0
    %788 = vmatpush2.bf16.msra.mxu0 0
    %789 = vmatprep.subr.bf16.mxu0 0
    %790 = vmatpush2.bf16.msra.mxu0 0
    %791 = vmatprep.subr.bf16.mxu0 0
    %792 = vmatpush2.bf16.msra.mxu0 0
    %793 = vmatprep.subr.bf16.mxu0 0
    %794 = vmatpush2.bf16.msra.mxu0 0
    %795 = vmatprep.subr.bf16.mxu0 0
    %796 = vmatpush2.bf16.msra.mxu0 0
    %797 = vmatprep.subr.bf16.mxu0 0
    %798 = vmatpush2.bf16.msra.mxu0 0
    %799 = vmatprep.subr.bf16.mxu0 0
    %800 = vmatpush2.bf16.msra.mxu0 0
    %801 = vmatprep.subr.bf16.mxu0 0
    %802 = vmatpush2.bf16.msra.mxu0 0
    %803 = vmatprep.mubr.bf16.mxu0 0
    %804 = vmatmul.mubr.bf16.gmra.mxu0 %v556
    %v805 = vpop.f32.mrf.mxu0
    %v806 = vadd.f32 0.0, %v805
    %v807 = vpop.f32.mrf.mxu0
    %v808 = vpop.f32.mrf.mxu0
    %v809 = vadd.f32 0.0, %v808
    %v810 = vpop.f32.mrf.mxu0
    %811 = vmatprep.mubr.bf16.mxu0 0
    %812 = vmatmul.mubr.bf16.gmra.mxu0 %v559
    %v813 = vpop.f32.mrf.mxu0
    %v814 = vadd.f32 0.0, %v813
    %v815 = vpop.f32.mrf.mxu0
    %v816 = vpop.f32.mrf.mxu0
    %v817 = vadd.f32 0.0, %v816
    %v818 = vpop.f32.mrf.mxu0
    %819 = vmatprep.mubr.bf16.mxu0 0
    %820 = vmatmul.mubr.bf16.gmra.mxu0 %v562
    %v821 = vpop.f32.mrf.mxu0
    %v822 = vadd.f32 0.0, %v821
    %v823 = vpop.f32.mrf.mxu0
    %v824 = vpop.f32.mrf.mxu0
    %v825 = vadd.f32 0.0, %v824
    %v826 = vpop.f32.mrf.mxu0
    %827 = vmatprep.mubr.bf16.mxu0 0
    %828 = vmatmul.mubr.bf16.gmra.mxu0 %v565
    %v829 = vpop.f32.mrf.mxu0
    %v830 = vadd.f32 0.0, %v829
    %v831 = vpop.f32.mrf.mxu0
    %v832 = vpop.f32.mrf.mxu0
    %v833 = vadd.f32 0.0, %v832
    %v834 = vpop.f32.mrf.mxu0
    %835 = vmatprep.mubr.bf16.mxu0 0
    %836 = vmatmul.mubr.bf16.gmra.mxu0 %v568
    %v837 = vpop.f32.mrf.mxu0
    %v838 = vadd.f32 0.0, %v837
    %v839 = vpop.f32.mrf.mxu0
    %v840 = vpop.f32.mrf.mxu0
    %v841 = vadd.f32 0.0, %v840
    %v842 = vpop.f32.mrf.mxu0
    %843 = vmatprep.mubr.bf16.mxu0 0
    %844 = vmatmul.mubr.bf16.gmra.mxu0 %v571
    %v845 = vpop.f32.mrf.mxu0
    %v846 = vadd.f32 0.0, %v845
    %v847 = vpop.f32.mrf.mxu0
    %v848 = vpop.f32.mrf.mxu0
    %v849 = vadd.f32 0.0, %v848
    %v850 = vpop.f32.mrf.mxu0
    %851 = vmatprep.mubr.bf16.mxu0 0
    %852 = vmatmul.mubr.bf16.gmra.mxu0 %v574
    %v853 = vpop.f32.mrf.mxu0
    %v854 = vadd.f32 0.0, %v853
    %v855 = vpop.f32.mrf.mxu0
    %v856 = vpop.f32.mrf.mxu0
    %v857 = vadd.f32 0.0, %v856
    %v858 = vpop.f32.mrf.mxu0
    %859 = vmatprep.mubr.bf16.mxu0 0
    %860 = vmatmul.mubr.bf16.gmra.mxu0 %v577
    %v861 = vpop.f32.mrf.mxu0
    %v862 = vadd.f32 0.0, %v861
    %v863 = vpop.f32.mrf.mxu0
    %v864 = vpop.f32.mrf.mxu0
    %v865 = vadd.f32 0.0, %v864
    %v866 = vpop.f32.mrf.mxu0
    %867 = vmatprep.mubr.bf16.mxu0 0
    %868 = vmatmul.mubr.bf16.gmra.mxu0 %v580
    %v869 = vpop.f32.mrf.mxu0
    %v870 = vadd.f32 0.0, %v869
    %v871 = vpop.f32.mrf.mxu0
    %v872 = vpop.f32.mrf.mxu0
    %v873 = vadd.f32 0.0, %v872
    %v874 = vpop.f32.mrf.mxu0
    %875 = vmatprep.mubr.bf16.mxu0 0
    %876 = vmatmul.mubr.bf16.gmra.mxu0 %v583
    %v877 = vpop.f32.mrf.mxu0
    %v878 = vadd.f32 0.0, %v877
    %v879 = vpop.f32.mrf.mxu0
    %v880 = vpop.f32.mrf.mxu0
    %v881 = vadd.f32 0.0, %v880
    %v882 = vpop.f32.mrf.mxu0
    %883 = vmatprep.mubr.bf16.mxu0 0
    %884 = vmatmul.mubr.bf16.gmra.mxu0 %v586
    %v885 = vpop.f32.mrf.mxu0
    %v886 = vadd.f32 0.0, %v885
    %v887 = vpop.f32.mrf.mxu0
    %v888 = vpop.f32.mrf.mxu0
    %v889 = vadd.f32 0.0, %v888
    %v890 = vpop.f32.mrf.mxu0
    %891 = vmatprep.mubr.bf16.mxu0 0
    %892 = vmatmul.mubr.bf16.gmra.mxu0 %v589
    %v893 = vpop.f32.mrf.mxu0
    %v894 = vadd.f32 0.0, %v893
    %v895 = vpop.f32.mrf.mxu0
    %v896 = vpop.f32.mrf.mxu0
    %v897 = vadd.f32 0.0, %v896
    %v898 = vpop.f32.mrf.mxu0
    %899 = vmatprep.mubr.bf16.mxu0 0
    %900 = vmatmul.mubr.bf16.gmra.mxu0 %v592
    %v901 = vpop.f32.mrf.mxu0
    %v902 = vadd.f32 0.0, %v901
    %v903 = vpop.f32.mrf.mxu0
    %v904 = vpop.f32.mrf.mxu0
    %v905 = vadd.f32 0.0, %v904
    %v906 = vpop.f32.mrf.mxu0
    %907 = vmatprep.mubr.bf16.mxu0 0
    %908 = vmatmul.mubr.bf16.gmra.mxu0 %v595
    %v909 = vpop.f32.mrf.mxu0
    %v910 = vadd.f32 0.0, %v909
    %v911 = vpop.f32.mrf.mxu0
    %v912 = vpop.f32.mrf.mxu0
    %v913 = vadd.f32 0.0, %v912
    %v914 = vpop.f32.mrf.mxu0
    %915 = vmatprep.mubr.bf16.mxu0 0
    %916 = vmatmul.mubr.bf16.gmra.mxu0 %v598
    %v917 = vpop.f32.mrf.mxu0
    %v918 = vadd.f32 0.0, %v917
    %v919 = vpop.f32.mrf.mxu0
    %v920 = vpop.f32.mrf.mxu0
    %v921 = vadd.f32 0.0, %v920
    %v922 = vpop.f32.mrf.mxu0
    %923 = vmatprep.mubr.bf16.mxu0 0
    %924 = vmatmul.mubr.bf16.gmra.mxu0 %v601
    %v925 = vpop.f32.mrf.mxu0
    %v926 = vadd.f32 0.0, %v925
    %v927 = vpop.f32.mrf.mxu0
    %v928 = vpop.f32.mrf.mxu0
    %v929 = vadd.f32 0.0, %v928
    %v930 = vpop.f32.mrf.mxu0
    %931 = vmatprep.mubr.bf16.mxu0 0
    %932 = vmatmul.mubr.bf16.gmra.mxu0 %v604
    %v933 = vpop.f32.mrf.mxu0
    %v934 = vadd.f32 0.0, %v933
    %v935 = vpop.f32.mrf.mxu0
    %v936 = vpop.f32.mrf.mxu0
    %v937 = vadd.f32 0.0, %v936
    %v938 = vpop.f32.mrf.mxu0
    %939 = vmatprep.mubr.bf16.mxu0 0
    %940 = vmatmul.mubr.bf16.gmra.mxu0 %v607
    %v941 = vpop.f32.mrf.mxu0
    %v942 = vadd.f32 0.0, %v941
    %v943 = vpop.f32.mrf.mxu0
    %v944 = vpop.f32.mrf.mxu0
    %v945 = vadd.f32 0.0, %v944
    %v946 = vpop.f32.mrf.mxu0
    %947 = vmatprep.mubr.bf16.mxu0 0
    %948 = vmatmul.mubr.bf16.gmra.mxu0 %v610
    %v949 = vpop.f32.mrf.mxu0
    %v950 = vadd.f32 0.0, %v949
    %v951 = vpop.f32.mrf.mxu0
    %v952 = vpop.f32.mrf.mxu0
    %v953 = vadd.f32 0.0, %v952
    %v954 = vpop.f32.mrf.mxu0
    %955 = vmatprep.mubr.bf16.mxu0 0
    %956 = vmatmul.mubr.bf16.gmra.mxu0 %v613
    %v957 = vpop.f32.mrf.mxu0
    %v958 = vadd.f32 0.0, %v957
    %v959 = vpop.f32.mrf.mxu0
    %v960 = vpop.f32.mrf.mxu0
    %v961 = vadd.f32 0.0, %v960
    %v962 = vpop.f32.mrf.mxu0
    %963 = vmatprep.mubr.bf16.mxu0 0
    %964 = vmatmul.mubr.bf16.gmra.mxu0 %v616
    %v965 = vpop.f32.mrf.mxu0
    %v966 = vadd.f32 0.0, %v965
    %v967 = vpop.f32.mrf.mxu0
    %v968 = vpop.f32.mrf.mxu0
    %v969 = vadd.f32 0.0, %v968
    %v970 = vpop.f32.mrf.mxu0
    %971 = vmatprep.mubr.bf16.mxu0 0
    %972 = vmatmul.mubr.bf16.gmra.mxu0 %v619
    %v973 = vpop.f32.mrf.mxu0
    %v974 = vadd.f32 0.0, %v973
    %v975 = vpop.f32.mrf.mxu0
    %v976 = vpop.f32.mrf.mxu0
    %v977 = vadd.f32 0.0, %v976
    %v978 = vpop.f32.mrf.mxu0
    %979 = vmatprep.mubr.bf16.mxu0 0
    %980 = vmatmul.mubr.bf16.gmra.mxu0 %v622
    %v981 = vpop.f32.mrf.mxu0
    %v982 = vadd.f32 0.0, %v981
    %v983 = vpop.f32.mrf.mxu0
    %v984 = vpop.f32.mrf.mxu0
    %v985 = vadd.f32 0.0, %v984
    %v986 = vpop.f32.mrf.mxu0
    %987 = vmatprep.mubr.bf16.mxu0 0
    %988 = vmatmul.mubr.bf16.gmra.mxu0 %v625
    %v989 = vpop.f32.mrf.mxu0
    %v990 = vadd.f32 0.0, %v989
    %v991 = vpop.f32.mrf.mxu0
    %v992 = vpop.f32.mrf.mxu0
    %v993 = vadd.f32 0.0, %v992
    %v994 = vpop.f32.mrf.mxu0
    %995 = vmatprep.mubr.bf16.mxu0 0
    %996 = vmatmul.mubr.bf16.gmra.mxu0 %v628
    %v997 = vpop.f32.mrf.mxu0
    %v998 = vadd.f32 0.0, %v997
    %v999 = vpop.f32.mrf.mxu0
    %v1000 = vpop.f32.mrf.mxu0
    %v1001 = vadd.f32 0.0, %v1000
    %v1002 = vpop.f32.mrf.mxu0
    %1003 = vmatprep.mubr.bf16.mxu0 0
    %1004 = vmatmul.mubr.bf16.gmra.mxu0 %v631
    %v1005 = vpop.f32.mrf.mxu0
    %v1006 = vadd.f32 0.0, %v1005
    %v1007 = vpop.f32.mrf.mxu0
    %v1008 = vpop.f32.mrf.mxu0
    %v1009 = vadd.f32 0.0, %v1008
    %v1010 = vpop.f32.mrf.mxu0
    %1011 = vmatprep.mubr.bf16.mxu0 0
    %1012 = vmatmul.mubr.bf16.gmra.mxu0 %v634
    %v1013 = vpop.f32.mrf.mxu0
    %v1014 = vadd.f32 0.0, %v1013
    %v1015 = vpop.f32.mrf.mxu0
    %v1016 = vpop.f32.mrf.mxu0
    %v1017 = vadd.f32 0.0, %v1016
    %v1018 = vpop.f32.mrf.mxu0
    %1019 = vmatprep.mubr.bf16.mxu0 0
    %1020 = vmatmul.mubr.bf16.gmra.mxu0 %v637
    %v1021 = vpop.f32.mrf.mxu0
    %v1022 = vadd.f32 0.0, %v1021
    %v1023 = vpop.f32.mrf.mxu0
    %v1024 = vpop.f32.mrf.mxu0
    %v1025 = vadd.f32 0.0, %v1024
    %v1026 = vpop.f32.mrf.mxu0
    %1027 = vmatprep.mubr.bf16.mxu0 0
    %1028 = vmatmul.mubr.bf16.gmra.mxu0 %v640
    %v1029 = vpop.f32.mrf.mxu0
    %v1030 = vadd.f32 0.0, %v1029
    %v1031 = vpop.f32.mrf.mxu0
    %v1032 = vpop.f32.mrf.mxu0
    %v1033 = vadd.f32 0.0, %v1032
    %v1034 = vpop.f32.mrf.mxu0
    %1035 = vmatprep.mubr.bf16.mxu0 0
    %1036 = vmatmul.mubr.bf16.gmra.mxu0 %v643
    %v1037 = vpop.f32.mrf.mxu0
    %v1038 = vadd.f32 0.0, %v1037
    %v1039 = vpop.f32.mrf.mxu0
    %v1040 = vpop.f32.mrf.mxu0
    %v1041 = vadd.f32 0.0, %v1040
    %v1042 = vpop.f32.mrf.mxu0
    %1043 = vmatprep.mubr.bf16.mxu0 0
    %1044 = vmatmul.mubr.bf16.gmra.mxu0 %v646
    %v1045 = vpop.f32.mrf.mxu0
    %v1046 = vadd.f32 0.0, %v1045
    %v1047 = vpop.f32.mrf.mxu0
    %v1048 = vpop.f32.mrf.mxu0
    %v1049 = vadd.f32 0.0, %v1048
    %v1050 = vpop.f32.mrf.mxu0
    %1051 = vmatprep.mubr.bf16.mxu0 0
    %1052 = vmatmul.mubr.bf16.gmra.mxu0 %v649
    %v1053 = vpop.f32.mrf.mxu0
    %v1054 = vadd.f32 0.0, %v1053
    %v1055 = vpop.f32.mrf.mxu0
    %v1056 = vpop.f32.mrf.mxu0
    %v1057 = vadd.f32 0.0, %v1056
    %v1058 = vpop.f32.mrf.mxu0
    %1059 = vmatprep.mubr.bf16.mxu0 0
    %1060 = vmatmul.mubr.bf16.gmra.mxu0 %v652
    %v1061 = vpop.f32.mrf.mxu0
    %v1062 = vadd.f32 0.0, %v1061
    %v1063 = vpop.f32.mrf.mxu0
    %v1064 = vpop.f32.mrf.mxu0
    %v1065 = vadd.f32 0.0, %v1064
    %v1066 = vpop.f32.mrf.mxu0
    %1067 = vmatprep.mubr.bf16.mxu0 0
    %1068 = vmatmul.mubr.bf16.gmra.mxu0 %v655
    %v1069 = vpop.f32.mrf.mxu0
    %v1070 = vadd.f32 0.0, %v1069
    %v1071 = vpop.f32.mrf.mxu0
    %v1072 = vpop.f32.mrf.mxu0
    %v1073 = vadd.f32 0.0, %v1072
    %v1074 = vpop.f32.mrf.mxu0
    %1075 = vmatprep.mubr.bf16.mxu0 0
    %1076 = vmatmul.mubr.bf16.gmra.mxu0 %v658
    %v1077 = vpop.f32.mrf.mxu0
    %v1078 = vadd.f32 0.0, %v1077
    %v1079 = vpop.f32.mrf.mxu0
    %v1080 = vpop.f32.mrf.mxu0
    %v1081 = vadd.f32 0.0, %v1080
    %v1082 = vpop.f32.mrf.mxu0
    %1083 = vmatprep.mubr.bf16.mxu0 0
    %1084 = vmatmul.mubr.bf16.gmra.mxu0 %v661
    %v1085 = vpop.f32.mrf.mxu0
    %v1086 = vadd.f32 0.0, %v1085
    %v1087 = vpop.f32.mrf.mxu0
    %v1088 = vpop.f32.mrf.mxu0
    %v1089 = vadd.f32 0.0, %v1088
    %v1090 = vpop.f32.mrf.mxu0
    %1091 = vmatprep.mubr.bf16.mxu0 0
    %1092 = vmatmul.mubr.bf16.gmra.mxu0 %v664
    %v1093 = vpop.f32.mrf.mxu0
    %v1094 = vadd.f32 0.0, %v1093
    %v1095 = vpop.f32.mrf.mxu0
    %v1096 = vpop.f32.mrf.mxu0
    %v1097 = vadd.f32 0.0, %v1096
    %v1098 = vpop.f32.mrf.mxu0
    %1099 = vmatprep.mubr.bf16.mxu0 0
    %1100 = vmatmul.mubr.bf16.gmra.mxu0 %v667
    %v1101 = vpop.f32.mrf.mxu0
    %v1102 = vadd.f32 0.0, %v1101
    %v1103 = vpop.f32.mrf.mxu0
    %v1104 = vpop.f32.mrf.mxu0
    %v1105 = vadd.f32 0.0, %v1104
    %v1106 = vpop.f32.mrf.mxu0
    %1107 = vmatprep.mubr.bf16.mxu0 0
    %1108 = vmatmul.mubr.bf16.gmra.mxu0 %v670
    %v1109 = vpop.f32.mrf.mxu0
    %v1110 = vadd.f32 0.0, %v1109
    %v1111 = vpop.f32.mrf.mxu0
    %v1112 = vpop.f32.mrf.mxu0
    %v1113 = vadd.f32 0.0, %v1112
    %v1114 = vpop.f32.mrf.mxu0
    %1115 = vmatprep.mubr.bf16.mxu0 0
    %1116 = vmatmul.mubr.bf16.gmra.mxu0 %v673
    %v1117 = vpop.f32.mrf.mxu0
    %v1118 = vadd.f32 0.0, %v1117
    %v1119 = vpop.f32.mrf.mxu0
    %v1120 = vpop.f32.mrf.mxu0
    %v1121 = vadd.f32 0.0, %v1120
    %v1122 = vpop.f32.mrf.mxu0
    %1123 = vmatprep.mubr.bf16.mxu0 0
    %1124 = vmatmul.mubr.bf16.gmra.mxu0 %v676
    %v1125 = vpop.f32.mrf.mxu0
    %v1126 = vadd.f32 0.0, %v1125
    %v1127 = vpop.f32.mrf.mxu0
    %v1128 = vpop.f32.mrf.mxu0
    %v1129 = vadd.f32 0.0, %v1128
    %v1130 = vpop.f32.mrf.mxu0
    %1131 = vmatprep.mubr.bf16.mxu0 0
    %1132 = vmatmul.mubr.bf16.gmra.mxu0 %v679
    %v1133 = vpop.f32.mrf.mxu0
    %v1134 = vadd.f32 0.0, %v1133
    %v1135 = vpop.f32.mrf.mxu0
    %v1136 = vpop.f32.mrf.mxu0
    %v1137 = vadd.f32 0.0, %v1136
    %v1138 = vpop.f32.mrf.mxu0
    %1139 = vmatprep.mubr.bf16.mxu0 0
    %1140 = vmatmul.mubr.bf16.gmra.mxu0 %v682
    %v1141 = vpop.f32.mrf.mxu0
    %v1142 = vadd.f32 0.0, %v1141
    %v1143 = vpop.f32.mrf.mxu0
    %v1144 = vpop.f32.mrf.mxu0
    %v1145 = vadd.f32 0.0, %v1144
    %v1146 = vpop.f32.mrf.mxu0
    %1147 = vmatprep.mubr.bf16.mxu0 0
    %1148 = vmatmul.mubr.bf16.gmra.mxu0 %v685
    %v1149 = vpop.f32.mrf.mxu0
    %v1150 = vadd.f32 0.0, %v1149
    %v1151 = vpop.f32.mrf.mxu0
    %v1152 = vpop.f32.mrf.mxu0
    %v1153 = vadd.f32 0.0, %v1152
    %v1154 = vpop.f32.mrf.mxu0
    %1155 = vmatprep.mubr.bf16.mxu0 0
    %1156 = vmatmul.mubr.bf16.gmra.mxu0 %v688
    %v1157 = vpop.f32.mrf.mxu0
    %v1158 = vadd.f32 0.0, %v1157
    %v1159 = vpop.f32.mrf.mxu0
    %v1160 = vpop.f32.mrf.mxu0
    %v1161 = vadd.f32 0.0, %v1160
    %v1162 = vpop.f32.mrf.mxu0
    %1163 = vmatprep.mubr.bf16.mxu0 0
    %1164 = vmatmul.mubr.bf16.gmra.mxu0 %v691
    %v1165 = vpop.f32.mrf.mxu0
    %v1166 = vadd.f32 0.0, %v1165
    %v1167 = vpop.f32.mrf.mxu0
    %v1168 = vpop.f32.mrf.mxu0
    %v1169 = vadd.f32 0.0, %v1168
    %v1170 = vpop.f32.mrf.mxu0
    %1171 = vmatprep.mubr.bf16.mxu0 0
    %1172 = vmatmul.mubr.bf16.gmra.mxu0 %v694
    %v1173 = vpop.f32.mrf.mxu0
    %v1174 = vadd.f32 0.0, %v1173
    %v1175 = vpop.f32.mrf.mxu0
    %v1176 = vpop.f32.mrf.mxu0
    %v1177 = vadd.f32 0.0, %v1176
    %v1178 = vpop.f32.mrf.mxu0
    %1179 = vmatprep.mubr.bf16.mxu0 0
    %1180 = vmatmul.mubr.bf16.gmra.mxu0 %v697
    %v1181 = vpop.f32.mrf.mxu0
    %v1182 = vadd.f32 0.0, %v1181
    %v1183 = vpop.f32.mrf.mxu0
    %v1184 = vpop.f32.mrf.mxu0
    %v1185 = vadd.f32 0.0, %v1184
    %v1186 = vpop.f32.mrf.mxu0
    %1187 = vmatprep.mubr.bf16.mxu0 0
    %1188 = vmatmul.mubr.bf16.gmra.mxu0 %v700
    %v1189 = vpop.f32.mrf.mxu0
    %v1190 = vadd.f32 0.0, %v1189
    %v1191 = vpop.f32.mrf.mxu0
    %v1192 = vpop.f32.mrf.mxu0
    %v1193 = vadd.f32 0.0, %v1192
    %v1194 = vpop.f32.mrf.mxu0
    %1195 = vmatprep.mubr.bf16.mxu0 0
    %1196 = vmatmul.mubr.bf16.gmra.mxu0 %v703
    %v1197 = vpop.f32.mrf.mxu0
    %v1198 = vadd.f32 0.0, %v1197
    %v1199 = vpop.f32.mrf.mxu0
    %v1200 = vpop.f32.mrf.mxu0
    %v1201 = vadd.f32 0.0, %v1200
    %v1202 = vpop.f32.mrf.mxu0
    %1203 = vmatprep.mubr.bf16.mxu0 0
    %1204 = vmatmul.mubr.bf16.gmra.mxu0 %v706
    %v1205 = vpop.f32.mrf.mxu0
    %v1206 = vadd.f32 0.0, %v1205
    %v1207 = vpop.f32.mrf.mxu0
    %v1208 = vpop.f32.mrf.mxu0
    %v1209 = vadd.f32 0.0, %v1208
    %v1210 = vpop.f32.mrf.mxu0
    %1211 = vmatprep.mubr.bf16.mxu0 0
    %1212 = vmatmul.mubr.bf16.gmra.mxu0 %v709
    %v1213 = vpop.f32.mrf.mxu0
    %v1214 = vadd.f32 0.0, %v1213
    %v1215 = vpop.f32.mrf.mxu0
    %v1216 = vpop.f32.mrf.mxu0
    %v1217 = vadd.f32 0.0, %v1216
    %v1218 = vpop.f32.mrf.mxu0
    %1219 = vmatprep.mubr.bf16.mxu0 0
    %1220 = vmatmul.mubr.bf16.gmra.mxu0 %v712
    %v1221 = vpop.f32.mrf.mxu0
    %v1222 = vadd.f32 0.0, %v1221
    %v1223 = vpop.f32.mrf.mxu0
    %v1224 = vpop.f32.mrf.mxu0
    %v1225 = vadd.f32 0.0, %v1224
    %v1226 = vpop.f32.mrf.mxu0
    %1227 = vmatprep.mubr.bf16.mxu0 0
    %1228 = vmatmul.mubr.bf16.gmra.mxu0 %v715
    %v1229 = vpop.f32.mrf.mxu0
    %v1230 = vadd.f32 0.0, %v1229
    %v1231 = vpop.f32.mrf.mxu0
    %v1232 = vpop.f32.mrf.mxu0
    %v1233 = vadd.f32 0.0, %v1232
    %v1234 = vpop.f32.mrf.mxu0
    %1235 = vmatprep.mubr.bf16.mxu0 0
    %1236 = vmatmul.mubr.bf16.gmra.mxu0 %v718
    %v1237 = vpop.f32.mrf.mxu0
    %v1238 = vadd.f32 0.0, %v1237
    %v1239 = vpop.f32.mrf.mxu0
    %v1240 = vpop.f32.mrf.mxu0
    %v1241 = vadd.f32 0.0, %v1240
    %v1242 = vpop.f32.mrf.mxu0
    %1243 = vmatprep.mubr.bf16.mxu0 0
    %1244 = vmatmul.mubr.bf16.gmra.mxu0 %v721
    %v1245 = vpop.f32.mrf.mxu0
    %v1246 = vadd.f32 0.0, %v1245
    %v1247 = vpop.f32.mrf.mxu0
    %v1248 = vpop.f32.mrf.mxu0
    %v1249 = vadd.f32 0.0, %v1248
    %v1250 = vpop.f32.mrf.mxu0
    %1251 = vmatprep.mubr.bf16.mxu0 0
    %1252 = vmatmul.mubr.bf16.gmra.mxu0 %v724
    %v1253 = vpop.f32.mrf.mxu0
    %v1254 = vadd.f32 0.0, %v1253
    %v1255 = vpop.f32.mrf.mxu0
    %v1256 = vpop.f32.mrf.mxu0
    %v1257 = vadd.f32 0.0, %v1256
    %v1258 = vpop.f32.mrf.mxu0
    %1259 = vmatprep.mubr.bf16.mxu0 0
    %1260 = vmatmul.mubr.bf16.gmra.mxu0 %v727
    %v1261 = vpop.f32.mrf.mxu0
    %v1262 = vadd.f32 0.0, %v1261
    %v1263 = vpop.f32.mrf.mxu0
    %v1264 = vpop.f32.mrf.mxu0
    %v1265 = vadd.f32 0.0, %v1264
    %v1266 = vpop.f32.mrf.mxu0
    %1267 = vmatprep.mubr.bf16.mxu0 0
    %1268 = vmatmul.mubr.bf16.gmra.mxu0 %v730
    %v1269 = vpop.f32.mrf.mxu0
    %v1270 = vadd.f32 0.0, %v1269
    %v1271 = vpop.f32.mrf.mxu0
    %v1272 = vpop.f32.mrf.mxu0
    %v1273 = vadd.f32 0.0, %v1272
    %v1274 = vpop.f32.mrf.mxu0
    %1275 = vmatprep.mubr.bf16.mxu0 0
    %1276 = vmatmul.mubr.bf16.gmra.mxu0 %v733
    %v1277 = vpop.f32.mrf.mxu0
    %v1278 = vadd.f32 0.0, %v1277
    %v1279 = vpop.f32.mrf.mxu0
    %v1280 = vpop.f32.mrf.mxu0
    %v1281 = vadd.f32 0.0, %v1280
    %v1282 = vpop.f32.mrf.mxu0
    %1283 = vmatprep.mubr.bf16.mxu0 0
    %1284 = vmatmul.mubr.bf16.gmra.mxu0 %v736
    %v1285 = vpop.f32.mrf.mxu0
    %v1286 = vadd.f32 0.0, %v1285
    %v1287 = vpop.f32.mrf.mxu0
    %v1288 = vpop.f32.mrf.mxu0
    %v1289 = vadd.f32 0.0, %v1288
    %v1290 = vpop.f32.mrf.mxu0
    %1291 = vmatprep.mubr.bf16.mxu0 0
    %1292 = vmatmul.mubr.bf16.gmra.mxu0 %v739
    %v1293 = vpop.f32.mrf.mxu0
    %v1294 = vadd.f32 0.0, %v1293
    %v1295 = vpop.f32.mrf.mxu0
    %v1296 = vpop.f32.mrf.mxu0
    %v1297 = vadd.f32 0.0, %v1296
    %v1298 = vpop.f32.mrf.mxu0
    %1299 = vmatprep.mubr.bf16.mxu0 0
    %1300 = vmatmul.mubr.bf16.gmra.mxu0 %v742
    %v1301 = vpop.f32.mrf.mxu0
    %v1302 = vadd.f32 0.0, %v1301
    %v1303 = vpop.f32.mrf.mxu0
    %v1304 = vpop.f32.mrf.mxu0
    %v1305 = vadd.f32 0.0, %v1304
    %v1306 = vpop.f32.mrf.mxu0
    %1307 = vmatprep.mubr.bf16.mxu0 0
    %1308 = vmatmul.mubr.bf16.gmra.mxu0 %v745
    %v1309 = vpop.f32.mrf.mxu0
    %v1310 = vadd.f32 0.0, %v1309
    %v1311 = vpop.f32.mrf.mxu0
    %v1312 = vpop.f32.mrf.mxu0
    %v1313 = vadd.f32 0.0, %v1312
    %v1314 = vpop.f32.mrf.mxu0
    %1315 = vmatprep.mubr.bf16.mxu0 0
    %1316 = vmatmul.mubr.bf16.gmra.mxu0 %v748
    %v1317 = vpop.f32.mrf.mxu0
    %v1318 = vadd.f32 0.0, %v1317
    %v1319 = vpop.f32.mrf.mxu0
    %v1320 = vpop.f32.mrf.mxu0
    %v1321 = vadd.f32 0.0, %v1320
    %v1322 = vpop.f32.mrf.mxu0
    %1323 = vmatprep.mubr.bf16.mxu0 0
    %1324 = vmatmul.mubr.bf16.gmra.mxu0 %v751
    %v1325 = vpop.f32.mrf.mxu0
    %v1326 = vadd.f32 0.0, %v1325
    %v1327 = vpop.f32.mrf.mxu0
    %v1328 = vpop.f32.mrf.mxu0
    %v1329 = vadd.f32 0.0, %v1328
    %v1330 = vpop.f32.mrf.mxu0
    %1331 = vmatprep.mubr.bf16.mxu0 0
    %1332 = vmatmul.mubr.bf16.gmra.mxu0 %v754
    %v1333 = vpop.f32.mrf.mxu0
    %v1334 = vadd.f32 0.0, %v1333
    %v1335 = vpop.f32.mrf.mxu0
    %v1336 = vpop.f32.mrf.mxu0
    %v1337 = vadd.f32 0.0, %v1336
    %v1338 = vpop.f32.mrf.mxu0
    %1339 = vmatprep.mubr.bf16.mxu0 0
    %1340 = vmatmul.mubr.bf16.gmra.mxu0 %v757
    %v1341 = vpop.f32.mrf.mxu0
    %v1342 = vadd.f32 0.0, %v1341
    %v1343 = vpop.f32.mrf.mxu0
    %v1344 = vpop.f32.mrf.mxu0
    %v1345 = vadd.f32 0.0, %v1344
    %v1346 = vpop.f32.mrf.mxu0
    %1347 = vmatprep.mubr.bf16.mxu0 0
    %1348 = vmatmul.mubr.bf16.gmra.mxu0 %v760
    %v1349 = vpop.f32.mrf.mxu0
    %v1350 = vadd.f32 0.0, %v1349
    %v1351 = vpop.f32.mrf.mxu0
    %v1352 = vpop.f32.mrf.mxu0
    %v1353 = vadd.f32 0.0, %v1352
    %v1354 = vpop.f32.mrf.mxu0
    %1355 = vmatprep.mubr.bf16.mxu0 0
    %1356 = vmatmul.mubr.bf16.gmra.mxu0 %v763
    %v1357 = vpop.f32.mrf.mxu0
    %v1358 = vadd.f32 0.0, %v1357
    %v1359 = vpop.f32.mrf.mxu0
    %v1360 = vpop.f32.mrf.mxu0
    %v1361 = vadd.f32 0.0, %v1360
    %v1362 = vpop.f32.mrf.mxu0
    %1363 = vmatprep.mubr.bf16.mxu0 0
    %1364 = vmatmul.mubr.bf16.gmra.mxu0 %v766
    %v1365 = vpop.f32.mrf.mxu0
    %v1366 = vadd.f32 0.0, %v1365
    %v1367 = vpop.f32.mrf.mxu0
    %v1368 = vpop.f32.mrf.mxu0
    %v1369 = vadd.f32 0.0, %v1368
    %v1370 = vpop.f32.mrf.mxu0
    %1371 = vmatprep.mubr.bf16.mxu0 0
    %1372 = vmatmul.mubr.bf16.gmra.mxu0 %v769
    %v1373 = vpop.f32.mrf.mxu0
    %v1374 = vadd.f32 0.0, %v1373
    %v1375 = vpop.f32.mrf.mxu0
    %v1376 = vpop.f32.mrf.mxu0
    %v1377 = vadd.f32 0.0, %v1376
    %v1378 = vpop.f32.mrf.mxu0
    %1379 = vdwg.mxu0
    %v1380 = vmax.f32 %v806, %v841
    %v1381 = vmax.f32 %v809, %v846
    %v1382 = vmax.f32 %v814, %v849
    %v1383 = vmax.f32 %v817, %v854
    %v1384 = vmax.f32 %v822, %v857
    %v1385 = vmax.f32 %v825, %v862
    %v1386 = vmax.f32 %v830, %v865
    %v1387 = vmax.f32 %v833, %v870
    %v1388 = vmax.f32 %v838, %v873
    %v1389 = vmax.f32 %v950, %v985
    %v1390 = vmax.f32 %v953, %v990
    %v1391 = vmax.f32 %v958, %v993
    %v1392 = vmax.f32 %v961, %v998
    %v1393 = vmax.f32 %v966, %v1001
    %v1394 = vmax.f32 %v969, %v1006
    %v1395 = vmax.f32 %v974, %v1009
    %v1396 = vmax.f32 %v977, %v1014
    %v1397 = vmax.f32 %v982, %v1017
    %v1398 = vmax.f32 %v1380, %v1389
    %v1399 = vmax.f32 %v1381, %v1390
    %v1400 = vmax.f32 %v1382, %v1391
    %v1401 = vmax.f32 %v1383, %v1392
    %v1402 = vmax.f32 %v1384, %v1393
    %v1403 = vmax.f32 %v1385, %v1394
    %v1404 = vmax.f32 %v1386, %v1395
    %v1405 = vmax.f32 %v1387, %v1396
    %v1406 = vmax.f32 %v1388, %v1397
    %v1407 = vld [vmem:[%s2] sm:$0x1]
    %v1409 = vlaneseq
    %v1410 = vshrl.u32 %v1409, 7
    %v1411 = vsub.s32 0, %v1410
    %v1412 = vrot.slane %v1407, %v1411
    %v1414 = vadd.f32 %v1398, %v1412
    %v1415 = vadd.f32 %v1399, %v1412
    %v1416 = vadd.f32 %v1400, %v1412
    %v1417 = vadd.f32 %v1401, %v1412
    %v1418 = vadd.f32 %v1402, %v1412
    %v1419 = vadd.f32 %v1403, %v1412
    %v1420 = vadd.f32 %v1404, %v1412
    %v1421 = vadd.f32 %v1405, %v1412
    %v1422 = vadd.f32 %v1406, %v1412
    %v1423 = vmax.f32 %v1414, 0.0
    %v1424 = vmax.f32 %v1415, 0.0
    %v1425 = vmax.f32 %v1416, 0.0
    %v1426 = vmax.f32 %v1417, 0.0
    %v1427 = vmax.f32 %v1418, 0.0
    %v1428 = vmax.f32 %v1419, 0.0
    %v1429 = vmax.f32 %v1420, 0.0
    %v1430 = vmax.f32 %v1421, 0.0
    %v1431 = vmax.f32 %v1422, 0.0
    %v1432 = vmax.f32 %v878, %v913
    %v1433 = vmax.f32 %v881, %v918
    %v1434 = vmax.f32 %v886, %v921
    %v1435 = vmax.f32 %v889, %v926
    %v1436 = vmax.f32 %v894, %v929
    %v1437 = vmax.f32 %v897, %v934
    %v1438 = vmax.f32 %v902, %v937
    %v1439 = vmax.f32 %v905, %v942
    %v1440 = vmax.f32 %v910, %v945
    %v1441 = vmax.f32 %v1022, %v1057
    %v1442 = vmax.f32 %v1025, %v1062
    %v1443 = vmax.f32 %v1030, %v1065
    %v1444 = vmax.f32 %v1033, %v1070
    %v1445 = vmax.f32 %v1038, %v1073
    %v1446 = vmax.f32 %v1041, %v1078
    %v1447 = vmax.f32 %v1046, %v1081
    %v1448 = vmax.f32 %v1049, %v1086
    %v1449 = vmax.f32 %v1054, %v1089
    %v1450 = vmax.f32 %v1432, %v1441
    %v1451 = vmax.f32 %v1433, %v1442
    %v1452 = vmax.f32 %v1434, %v1443
    %v1453 = vmax.f32 %v1435, %v1444
    %v1454 = vmax.f32 %v1436, %v1445
    %v1455 = vmax.f32 %v1437, %v1446
    %v1456 = vmax.f32 %v1438, %v1447
    %v1457 = vmax.f32 %v1439, %v1448
    %v1458 = vmax.f32 %v1440, %v1449
    %v1459 = vadd.f32 %v1450, %v1412
    %v1460 = vadd.f32 %v1451, %v1412
    %v1461 = vadd.f32 %v1452, %v1412
    %v1462 = vadd.f32 %v1453, %v1412
    %v1463 = vadd.f32 %v1454, %v1412
    %v1464 = vadd.f32 %v1455, %v1412
    %v1465 = vadd.f32 %v1456, %v1412
    %v1466 = vadd.f32 %v1457, %v1412
    %v1467 = vadd.f32 %v1458, %v1412
    %v1468 = vmax.f32 %v1459, 0.0
    %v1469 = vmax.f32 %v1460, 0.0
    %v1470 = vmax.f32 %v1461, 0.0
    %v1471 = vmax.f32 %v1462, 0.0
    %v1472 = vmax.f32 %v1463, 0.0
    %v1473 = vmax.f32 %v1464, 0.0
    %v1474 = vmax.f32 %v1465, 0.0
    %v1475 = vmax.f32 %v1466, 0.0
    %v1476 = vmax.f32 %v1467, 0.0
    %v1477 = vmax.f32 %v1094, %v1129
    %v1478 = vmax.f32 %v1097, %v1134
    %v1479 = vmax.f32 %v1102, %v1137
    %v1480 = vmax.f32 %v1105, %v1142
    %v1481 = vmax.f32 %v1110, %v1145
    %v1482 = vmax.f32 %v1113, %v1150
    %v1483 = vmax.f32 %v1118, %v1153
    %v1484 = vmax.f32 %v1121, %v1158
    %v1485 = vmax.f32 %v1126, %v1161
    %v1486 = vmax.f32 %v1238, %v1273
    %v1487 = vmax.f32 %v1241, %v1278
    %v1488 = vmax.f32 %v1246, %v1281
    %v1489 = vmax.f32 %v1249, %v1286
    %v1490 = vmax.f32 %v1254, %v1289
    %v1491 = vmax.f32 %v1257, %v1294
    %v1492 = vmax.f32 %v1262, %v1297
    %v1493 = vmax.f32 %v1265, %v1302
    %v1494 = vmax.f32 %v1270, %v1305
    %v1495 = vmax.f32 %v1477, %v1486
    %v1496 = vmax.f32 %v1478, %v1487
    %v1497 = vmax.f32 %v1479, %v1488
    %v1498 = vmax.f32 %v1480, %v1489
    %v1499 = vmax.f32 %v1481, %v1490
    %v1500 = vmax.f32 %v1482, %v1491
    %v1501 = vmax.f32 %v1483, %v1492
    %v1502 = vmax.f32 %v1484, %v1493
    %v1503 = vmax.f32 %v1485, %v1494
    %v1504 = vadd.f32 %v1495, %v1412
    %v1505 = vadd.f32 %v1496, %v1412
    %v1506 = vadd.f32 %v1497, %v1412
    %v1507 = vadd.f32 %v1498, %v1412
    %v1508 = vadd.f32 %v1499, %v1412
    %v1509 = vadd.f32 %v1500, %v1412
    %v1510 = vadd.f32 %v1501, %v1412
    %v1511 = vadd.f32 %v1502, %v1412
    %v1512 = vadd.f32 %v1503, %v1412
    %v1513 = vmax.f32 %v1504, 0.0
    %v1514 = vmax.f32 %v1505, 0.0
    %v1515 = vmax.f32 %v1506, 0.0
    %v1516 = vmax.f32 %v1507, 0.0
    %v1517 = vmax.f32 %v1508, 0.0
    %v1518 = vmax.f32 %v1509, 0.0
    %v1519 = vmax.f32 %v1510, 0.0
    %v1520 = vmax.f32 %v1511, 0.0
    %v1521 = vmax.f32 %v1512, 0.0
    %v1522 = vmax.f32 %v1166, %v1201
    %v1523 = vmax.f32 %v1169, %v1206
    %v1524 = vmax.f32 %v1174, %v1209
    %v1525 = vmax.f32 %v1177, %v1214
    %v1526 = vmax.f32 %v1182, %v1217
    %v1527 = vmax.f32 %v1185, %v1222
    %v1528 = vmax.f32 %v1190, %v1225
    %v1529 = vmax.f32 %v1193, %v1230
    %v1530 = vmax.f32 %v1198, %v1233
    %v1531 = vmax.f32 %v1310, %v1345
    %v1532 = vmax.f32 %v1313, %v1350
    %v1533 = vmax.f32 %v1318, %v1353
    %v1534 = vmax.f32 %v1321, %v1358
    %v1535 = vmax.f32 %v1326, %v1361
    %v1536 = vmax.f32 %v1329, %v1366
    %v1537 = vmax.f32 %v1334, %v1369
    %v1538 = vmax.f32 %v1337, %v1374
    %v1539 = vmax.f32 %v1342, %v1377
    %v1540 = vmax.f32 %v1522, %v1531
    %v1541 = vmax.f32 %v1523, %v1532
    %v1542 = vmax.f32 %v1524, %v1533
    %v1543 = vmax.f32 %v1525, %v1534
    %v1544 = vmax.f32 %v1526, %v1535
    %v1545 = vmax.f32 %v1527, %v1536
    %v1546 = vmax.f32 %v1528, %v1537
    %v1547 = vmax.f32 %v1529, %v1538
    %v1548 = vmax.f32 %v1530, %v1539
    %v1549 = vadd.f32 %v1540, %v1412
    %v1550 = vadd.f32 %v1541, %v1412
    %v1551 = vadd.f32 %v1542, %v1412
    %v1552 = vadd.f32 %v1543, %v1412
    %v1553 = vadd.f32 %v1544, %v1412
    %v1554 = vadd.f32 %v1545, %v1412
    %v1555 = vadd.f32 %v1546, %v1412
    %v1556 = vadd.f32 %v1547, %v1412
    %v1557 = vadd.f32 %v1548, %v1412
    %v1558 = vmax.f32 %v1549, 0.0
    %v1559 = vmax.f32 %v1550, 0.0
    %v1560 = vmax.f32 %v1551, 0.0
    %v1561 = vmax.f32 %v1552, 0.0
    %v1562 = vmax.f32 %v1553, 0.0
    %v1563 = vmax.f32 %v1554, 0.0
    %v1564 = vmax.f32 %v1555, 0.0
    %v1565 = vmax.f32 %v1556, 0.0
    %v1566 = vmax.f32 %v1557, 0.0
    %vm1569 = vcmask 1043456
    %v1570 = vrot.slane %v1424, 4
    %v1571 = vrot.slane %v1425, 4
    %v1572 = vsel %vm1569, %v1570, %v1571
    %v1576 = vrot.slane %v1427, 4
    %v1577 = vrot.slane %v1428, 4
    %v1578 = vsel %vm1569, %v1576, %v1577
    %vm1581 = vcmask 1045504
    %v1582 = vrot.slane %v1423, 2
    %v1583 = vrot.slane %v1424, 2
    %v1584 = vsel %vm1581, %v1582, %v1583
    %vm1585 = vcmask 1041408
    %v1586 = vrot.slane %v1424, 6
    %v1587 = vrot.slane %v1425, 6
    %v1588 = vsel %vm1585, %v1586, %v1587
    %v1590 = vrot.slane %v1426, 2
    %v1591 = vrot.slane %v1427, 2
    %v1592 = vsel %vm1581, %v1590, %v1591
    %v1593 = vrot.slane %v1427, 6
    %v1594 = vrot.slane %v1428, 6
    %v1595 = vsel %vm1585, %v1593, %v1594
    %v1596 = vrot.slane %v1423, 4
    %v1597 = vsel %vm1569, %v1596, %v1570
    %v1598 = vrot.slane %v1426, 4
    %v1599 = vsel %vm1569, %v1598, %v1576
    %v1602 = vrot.slane %v1429, 2
    %v1603 = vrot.slane %v1430, 2
    %v1604 = vsel %vm1581, %v1602, %v1603
    %v1605 = vrot.slane %v1429, 4
    %v1606 = vrot.slane %v1430, 4
    %v1607 = vsel %vm1569, %v1605, %v1606
    %v1609 = vrot.slane %v1431, 4
    %v1610 = vsel %vm1569, %v1606, %v1609
    %v1614 = vrot.slane %v1430, 6
    %v1615 = vrot.slane %v1431, 6
    %v1616 = vsel %vm1585, %v1614, %v1615
    %v1620 = vrot.slane %v1469, 4
    %v1621 = vrot.slane %v1470, 4
    %v1622 = vsel %vm1569, %v1620, %v1621
    %v1626 = vrot.slane %v1472, 4
    %v1627 = vrot.slane %v1473, 4
    %v1628 = vsel %vm1569, %v1626, %v1627
    %v1631 = vrot.slane %v1468, 2
    %v1632 = vrot.slane %v1469, 2
    %v1633 = vsel %vm1581, %v1631, %v1632
    %v1634 = vrot.slane %v1469, 6
    %v1635 = vrot.slane %v1470, 6
    %v1636 = vsel %vm1585, %v1634, %v1635
    %v1638 = vrot.slane %v1471, 2
    %v1639 = vrot.slane %v1472, 2
    %v1640 = vsel %vm1581, %v1638, %v1639
    %v1641 = vrot.slane %v1472, 6
    %v1642 = vrot.slane %v1473, 6
    %v1643 = vsel %vm1585, %v1641, %v1642
    %v1644 = vrot.slane %v1468, 4
    %v1645 = vsel %vm1569, %v1644, %v1620
    %v1646 = vrot.slane %v1471, 4
    %v1647 = vsel %vm1569, %v1646, %v1626
    %v1650 = vrot.slane %v1474, 2
    %v1651 = vrot.slane %v1475, 2
    %v1652 = vsel %vm1581, %v1650, %v1651
    %v1653 = vrot.slane %v1474, 4
    %v1654 = vrot.slane %v1475, 4
    %v1655 = vsel %vm1569, %v1653, %v1654
    %v1657 = vrot.slane %v1476, 4
    %v1658 = vsel %vm1569, %v1654, %v1657
    %v1660 = vrot.slane %v1475, 6
    %v1661 = vrot.slane %v1476, 6
    %v1662 = vsel %vm1585, %v1660, %v1661
    %v1665 = vrot.slane %v1514, 4
    %v1666 = vrot.slane %v1515, 4
    %v1667 = vsel %vm1569, %v1665, %v1666
    %v1671 = vrot.slane %v1517, 4
    %v1672 = vrot.slane %v1518, 4
    %v1673 = vsel %vm1569, %v1671, %v1672
    %v1676 = vrot.slane %v1513, 2
    %v1677 = vrot.slane %v1514, 2
    %v1678 = vsel %vm1581, %v1676, %v1677
    %v1679 = vrot.slane %v1514, 6
    %v1680 = vrot.slane %v1515, 6
    %v1681 = vsel %vm1585, %v1679, %v1680
    %v1683 = vrot.slane %v1516, 2
    %v1684 = vrot.slane %v1517, 2
    %v1685 = vsel %vm1581, %v1683, %v1684
    %v1686 = vrot.slane %v1517, 6
    %v1687 = vrot.slane %v1518, 6
    %v1688 = vsel %vm1585, %v1686, %v1687
    %v1689 = vrot.slane %v1513, 4
    %v1690 = vsel %vm1569, %v1689, %v1665
    %v1691 = vrot.slane %v1516, 4
    %v1692 = vsel %vm1569, %v1691, %v1671
    %v1698 = vrot.slane %v1519, 2
    %v1699 = vrot.slane %v1520, 2
    %v1700 = vsel %vm1581, %v1698, %v1699
    %v1702 = vrot.slane %v1519, 4
    %v1703 = vrot.slane %v1520, 4
    %v1704 = vsel %vm1569, %v1702, %v1703
    %v1706 = vrot.slane %v1521, 4
    %v1707 = vsel %vm1569, %v1703, %v1706
    %v1708 = vrot.slane %v1520, 6
    %v1709 = vrot.slane %v1521, 6
    %v1710 = vsel %vm1585, %v1708, %v1709
    %v1713 = vrot.slane %v1559, 4
    %v1714 = vrot.slane %v1560, 4
    %v1715 = vsel %vm1569, %v1713, %v1714
    %v1719 = vrot.slane %v1562, 4
    %v1720 = vrot.slane %v1563, 4
    %v1721 = vsel %vm1569, %v1719, %v1720
    %v1724 = vrot.slane %v1558, 2
    %v1725 = vrot.slane %v1559, 2
    %v1726 = vsel %vm1581, %v1724, %v1725
    %v1727 = vrot.slane %v1559, 6
    %v1728 = vrot.slane %v1560, 6
    %v1729 = vsel %vm1585, %v1727, %v1728
    %v1731 = vrot.slane %v1561, 2
    %v1732 = vrot.slane %v1562, 2
    %v1733 = vsel %vm1581, %v1731, %v1732
    %v1734 = vrot.slane %v1562, 6
    %v1735 = vrot.slane %v1563, 6
    %v1736 = vsel %vm1585, %v1734, %v1735
    %v1737 = vrot.slane %v1558, 4
    %v1738 = vsel %vm1569, %v1737, %v1713
    %v1739 = vrot.slane %v1561, 4
    %v1740 = vsel %vm1569, %v1739, %v1719
    %v1743 = vrot.slane %v1564, 2
    %v1744 = vrot.slane %v1565, 2
    %v1745 = vsel %vm1581, %v1743, %v1744
    %v1746 = vrot.slane %v1564, 4
    %v1747 = vrot.slane %v1565, 4
    %v1748 = vsel %vm1569, %v1746, %v1747
    %v1750 = vrot.slane %v1566, 4
    %v1751 = vsel %vm1569, %v1747, %v1750
    %v1752 = vrot.slane %v1565, 6
    %v1753 = vrot.slane %v1566, 6
    %v1754 = vsel %vm1585, %v1752, %v1753
    %1755 = vrot.lane.b32.xlu0 %v1468, 10
    %v1756 = vpop.permute.xlu0 %1755
    %1757 = vrot.lane.b32.xlu0 %v1622, 10
    %v1758 = vpop.permute.xlu0 %1757
    %1759 = vrot.lane.b32.xlu0 %v1471, 10
    %v1760 = vpop.permute.xlu0 %1759
    %1761 = vrot.lane.b32.xlu0 %v1628, 10
    %v1762 = vpop.permute.xlu0 %1761
    %1767 = vrot.lane.b32.xlu0 %v1584, 20
    %v1768 = vpop.permute.xlu0 %1767
    %1769 = vrot.lane.b32.xlu0 %v1588, 20
    %v1770 = vpop.permute.xlu0 %1769
    %1771 = vrot.lane.b32.xlu0 %v1592, 20
    %v1772 = vpop.permute.xlu0 %1771
    %1773 = vrot.lane.b32.xlu0 %v1595, 20
    %v1774 = vpop.permute.xlu0 %1773
    %1779 = vrot.lane.b32.xlu0 %v1633, 30
    %v1780 = vpop.permute.xlu0 %1779
    %1781 = vrot.lane.b32.xlu0 %v1636, 30
    %v1782 = vpop.permute.xlu0 %1781
    %1783 = vrot.lane.b32.xlu0 %v1640, 30
    %v1784 = vpop.permute.xlu0 %1783
    %1785 = vrot.lane.b32.xlu0 %v1643, 30
    %v1786 = vpop.permute.xlu0 %1785
    %1791 = vrot.lane.b32.xlu0 %v1597, 40
    %v1792 = vpop.permute.xlu0 %1791
    %1793 = vrot.lane.b32.xlu0 %v1425, 40
    %v1794 = vpop.permute.xlu0 %1793
    %1795 = vrot.lane.b32.xlu0 %v1599, 40
    %v1796 = vpop.permute.xlu0 %1795
    %1797 = vrot.lane.b32.xlu0 %v1428, 40
    %v1798 = vpop.permute.xlu0 %1797
    %1803 = vrot.lane.b32.xlu0 %v1513, 50
    %v1804 = vpop.permute.xlu0 %1803
    %1805 = vrot.lane.b32.xlu0 %v1667, 50
    %v1806 = vpop.permute.xlu0 %1805
    %1807 = vrot.lane.b32.xlu0 %v1516, 50
    %v1808 = vpop.permute.xlu0 %1807
    %1809 = vrot.lane.b32.xlu0 %v1673, 50
    %v1810 = vpop.permute.xlu0 %1809
    %1815 = vrot.lane.b32.xlu0 %v1558, 60
    %v1816 = vpop.permute.xlu0 %1815
    %1817 = vrot.lane.b32.xlu0 %v1715, 60
    %v1818 = vpop.permute.xlu0 %1817
    %1819 = vrot.lane.b32.xlu0 %v1561, 60
    %v1820 = vpop.permute.xlu0 %1819
    %1821 = vrot.lane.b32.xlu0 %v1721, 60
    %v1822 = vpop.permute.xlu0 %1821
    %1827 = vrot.lane.b32.xlu0 %v1678, 70
    %v1828 = vpop.permute.xlu0 %1827
    %1829 = vrot.lane.b32.xlu0 %v1681, 70
    %v1830 = vpop.permute.xlu0 %1829
    %1831 = vrot.lane.b32.xlu0 %v1685, 70
    %v1832 = vpop.permute.xlu0 %1831
    %1833 = vrot.lane.b32.xlu0 %v1688, 70
    %v1834 = vpop.permute.xlu0 %1833
    %1839 = vrot.lane.b32.xlu0 %v1726, 80
    %v1840 = vpop.permute.xlu0 %1839
    %1841 = vrot.lane.b32.xlu0 %v1729, 80
    %v1842 = vpop.permute.xlu0 %1841
    %1843 = vrot.lane.b32.xlu0 %v1733, 80
    %v1844 = vpop.permute.xlu0 %1843
    %1845 = vrot.lane.b32.xlu0 %v1736, 80
    %v1846 = vpop.permute.xlu0 %1845
    %1851 = vrot.lane.b32.xlu0 %v1690, 90
    %v1852 = vpop.permute.xlu0 %1851
    %1853 = vrot.lane.b32.xlu0 %v1515, 90
    %v1854 = vpop.permute.xlu0 %1853
    %1855 = vrot.lane.b32.xlu0 %v1692, 90
    %v1856 = vpop.permute.xlu0 %1855
    %1857 = vrot.lane.b32.xlu0 %v1518, 90
    %v1858 = vpop.permute.xlu0 %1857
    %1863 = vrot.lane.b32.xlu0 %v1572, 100
    %v1864 = vpop.permute.xlu0 %1863
    %1865 = vrot.lane.b32.xlu0 %v1426, 100
    %v1866 = vpop.permute.xlu0 %1865
    %1867 = vrot.lane.b32.xlu0 %v1578, 100
    %v1868 = vpop.permute.xlu0 %1867
    %1869 = vrot.lane.b32.xlu0 %v1429, 100
    %v1870 = vpop.permute.xlu0 %1869
    %1875 = vrot.lane.b32.xlu0 %v1622, 110
    %v1876 = vpop.permute.xlu0 %1875
    %1877 = vrot.lane.b32.xlu0 %v1471, 110
    %v1878 = vpop.permute.xlu0 %1877
    %1879 = vrot.lane.b32.xlu0 %v1628, 110
    %v1880 = vpop.permute.xlu0 %1879
    %1881 = vrot.lane.b32.xlu0 %v1474, 110
    %v1882 = vpop.permute.xlu0 %1881
    %1887 = vrot.lane.b32.xlu0 %v1588, 120
    %v1888 = vpop.permute.xlu0 %1887
    %1889 = vrot.lane.b32.xlu0 %v1592, 120
    %v1890 = vpop.permute.xlu0 %1889
    %1891 = vrot.lane.b32.xlu0 %v1595, 120
    %v1892 = vpop.permute.xlu0 %1891
    %1893 = vrot.lane.b32.xlu0 %v1604, 120
    %v1894 = vpop.permute.xlu0 %1893
    %1899 = vrot.lane.b32.xlu0 %v1636, 2
    %v1900 = vpop.permute.xlu0 %1899
    %1901 = vrot.lane.b32.xlu0 %v1640, 2
    %v1902 = vpop.permute.xlu0 %1901
    %1903 = vrot.lane.b32.xlu0 %v1643, 2
    %v1904 = vpop.permute.xlu0 %1903
    %1905 = vrot.lane.b32.xlu0 %v1652, 2
    %v1906 = vpop.permute.xlu0 %1905
    %1911 = vrot.lane.b32.xlu0 %v1425, 12
    %v1912 = vpop.permute.xlu0 %1911
    %1913 = vrot.lane.b32.xlu0 %v1599, 12
    %v1914 = vpop.permute.xlu0 %1913
    %1915 = vrot.lane.b32.xlu0 %v1428, 12
    %v1916 = vpop.permute.xlu0 %1915
    %1917 = vrot.lane.b32.xlu0 %v1607, 12
    %v1918 = vpop.permute.xlu0 %1917
    %1923 = vrot.lane.b32.xlu0 %v1667, 22
    %v1924 = vpop.permute.xlu0 %1923
    %1925 = vrot.lane.b32.xlu0 %v1516, 22
    %v1926 = vpop.permute.xlu0 %1925
    %1927 = vrot.lane.b32.xlu0 %v1673, 22
    %v1928 = vpop.permute.xlu0 %1927
    %1929 = vrot.lane.b32.xlu0 %v1519, 22
    %v1930 = vpop.permute.xlu0 %1929
    %vm1935 = vcmask 80896
    %v1936 = vsel %vm1935, %v1423, %v1756
    %v1937 = vsel %vm1935, %v1572, %v1758
    %v1938 = vsel %vm1935, %v1426, %v1760
    %v1939 = vsel %vm1935, %v1578, %v1762
    %vm1940 = vcmask 162816
    %v1941 = vsel %vm1940, %v1936, %v1768
    %v1942 = vsel %vm1940, %v1937, %v1770
    %v1943 = vsel %vm1940, %v1938, %v1772
    %v1944 = vsel %vm1940, %v1939, %v1774
    %vm1945 = vcmask 244736
    %v1946 = vsel %vm1945, %v1941, %v1780
    %v1947 = vsel %vm1945, %v1942, %v1782
    %v1948 = vsel %vm1945, %v1943, %v1784
    %v1949 = vsel %vm1945, %v1944, %v1786
    %vm1950 = vcmask 326656
    %v1951 = vsel %vm1950, %v1946, %v1792
    %v1952 = vsel %vm1950, %v1947, %v1794
    %v1953 = vsel %vm1950, %v1948, %v1796
    %v1954 = vsel %vm1950, %v1949, %v1798
    %vm1955 = vcmask 408576
    %v1956 = vsel %vm1955, %v1951, %v1804
    %v1957 = vsel %vm1955, %v1952, %v1806
    %v1958 = vsel %vm1955, %v1953, %v1808
    %v1959 = vsel %vm1955, %v1954, %v1810
    %vm1960 = vcmask 490496
    %v1961 = vsel %vm1960, %v1956, %v1816
    %v1962 = vsel %vm1960, %v1957, %v1818
    %v1963 = vsel %vm1960, %v1958, %v1820
    %v1964 = vsel %vm1960, %v1959, %v1822
    %vm1965 = vcmask 572416
    %v1966 = vsel %vm1965, %v1961, %v1828
    %v1967 = vsel %vm1965, %v1962, %v1830
    %v1968 = vsel %vm1965, %v1963, %v1832
    %v1969 = vsel %vm1965, %v1964, %v1834
    %vm1970 = vcmask 654336
    %v1971 = vsel %vm1970, %v1966, %v1840
    %v1972 = vsel %vm1970, %v1967, %v1842
    %v1973 = vsel %vm1970, %v1968, %v1844
    %v1974 = vsel %vm1970, %v1969, %v1846
    %vm1975 = vcmask 736256
    %v1976 = vsel %vm1975, %v1971, %v1852
    %v1977 = vsel %vm1975, %v1972, %v1854
    %v1978 = vsel %vm1975, %v1973, %v1856
    %v1979 = vsel %vm1975, %v1974, %v1858
    %vm1980 = vcmask 818176
    %v1981 = vsel %vm1980, %v1976, %v1864
    %v1982 = vsel %vm1980, %v1977, %v1866
    %v1983 = vsel %vm1980, %v1978, %v1868
    %v1984 = vsel %vm1980, %v1979, %v1870
    %vm1985 = vcmask 900096
    %v1986 = vsel %vm1985, %v1981, %v1876
    %v1987 = vsel %vm1985, %v1982, %v1878
    %v1988 = vsel %vm1985, %v1983, %v1880
    %v1989 = vsel %vm1985, %v1984, %v1882
    %vm1990 = vcmask 982016
    %v1991 = vsel %vm1990, %v1986, %v1888
    %v1992 = vsel %vm1990, %v1987, %v1890
    %v1993 = vsel %vm1990, %v1988, %v1892
    %v1994 = vsel %vm1990, %v1989, %v1894
    %vm1995 = vcmask 15360
    %v1996 = vsel %vm1995, %v1888, %v1900
    %v1997 = vsel %vm1995, %v1890, %v1902
    %v1998 = vsel %vm1995, %v1892, %v1904
    %v1999 = vsel %vm1995, %v1894, %v1906
    %vm2000 = vcmask 97280
    %v2001 = vsel %vm2000, %v1996, %v1912
    %v2002 = vsel %vm2000, %v1997, %v1914
    %v2003 = vsel %vm2000, %v1998, %v1916
    %v2004 = vsel %vm2000, %v1999, %v1918
    %vm2005 = vcmask 179200
    %v2006 = vsel %vm2005, %v2001, %v1924
    %v2007 = vsel %vm2005, %v2002, %v1926
    %v2008 = vsel %vm2005, %v2003, %v1928
    %v2009 = vsel %vm2005, %v2004, %v1930
    %2010 = vrot.lane.b32.xlu0 %v1681, 10
    %v2011 = vpop.permute.xlu0 %2010
    %2012 = vrot.lane.b32.xlu0 %v1685, 10
    %v2013 = vpop.permute.xlu0 %2012
    %2014 = vrot.lane.b32.xlu0 %v1688, 10
    %v2015 = vpop.permute.xlu0 %2014
    %2016 = vrot.lane.b32.xlu0 %v1700, 10
    %v2017 = vpop.permute.xlu0 %2016
    %2022 = vrot.lane.b32.xlu0 %v1729, 20
    %v2023 = vpop.permute.xlu0 %2022
    %2024 = vrot.lane.b32.xlu0 %v1733, 20
    %v2025 = vpop.permute.xlu0 %2024
    %2026 = vrot.lane.b32.xlu0 %v1736, 20
    %v2027 = vpop.permute.xlu0 %2026
    %2028 = vrot.lane.b32.xlu0 %v1745, 20
    %v2029 = vpop.permute.xlu0 %2028
    %2034 = vrot.lane.b32.xlu0 %v1515, 30
    %v2035 = vpop.permute.xlu0 %2034
    %2036 = vrot.lane.b32.xlu0 %v1692, 30
    %v2037 = vpop.permute.xlu0 %2036
    %2038 = vrot.lane.b32.xlu0 %v1518, 30
    %v2039 = vpop.permute.xlu0 %2038
    %2040 = vrot.lane.b32.xlu0 %v1704, 30
    %v2041 = vpop.permute.xlu0 %2040
    %2046 = vrot.lane.b32.xlu0 %v1426, 40
    %v2047 = vpop.permute.xlu0 %2046
    %2048 = vrot.lane.b32.xlu0 %v1578, 40
    %v2049 = vpop.permute.xlu0 %2048
    %2050 = vrot.lane.b32.xlu0 %v1429, 40
    %v2051 = vpop.permute.xlu0 %2050
    %2052 = vrot.lane.b32.xlu0 %v1610, 40
    %v2053 = vpop.permute.xlu0 %2052
    %2058 = vrot.lane.b32.xlu0 %v1471, 50
    %v2059 = vpop.permute.xlu0 %2058
    %2060 = vrot.lane.b32.xlu0 %v1628, 50
    %v2061 = vpop.permute.xlu0 %2060
    %2062 = vrot.lane.b32.xlu0 %v1474, 50
    %v2063 = vpop.permute.xlu0 %2062
    %2064 = vrot.lane.b32.xlu0 %v1658, 50
    %v2065 = vpop.permute.xlu0 %2064
    %2070 = vrot.lane.b32.xlu0 %v1592, 60
    %v2071 = vpop.permute.xlu0 %2070
    %2072 = vrot.lane.b32.xlu0 %v1595, 60
    %v2073 = vpop.permute.xlu0 %2072
    %2074 = vrot.lane.b32.xlu0 %v1604, 60
    %v2075 = vpop.permute.xlu0 %2074
    %2076 = vrot.lane.b32.xlu0 %v1616, 60
    %v2077 = vpop.permute.xlu0 %2076
    %2082 = vrot.lane.b32.xlu0 %v1640, 70
    %v2083 = vpop.permute.xlu0 %2082
    %2084 = vrot.lane.b32.xlu0 %v1643, 70
    %v2085 = vpop.permute.xlu0 %2084
    %2086 = vrot.lane.b32.xlu0 %v1652, 70
    %v2087 = vpop.permute.xlu0 %2086
    %2088 = vrot.lane.b32.xlu0 %v1662, 70
    %v2089 = vpop.permute.xlu0 %2088
    %2094 = vrot.lane.b32.xlu0 %v1599, 80
    %v2095 = vpop.permute.xlu0 %2094
    %2096 = vrot.lane.b32.xlu0 %v1428, 80
    %v2097 = vpop.permute.xlu0 %2096
    %2098 = vrot.lane.b32.xlu0 %v1607, 80
    %v2099 = vpop.permute.xlu0 %2098
    %2100 = vrot.lane.b32.xlu0 %v1431, 80
    %v2101 = vpop.permute.xlu0 %2100
    %v2106 = vsel %vm1935, %v1715, %v2011
    %v2107 = vsel %vm1935, %v1561, %v2013
    %v2108 = vsel %vm1935, %v1721, %v2015
    %v2109 = vsel %vm1935, %v1564, %v2017
    %v2110 = vsel %vm1940, %v2106, %v2023
    %v2111 = vsel %vm1940, %v2107, %v2025
    %v2112 = vsel %vm1940, %v2108, %v2027
    %v2113 = vsel %vm1940, %v2109, %v2029
    %v2114 = vsel %vm1945, %v2110, %v2035
    %v2115 = vsel %vm1945, %v2111, %v2037
    %v2116 = vsel %vm1945, %v2112, %v2039
    %v2117 = vsel %vm1945, %v2113, %v2041
    %v2118 = vsel %vm1950, %v2114, %v2047
    %v2119 = vsel %vm1950, %v2115, %v2049
    %v2120 = vsel %vm1950, %v2116, %v2051
    %v2121 = vsel %vm1950, %v2117, %v2053
    %v2122 = vsel %vm1955, %v2118, %v2059
    %v2123 = vsel %vm1955, %v2119, %v2061
    %v2124 = vsel %vm1955, %v2120, %v2063
    %v2125 = vsel %vm1955, %v2121, %v2065
    %v2126 = vsel %vm1960, %v2122, %v2071
    %v2127 = vsel %vm1960, %v2123, %v2073
    %v2128 = vsel %vm1960, %v2124, %v2075
    %v2129 = vsel %vm1960, %v2125, %v2077
    %v2130 = vsel %vm1965, %v2126, %v2083
    %v2131 = vsel %vm1965, %v2127, %v2085
    %v2132 = vsel %vm1965, %v2128, %v2087
    %v2133 = vsel %vm1965, %v2129, %v2089
    %v2134 = vsel %vm1970, %v2130, %v2095
    %v2135 = vsel %vm1970, %v2131, %v2097
    %v2136 = vsel %vm1970, %v2132, %v2099
    %v2137 = vsel %vm1970, %v2133, %v2101
    %2142 = vrot.lane.b32.xlu0 %v2134, 32
    %v2143 = vpop.permute.xlu0 %2142
    %2144 = vrot.lane.b32.xlu0 %v2135, 32
    %v2145 = vpop.permute.xlu0 %2144
    %2146 = vrot.lane.b32.xlu0 %v2136, 32
    %v2147 = vpop.permute.xlu0 %2146
    %2148 = vrot.lane.b32.xlu0 %v2137, 32
    %v2149 = vpop.permute.xlu0 %2148
    %v2154 = vsel %vm554, %v2006, %v2143
    %v2155 = vsel %vm554, %v2007, %v2145
    %v2156 = vsel %vm554, %v2008, %v2147
    %v2157 = vsel %vm554, %v2009, %v2149
    %v2158 = vpack.c.bf16 %v1992, %v1991
    %v2159 = vpack.c.bf16 %v2155, %v2154
    %v2160 = vpack.c.bf16 %v1994, %v1993
    %v2161 = vpack.c.bf16 %v2157, %v2156
    %v2162 = vld [vmem:[%s3] sm:$0xf]
    %v2163 = vld [vmem:[%s3 + $0x4] sm:$0xf]
    %v2164 = vld [vmem:[%s3 + $0x8] sm:$0xf]
    %v2165 = vld [vmem:[%s3 + $0xc] sm:$0xf]
    %v2166 = vld [vmem:[%s3 + $0x10] sm:$0xf]
    %v2167 = vld [vmem:[%s3 + $0x14] sm:$0xf]
    %v2168 = vld [vmem:[%s3 + $0x18] sm:$0xf]
    %v2169 = vld [vmem:[%s3 + $0x1c] sm:$0xf]
    %v2170 = vld [vmem:[%s3 + $0x20] sm:$0xf]
    %v2171 = vld [vmem:[%s3 + $0x24] sm:$0xf]
    %v2172 = vld [vmem:[%s3 + $0x28] sm:$0xf]
    %v2173 = vld [vmem:[%s3 + $0x2c] sm:$0xf]
    %v2174 = vld [vmem:[%s3 + $0x30] sm:$0xf]
    %v2175 = vld [vmem:[%s3 + $0x34] sm:$0xf]
    %v2176 = vld [vmem:[%s3 + $0x38] sm:$0xf]
    %v2177 = vld [vmem:[%s3 + $0x3c] sm:$0xf]
    %v2178 = vld [vmem:[%s3 + $0x40] sm:$0xf]
    %v2179 = vld [vmem:[%s3 + $0x44] sm:$0xf]
    %v2180 = vld [vmem:[%s3 + $0x48] sm:$0xf]
    %v2181 = vld [vmem:[%s3 + $0x4c] sm:$0xf]
    %v2182 = vld [vmem:[%s3 + $0x50] sm:$0xf]
    %v2183 = vld [vmem:[%s3 + $0x54] sm:$0xf]
    %v2184 = vld [vmem:[%s3 + $0x58] sm:$0xf]
    %v2185 = vld [vmem:[%s3 + $0x5c] sm:$0xf]
    %v2186 = vld [vmem:[%s3 + $0x60] sm:$0xf]
    %v2187 = vld [vmem:[%s3 + $0x64] sm:$0xf]
    %v2188 = vld [vmem:[%s3 + $0x68] sm:$0xf]
    %v2189 = vld [vmem:[%s3 + $0x6c] sm:$0xf]
    %v2190 = vld [vmem:[%s3 + $0x70] sm:$0xf]
    %v2191 = vld [vmem:[%s3 + $0x74] sm:$0xf]
    %v2192 = vld [vmem:[%s3 + $0x78] sm:$0xf]
    %v2193 = vld [vmem:[%s3 + $0x7c] sm:$0x1]
    %v2226 = vunpack.c.l.b16 %v2162
    %v2227 = vunpack.c.l.b16 %v2163
    %v2228 = vunpack.c.l.b16 %v2164
    %v2229 = vunpack.c.l.b16 %v2165
    %v2230 = vunpack.c.l.b16 %v2166
    %v2231 = vunpack.c.l.b16 %v2167
    %v2232 = vunpack.c.l.b16 %v2168
    %v2233 = vunpack.c.l.b16 %v2169
    %v2234 = vunpack.c.l.b16 %v2170
    %v2235 = vunpack.c.l.b16 %v2171
    %v2236 = vunpack.c.l.b16 %v2172
    %v2237 = vunpack.c.l.b16 %v2173
    %v2238 = vunpack.c.l.b16 %v2174
    %v2239 = vunpack.c.l.b16 %v2175
    %v2240 = vunpack.c.l.b16 %v2176
    %v2241 = vunpack.c.l.b16 %v2177
    %v2242 = vunpack.c.l.b16 %v2178
    %v2243 = vunpack.c.l.b16 %v2179
    %v2244 = vunpack.c.l.b16 %v2180
    %v2245 = vunpack.c.l.b16 %v2181
    %v2246 = vunpack.c.l.b16 %v2182
    %v2247 = vunpack.c.l.b16 %v2183
    %v2248 = vunpack.c.l.b16 %v2184
    %v2249 = vunpack.c.l.b16 %v2185
    %v2250 = vunpack.c.l.b16 %v2186
    %v2251 = vunpack.c.l.b16 %v2187
    %v2252 = vunpack.c.l.b16 %v2188
    %v2253 = vunpack.c.l.b16 %v2189
    %v2254 = vunpack.c.l.b16 %v2190
    %v2255 = vunpack.c.l.b16 %v2191
    %v2256 = vunpack.c.l.b16 %v2192
    %v2257 = vunpack.c.l.b16 %v2193
    %v2258 = vpack.c.b16 %v2227, %v2226
    %v2259 = vpack.c.b16 %v2229, %v2228
    %v2260 = vpack.c.b16 %v2231, %v2230
    %v2261 = vpack.c.b16 %v2233, %v2232
    %v2262 = vpack.c.b16 %v2235, %v2234
    %v2263 = vpack.c.b16 %v2237, %v2236
    %v2264 = vpack.c.b16 %v2239, %v2238
    %v2265 = vpack.c.b16 %v2241, %v2240
    %v2266 = vpack.c.b16 %v2243, %v2242
    %v2267 = vpack.c.b16 %v2245, %v2244
    %v2268 = vpack.c.b16 %v2247, %v2246
    %v2269 = vpack.c.b16 %v2249, %v2248
    %v2270 = vpack.c.b16 %v2251, %v2250
    %v2271 = vpack.c.b16 %v2253, %v2252
    %v2272 = vpack.c.b16 %v2255, %v2254
    %v2273 = vpack.c.b16 %v2257, %v2256
    %vm2289 = vcmask 998400
    %v2291 = vsel %vm2289, %v2159, 0
    %v2294 = vsel %vm2289, %v2161, 0
    %vm2296 = vcmask 1044480
    %v2298 = vsel %vm2296, %v2273, 0
    %2300 = vmatprep.subr.bf16.mxu0 0
    %2301 = vmatpush1.bf16.msra.mxu0 %v2265
    %2302 = vmatprep.subr.bf16.mxu0 0
    %2303 = vmatpush1.bf16.msra.mxu0 %v2264
    %2304 = vmatprep.subr.bf16.mxu0 0
    %2305 = vmatpush1.bf16.msra.mxu0 %v2263
    %2306 = vmatprep.subr.bf16.mxu0 0
    %2307 = vmatpush1.bf16.msra.mxu0 %v2262
    %2308 = vmatprep.subr.bf16.mxu0 0
    %2309 = vmatpush1.bf16.msra.mxu0 %v2261
    %2310 = vmatprep.subr.bf16.mxu0 0
    %2311 = vmatpush1.bf16.msra.mxu0 %v2260
    %2312 = vmatprep.subr.bf16.mxu0 0
    %2313 = vmatpush1.bf16.msra.mxu0 %v2259
    %2314 = vmatprep.subr.bf16.mxu0 0
    %2315 = vmatpush1.bf16.msra.mxu0 %v2258
    %2316 = vmatprep.subr.bf16.mxu0 0
    %2317 = vmatpush2.bf16.msra.mxu0 %v2298
    %2318 = vmatprep.subr.bf16.mxu0 0
    %2319 = vmatpush2.bf16.msra.mxu0 %v2272
    %2320 = vmatprep.subr.bf16.mxu0 0
    %2321 = vmatpush2.bf16.msra.mxu0 %v2271
    %2322 = vmatprep.subr.bf16.mxu0 0
    %2323 = vmatpush2.bf16.msra.mxu0 %v2270
    %2324 = vmatprep.subr.bf16.mxu0 0
    %2325 = vmatpush2.bf16.msra.mxu0 %v2269
    %2326 = vmatprep.subr.bf16.mxu0 0
    %2327 = vmatpush2.bf16.msra.mxu0 %v2268
    %2328 = vmatprep.subr.bf16.mxu0 0
    %2329 = vmatpush2.bf16.msra.mxu0 %v2267
    %2330 = vmatprep.subr.bf16.mxu0 0
    %2331 = vmatpush2.bf16.msra.mxu0 %v2266
    %2332 = vmatprep.mubr.bf16.mxu0 %v2291
    %2333 = vmatmul.mubr.bf16.gmra.mxu0 %v2158
    %v2334 = vpop.f32.mrf.mxu0
    %v2335 = vadd.f32 0.0, %v2334
    %v2336 = vpop.f32.mrf.mxu0
    %v2337 = vpop.f32.mrf.mxu0
    %v2338 = vadd.f32 0.0, %v2337
    %v2339 = vpop.f32.mrf.mxu0
    %2340 = vmatprep.mubr.bf16.mxu0 %v2294
    %2341 = vmatmul.mubr.bf16.gmra.mxu0 %v2160
    %v2342 = vpop.f32.mrf.mxu0
    %v2343 = vadd.f32 0.0, %v2342
    %v2344 = vpop.f32.mrf.mxu0
    %v2345 = vpop.f32.mrf.mxu0
    %v2346 = vadd.f32 0.0, %v2345
    %v2347 = vpop.f32.mrf.mxu0
    %2348 = vdwg.mxu0
    %2349 = vrot.lane.b32.xlu0 %v1584, 10
    %v2350 = vpop.permute.xlu0 %2349
    %2351 = vrot.lane.b32.xlu0 %v1588, 10
    %v2352 = vpop.permute.xlu0 %2351
    %2353 = vrot.lane.b32.xlu0 %v1592, 10
    %v2354 = vpop.permute.xlu0 %2353
    %2355 = vrot.lane.b32.xlu0 %v1595, 10
    %v2356 = vpop.permute.xlu0 %2355
    %2361 = vrot.lane.b32.xlu0 %v1633, 20
    %v2362 = vpop.permute.xlu0 %2361
    %2363 = vrot.lane.b32.xlu0 %v1636, 20
    %v2364 = vpop.permute.xlu0 %2363
    %2365 = vrot.lane.b32.xlu0 %v1640, 20
    %v2366 = vpop.permute.xlu0 %2365
    %2367 = vrot.lane.b32.xlu0 %v1643, 20
    %v2368 = vpop.permute.xlu0 %2367
    %2373 = vrot.lane.b32.xlu0 %v1597, 30
    %v2374 = vpop.permute.xlu0 %2373
    %2375 = vrot.lane.b32.xlu0 %v1425, 30
    %v2376 = vpop.permute.xlu0 %2375
    %2377 = vrot.lane.b32.xlu0 %v1599, 30
    %v2378 = vpop.permute.xlu0 %2377
    %2379 = vrot.lane.b32.xlu0 %v1428, 30
    %v2380 = vpop.permute.xlu0 %2379
    %2385 = vrot.lane.b32.xlu0 %v1645, 40
    %v2386 = vpop.permute.xlu0 %2385
    %2387 = vrot.lane.b32.xlu0 %v1470, 40
    %v2388 = vpop.permute.xlu0 %2387
    %2389 = vrot.lane.b32.xlu0 %v1647, 40
    %v2390 = vpop.permute.xlu0 %2389
    %2391 = vrot.lane.b32.xlu0 %v1473, 40
    %v2392 = vpop.permute.xlu0 %2391
    %2397 = vrot.lane.b32.xlu0 %v1558, 50
    %v2398 = vpop.permute.xlu0 %2397
    %2399 = vrot.lane.b32.xlu0 %v1715, 50
    %v2400 = vpop.permute.xlu0 %2399
    %2401 = vrot.lane.b32.xlu0 %v1561, 50
    %v2402 = vpop.permute.xlu0 %2401
    %2403 = vrot.lane.b32.xlu0 %v1721, 50
    %v2404 = vpop.permute.xlu0 %2403
    %2409 = vrot.lane.b32.xlu0 %v1678, 60
    %v2410 = vpop.permute.xlu0 %2409
    %2411 = vrot.lane.b32.xlu0 %v1681, 60
    %v2412 = vpop.permute.xlu0 %2411
    %2413 = vrot.lane.b32.xlu0 %v1685, 60
    %v2414 = vpop.permute.xlu0 %2413
    %2415 = vrot.lane.b32.xlu0 %v1688, 60
    %v2416 = vpop.permute.xlu0 %2415
    %2421 = vrot.lane.b32.xlu0 %v1726, 70
    %v2422 = vpop.permute.xlu0 %2421
    %2423 = vrot.lane.b32.xlu0 %v1729, 70
    %v2424 = vpop.permute.xlu0 %2423
    %2425 = vrot.lane.b32.xlu0 %v1733, 70
    %v2426 = vpop.permute.xlu0 %2425
    %2427 = vrot.lane.b32.xlu0 %v1736, 70
    %v2428 = vpop.permute.xlu0 %2427
    %2433 = vrot.lane.b32.xlu0 %v1690, 80
    %v2434 = vpop.permute.xlu0 %2433
    %2435 = vrot.lane.b32.xlu0 %v1515, 80
    %v2436 = vpop.permute.xlu0 %2435
    %2437 = vrot.lane.b32.xlu0 %v1692, 80
    %v2438 = vpop.permute.xlu0 %2437
    %2439 = vrot.lane.b32.xlu0 %v1518, 80
    %v2440 = vpop.permute.xlu0 %2439
    %2445 = vrot.lane.b32.xlu0 %v1738, 90
    %v2446 = vpop.permute.xlu0 %2445
    %2447 = vrot.lane.b32.xlu0 %v1560, 90
    %v2448 = vpop.permute.xlu0 %2447
    %2449 = vrot.lane.b32.xlu0 %v1740, 90
    %v2450 = vpop.permute.xlu0 %2449
    %2451 = vrot.lane.b32.xlu0 %v1563, 90
    %v2452 = vpop.permute.xlu0 %2451
    %2457 = vrot.lane.b32.xlu0 %v1622, 100
    %v2458 = vpop.permute.xlu0 %2457
    %2459 = vrot.lane.b32.xlu0 %v1471, 100
    %v2460 = vpop.permute.xlu0 %2459
    %2461 = vrot.lane.b32.xlu0 %v1628, 100
    %v2462 = vpop.permute.xlu0 %2461
    %2463 = vrot.lane.b32.xlu0 %v1474, 100
    %v2464 = vpop.permute.xlu0 %2463
    %2469 = vrot.lane.b32.xlu0 %v1588, 110
    %v2470 = vpop.permute.xlu0 %2469
    %2471 = vrot.lane.b32.xlu0 %v1592, 110
    %v2472 = vpop.permute.xlu0 %2471
    %2473 = vrot.lane.b32.xlu0 %v1595, 110
    %v2474 = vpop.permute.xlu0 %2473
    %2475 = vrot.lane.b32.xlu0 %v1604, 110
    %v2476 = vpop.permute.xlu0 %2475
    %2481 = vrot.lane.b32.xlu0 %v1636, 120
    %v2482 = vpop.permute.xlu0 %2481
    %2483 = vrot.lane.b32.xlu0 %v1640, 120
    %v2484 = vpop.permute.xlu0 %2483
    %2485 = vrot.lane.b32.xlu0 %v1643, 120
    %v2486 = vpop.permute.xlu0 %2485
    %2487 = vrot.lane.b32.xlu0 %v1652, 120
    %v2488 = vpop.permute.xlu0 %2487
    %2493 = vrot.lane.b32.xlu0 %v1425, 2
    %v2494 = vpop.permute.xlu0 %2493
    %2495 = vrot.lane.b32.xlu0 %v1599, 2
    %v2496 = vpop.permute.xlu0 %2495
    %2497 = vrot.lane.b32.xlu0 %v1428, 2
    %v2498 = vpop.permute.xlu0 %2497
    %2499 = vrot.lane.b32.xlu0 %v1607, 2
    %v2500 = vpop.permute.xlu0 %2499
    %2505 = vrot.lane.b32.xlu0 %v1470, 12
    %v2506 = vpop.permute.xlu0 %2505
    %2507 = vrot.lane.b32.xlu0 %v1647, 12
    %v2508 = vpop.permute.xlu0 %2507
    %2509 = vrot.lane.b32.xlu0 %v1473, 12
    %v2510 = vpop.permute.xlu0 %2509
    %2511 = vrot.lane.b32.xlu0 %v1655, 12
    %v2512 = vpop.permute.xlu0 %2511
    %2517 = vrot.lane.b32.xlu0 %v1715, 22
    %v2518 = vpop.permute.xlu0 %2517
    %2519 = vrot.lane.b32.xlu0 %v1561, 22
    %v2520 = vpop.permute.xlu0 %2519
    %2521 = vrot.lane.b32.xlu0 %v1721, 22
    %v2522 = vpop.permute.xlu0 %2521
    %2523 = vrot.lane.b32.xlu0 %v1564, 22
    %v2524 = vpop.permute.xlu0 %2523
    %v2529 = vsel %vm1935, %v1468, %v2350
    %v2530 = vsel %vm1935, %v1622, %v2352
    %v2531 = vsel %vm1935, %v1471, %v2354
    %v2532 = vsel %vm1935, %v1628, %v2356
    %v2533 = vsel %vm1940, %v2529, %v2362
    %v2534 = vsel %vm1940, %v2530, %v2364
    %v2535 = vsel %vm1940, %v2531, %v2366
    %v2536 = vsel %vm1940, %v2532, %v2368
    %v2537 = vsel %vm1945, %v2533, %v2374
    %v2538 = vsel %vm1945, %v2534, %v2376
    %v2539 = vsel %vm1945, %v2535, %v2378
    %v2540 = vsel %vm1945, %v2536, %v2380
    %v2541 = vsel %vm1950, %v2537, %v2386
    %v2542 = vsel %vm1950, %v2538, %v2388
    %v2543 = vsel %vm1950, %v2539, %v2390
    %v2544 = vsel %vm1950, %v2540, %v2392
    %v2545 = vsel %vm1955, %v2541, %v2398
    %v2546 = vsel %vm1955, %v2542, %v2400
    %v2547 = vsel %vm1955, %v2543, %v2402
    %v2548 = vsel %vm1955, %v2544, %v2404
    %v2549 = vsel %vm1960, %v2545, %v2410
    %v2550 = vsel %vm1960, %v2546, %v2412
    %v2551 = vsel %vm1960, %v2547, %v2414
    %v2552 = vsel %vm1960, %v2548, %v2416
    %v2553 = vsel %vm1965, %v2549, %v2422
    %v2554 = vsel %vm1965, %v2550, %v2424
    %v2555 = vsel %vm1965, %v2551, %v2426
    %v2556 = vsel %vm1965, %v2552, %v2428
    %v2557 = vsel %vm1970, %v2553, %v2434
    %v2558 = vsel %vm1970, %v2554, %v2436
    %v2559 = vsel %vm1970, %v2555, %v2438
    %v2560 = vsel %vm1970, %v2556, %v2440
    %v2561 = vsel %vm1975, %v2557, %v2446
    %v2562 = vsel %vm1975, %v2558, %v2448
    %v2563 = vsel %vm1975, %v2559, %v2450
    %v2564 = vsel %vm1975, %v2560, %v2452
    %v2565 = vsel %vm1980, %v2561, %v2458
    %v2566 = vsel %vm1980, %v2562, %v2460
    %v2567 = vsel %vm1980, %v2563, %v2462
    %v2568 = vsel %vm1980, %v2564, %v2464
    %v2569 = vsel %vm1985, %v2565, %v2470
    %v2570 = vsel %vm1985, %v2566, %v2472
    %v2571 = vsel %vm1985, %v2567, %v2474
    %v2572 = vsel %vm1985, %v2568, %v2476
    %v2573 = vsel %vm1990, %v2569, %v2482
    %v2574 = vsel %vm1990, %v2570, %v2484
    %v2575 = vsel %vm1990, %v2571, %v2486
    %v2576 = vsel %vm1990, %v2572, %v2488
    %v2577 = vsel %vm1995, %v2482, %v2494
    %v2578 = vsel %vm1995, %v2484, %v2496
    %v2579 = vsel %vm1995, %v2486, %v2498
    %v2580 = vsel %vm1995, %v2488, %v2500
    %v2581 = vsel %vm2000, %v2577, %v2506
    %v2582 = vsel %vm2000, %v2578, %v2508
    %v2583 = vsel %vm2000, %v2579, %v2510
    %v2584 = vsel %vm2000, %v2580, %v2512
    %v2585 = vsel %vm2005, %v2581, %v2518
    %v2586 = vsel %vm2005, %v2582, %v2520
    %v2587 = vsel %vm2005, %v2583, %v2522
    %v2588 = vsel %vm2005, %v2584, %v2524
    %2589 = vrot.lane.b32.xlu0 %v1729, 10
    %v2590 = vpop.permute.xlu0 %2589
    %2591 = vrot.lane.b32.xlu0 %v1733, 10
    %v2592 = vpop.permute.xlu0 %2591
    %2593 = vrot.lane.b32.xlu0 %v1736, 10
    %v2594 = vpop.permute.xlu0 %2593
    %2595 = vrot.lane.b32.xlu0 %v1745, 10
    %v2596 = vpop.permute.xlu0 %2595
    %2601 = vrot.lane.b32.xlu0 %v1515, 20
    %v2602 = vpop.permute.xlu0 %2601
    %2603 = vrot.lane.b32.xlu0 %v1692, 20
    %v2604 = vpop.permute.xlu0 %2603
    %2605 = vrot.lane.b32.xlu0 %v1518, 20
    %v2606 = vpop.permute.xlu0 %2605
    %2607 = vrot.lane.b32.xlu0 %v1704, 20
    %v2608 = vpop.permute.xlu0 %2607
    %2613 = vrot.lane.b32.xlu0 %v1560, 30
    %v2614 = vpop.permute.xlu0 %2613
    %2615 = vrot.lane.b32.xlu0 %v1740, 30
    %v2616 = vpop.permute.xlu0 %2615
    %2617 = vrot.lane.b32.xlu0 %v1563, 30
    %v2618 = vpop.permute.xlu0 %2617
    %2619 = vrot.lane.b32.xlu0 %v1748, 30
    %v2620 = vpop.permute.xlu0 %2619
    %2625 = vrot.lane.b32.xlu0 %v1471, 40
    %v2626 = vpop.permute.xlu0 %2625
    %2627 = vrot.lane.b32.xlu0 %v1628, 40
    %v2628 = vpop.permute.xlu0 %2627
    %2629 = vrot.lane.b32.xlu0 %v1474, 40
    %v2630 = vpop.permute.xlu0 %2629
    %2631 = vrot.lane.b32.xlu0 %v1658, 40
    %v2632 = vpop.permute.xlu0 %2631
    %2637 = vrot.lane.b32.xlu0 %v1592, 50
    %v2638 = vpop.permute.xlu0 %2637
    %2639 = vrot.lane.b32.xlu0 %v1595, 50
    %v2640 = vpop.permute.xlu0 %2639
    %2641 = vrot.lane.b32.xlu0 %v1604, 50
    %v2642 = vpop.permute.xlu0 %2641
    %2643 = vrot.lane.b32.xlu0 %v1616, 50
    %v2644 = vpop.permute.xlu0 %2643
    %2649 = vrot.lane.b32.xlu0 %v1640, 60
    %v2650 = vpop.permute.xlu0 %2649
    %2651 = vrot.lane.b32.xlu0 %v1643, 60
    %v2652 = vpop.permute.xlu0 %2651
    %2653 = vrot.lane.b32.xlu0 %v1652, 60
    %v2654 = vpop.permute.xlu0 %2653
    %2655 = vrot.lane.b32.xlu0 %v1662, 60
    %v2656 = vpop.permute.xlu0 %2655
    %2661 = vrot.lane.b32.xlu0 %v1599, 70
    %v2662 = vpop.permute.xlu0 %2661
    %2663 = vrot.lane.b32.xlu0 %v1428, 70
    %v2664 = vpop.permute.xlu0 %2663
    %2665 = vrot.lane.b32.xlu0 %v1607, 70
    %v2666 = vpop.permute.xlu0 %2665
    %2667 = vrot.lane.b32.xlu0 %v1431, 70
    %v2668 = vpop.permute.xlu0 %2667
    %2673 = vrot.lane.b32.xlu0 %v1647, 80
    %v2674 = vpop.permute.xlu0 %2673
    %2675 = vrot.lane.b32.xlu0 %v1473, 80
    %v2676 = vpop.permute.xlu0 %2675
    %2677 = vrot.lane.b32.xlu0 %v1655, 80
    %v2678 = vpop.permute.xlu0 %2677
    %2679 = vrot.lane.b32.xlu0 %v1476, 80
    %v2680 = vpop.permute.xlu0 %2679
    %v2685 = vsel %vm1935, %v1681, %v2590
    %v2686 = vsel %vm1935, %v1685, %v2592
    %v2687 = vsel %vm1935, %v1688, %v2594
    %v2688 = vsel %vm1935, %v1700, %v2596
    %v2689 = vsel %vm1940, %v2685, %v2602
    %v2690 = vsel %vm1940, %v2686, %v2604
    %v2691 = vsel %vm1940, %v2687, %v2606
    %v2692 = vsel %vm1940, %v2688, %v2608
    %v2693 = vsel %vm1945, %v2689, %v2614
    %v2694 = vsel %vm1945, %v2690, %v2616
    %v2695 = vsel %vm1945, %v2691, %v2618
    %v2696 = vsel %vm1945, %v2692, %v2620
    %v2697 = vsel %vm1950, %v2693, %v2626
    %v2698 = vsel %vm1950, %v2694, %v2628
    %v2699 = vsel %vm1950, %v2695, %v2630
    %v2700 = vsel %vm1950, %v2696, %v2632
    %v2701 = vsel %vm1955, %v2697, %v2638
    %v2702 = vsel %vm1955, %v2698, %v2640
    %v2703 = vsel %vm1955, %v2699, %v2642
    %v2704 = vsel %vm1955, %v2700, %v2644
    %v2705 = vsel %vm1960, %v2701, %v2650
    %v2706 = vsel %vm1960, %v2702, %v2652
    %v2707 = vsel %vm1960, %v2703, %v2654
    %v2708 = vsel %vm1960, %v2704, %v2656
    %v2709 = vsel %vm1965, %v2705, %v2662
    %v2710 = vsel %vm1965, %v2706, %v2664
    %v2711 = vsel %vm1965, %v2707, %v2666
    %v2712 = vsel %vm1965, %v2708, %v2668
    %v2713 = vsel %vm1970, %v2709, %v2674
    %v2714 = vsel %vm1970, %v2710, %v2676
    %v2715 = vsel %vm1970, %v2711, %v2678
    %v2716 = vsel %vm1970, %v2712, %v2680
    %2721 = vrot.lane.b32.xlu0 %v2713, 32
    %v2722 = vpop.permute.xlu0 %2721
    %2723 = vrot.lane.b32.xlu0 %v2714, 32
    %v2724 = vpop.permute.xlu0 %2723
    %2725 = vrot.lane.b32.xlu0 %v2715, 32
    %v2726 = vpop.permute.xlu0 %2725
    %2727 = vrot.lane.b32.xlu0 %v2716, 32
    %v2728 = vpop.permute.xlu0 %2727
    %v2733 = vsel %vm554, %v2585, %v2722
    %v2734 = vsel %vm554, %v2586, %v2724
    %v2735 = vsel %vm554, %v2587, %v2726
    %v2736 = vsel %vm554, %v2588, %v2728
    %v2737 = vpack.c.bf16 %v2574, %v2573
    %v2738 = vpack.c.bf16 %v2734, %v2733
    %v2739 = vpack.c.bf16 %v2576, %v2575
    %v2740 = vpack.c.bf16 %v2736, %v2735
    %v2742 = vsel %vm2289, %v2738, 0
    %v2745 = vsel %vm2289, %v2740, 0
    %2747 = vmatprep.subr.bf16.mxu0 0
    %2748 = vmatpush1.bf16.msra.mxu0 %v2265
    %2749 = vmatprep.subr.bf16.mxu0 0
    %2750 = vmatpush1.bf16.msra.mxu0 %v2264
    %2751 = vmatprep.subr.bf16.mxu0 0
    %2752 = vmatpush1.bf16.msra.mxu0 %v2263
    %2753 = vmatprep.subr.bf16.mxu0 0
    %2754 = vmatpush1.bf16.msra.mxu0 %v2262
    %2755 = vmatprep.subr.bf16.mxu0 0
    %2756 = vmatpush1.bf16.msra.mxu0 %v2261
    %2757 = vmatprep.subr.bf16.mxu0 0
    %2758 = vmatpush1.bf16.msra.mxu0 %v2260
    %2759 = vmatprep.subr.bf16.mxu0 0
    %2760 = vmatpush1.bf16.msra.mxu0 %v2259
    %2761 = vmatprep.subr.bf16.mxu0 0
    %2762 = vmatpush1.bf16.msra.mxu0 %v2258
    %2763 = vmatprep.subr.bf16.mxu0 0
    %2764 = vmatpush2.bf16.msra.mxu0 %v2298
    %2765 = vmatprep.subr.bf16.mxu0 0
    %2766 = vmatpush2.bf16.msra.mxu0 %v2272
    %2767 = vmatprep.subr.bf16.mxu0 0
    %2768 = vmatpush2.bf16.msra.mxu0 %v2271
    %2769 = vmatprep.subr.bf16.mxu0 0
    %2770 = vmatpush2.bf16.msra.mxu0 %v2270
    %2771 = vmatprep.subr.bf16.mxu0 0
    %2772 = vmatpush2.bf16.msra.mxu0 %v2269
    %2773 = vmatprep.subr.bf16.mxu0 0
    %2774 = vmatpush2.bf16.msra.mxu0 %v2268
    %2775 = vmatprep.subr.bf16.mxu0 0
    %2776 = vmatpush2.bf16.msra.mxu0 %v2267
    %2777 = vmatprep.subr.bf16.mxu0 0
    %2778 = vmatpush2.bf16.msra.mxu0 %v2266
    %2779 = vmatprep.mubr.bf16.mxu0 %v2742
    %2780 = vmatmul.mubr.bf16.gmra.mxu0 %v2737
    %v2781 = vpop.f32.mrf.mxu0
    %v2782 = vadd.f32 0.0, %v2781
    %v2783 = vpop.f32.mrf.mxu0
    %v2784 = vpop.f32.mrf.mxu0
    %v2785 = vadd.f32 0.0, %v2784
    %v2786 = vpop.f32.mrf.mxu0
    %2787 = vmatprep.mubr.bf16.mxu0 %v2745
    %2788 = vmatmul.mubr.bf16.gmra.mxu0 %v2739
    %v2789 = vpop.f32.mrf.mxu0
    %v2790 = vadd.f32 0.0, %v2789
    %v2791 = vpop.f32.mrf.mxu0
    %v2792 = vpop.f32.mrf.mxu0
    %v2793 = vadd.f32 0.0, %v2792
    %v2794 = vpop.f32.mrf.mxu0
    %2795 = vdwg.mxu0
    %v2796 = vmax.f32 %v2335, %v2782
    %v2797 = vmax.f32 %v2338, %v2785
    %v2798 = vmax.f32 %v2343, %v2790
    %v2799 = vmax.f32 %v2346, %v2793
    %2800 = vrot.lane.b32.xlu0 %v1558, 10
    %v2801 = vpop.permute.xlu0 %2800
    %2802 = vrot.lane.b32.xlu0 %v1715, 10
    %v2803 = vpop.permute.xlu0 %2802
    %2804 = vrot.lane.b32.xlu0 %v1561, 10
    %v2805 = vpop.permute.xlu0 %2804
    %2806 = vrot.lane.b32.xlu0 %v1721, 10
    %v2807 = vpop.permute.xlu0 %2806
    %2812 = vrot.lane.b32.xlu0 %v1678, 20
    %v2813 = vpop.permute.xlu0 %2812
    %2814 = vrot.lane.b32.xlu0 %v1681, 20
    %v2815 = vpop.permute.xlu0 %2814
    %2816 = vrot.lane.b32.xlu0 %v1685, 20
    %v2817 = vpop.permute.xlu0 %2816
    %2818 = vrot.lane.b32.xlu0 %v1688, 20
    %v2819 = vpop.permute.xlu0 %2818
    %2824 = vrot.lane.b32.xlu0 %v1726, 30
    %v2825 = vpop.permute.xlu0 %2824
    %2826 = vrot.lane.b32.xlu0 %v1729, 30
    %v2827 = vpop.permute.xlu0 %2826
    %2828 = vrot.lane.b32.xlu0 %v1733, 30
    %v2829 = vpop.permute.xlu0 %2828
    %2830 = vrot.lane.b32.xlu0 %v1736, 30
    %v2831 = vpop.permute.xlu0 %2830
    %2836 = vrot.lane.b32.xlu0 %v1690, 40
    %v2837 = vpop.permute.xlu0 %2836
    %2838 = vrot.lane.b32.xlu0 %v1515, 40
    %v2839 = vpop.permute.xlu0 %2838
    %2840 = vrot.lane.b32.xlu0 %v1692, 40
    %v2841 = vpop.permute.xlu0 %2840
    %2842 = vrot.lane.b32.xlu0 %v1518, 40
    %v2843 = vpop.permute.xlu0 %2842
    %2848 = vrot.lane.b32.xlu0 %v1572, 50
    %v2849 = vpop.permute.xlu0 %2848
    %2850 = vrot.lane.b32.xlu0 %v1426, 50
    %v2851 = vpop.permute.xlu0 %2850
    %2852 = vrot.lane.b32.xlu0 %v1578, 50
    %v2853 = vpop.permute.xlu0 %2852
    %2854 = vrot.lane.b32.xlu0 %v1429, 50
    %v2855 = vpop.permute.xlu0 %2854
    %2860 = vrot.lane.b32.xlu0 %v1622, 60
    %v2861 = vpop.permute.xlu0 %2860
    %2862 = vrot.lane.b32.xlu0 %v1471, 60
    %v2863 = vpop.permute.xlu0 %2862
    %2864 = vrot.lane.b32.xlu0 %v1628, 60
    %v2865 = vpop.permute.xlu0 %2864
    %2866 = vrot.lane.b32.xlu0 %v1474, 60
    %v2867 = vpop.permute.xlu0 %2866
    %2872 = vrot.lane.b32.xlu0 %v1588, 70
    %v2873 = vpop.permute.xlu0 %2872
    %2874 = vrot.lane.b32.xlu0 %v1592, 70
    %v2875 = vpop.permute.xlu0 %2874
    %2876 = vrot.lane.b32.xlu0 %v1595, 70
    %v2877 = vpop.permute.xlu0 %2876
    %2878 = vrot.lane.b32.xlu0 %v1604, 70
    %v2879 = vpop.permute.xlu0 %2878
    %2884 = vrot.lane.b32.xlu0 %v1636, 80
    %v2885 = vpop.permute.xlu0 %2884
    %2886 = vrot.lane.b32.xlu0 %v1640, 80
    %v2887 = vpop.permute.xlu0 %2886
    %2888 = vrot.lane.b32.xlu0 %v1643, 80
    %v2889 = vpop.permute.xlu0 %2888
    %2890 = vrot.lane.b32.xlu0 %v1652, 80
    %v2891 = vpop.permute.xlu0 %2890
    %2896 = vrot.lane.b32.xlu0 %v1425, 90
    %v2897 = vpop.permute.xlu0 %2896
    %2898 = vrot.lane.b32.xlu0 %v1599, 90
    %v2899 = vpop.permute.xlu0 %2898
    %2900 = vrot.lane.b32.xlu0 %v1428, 90
    %v2901 = vpop.permute.xlu0 %2900
    %2902 = vrot.lane.b32.xlu0 %v1607, 90
    %v2903 = vpop.permute.xlu0 %2902
    %2908 = vrot.lane.b32.xlu0 %v1667, 100
    %v2909 = vpop.permute.xlu0 %2908
    %2910 = vrot.lane.b32.xlu0 %v1516, 100
    %v2911 = vpop.permute.xlu0 %2910
    %2912 = vrot.lane.b32.xlu0 %v1673, 100
    %v2913 = vpop.permute.xlu0 %2912
    %2914 = vrot.lane.b32.xlu0 %v1519, 100
    %v2915 = vpop.permute.xlu0 %2914
    %2920 = vrot.lane.b32.xlu0 %v1715, 110
    %v2921 = vpop.permute.xlu0 %2920
    %2922 = vrot.lane.b32.xlu0 %v1561, 110
    %v2923 = vpop.permute.xlu0 %2922
    %2924 = vrot.lane.b32.xlu0 %v1721, 110
    %v2925 = vpop.permute.xlu0 %2924
    %2926 = vrot.lane.b32.xlu0 %v1564, 110
    %v2927 = vpop.permute.xlu0 %2926
    %2932 = vrot.lane.b32.xlu0 %v1681, 120
    %v2933 = vpop.permute.xlu0 %2932
    %2934 = vrot.lane.b32.xlu0 %v1685, 120
    %v2935 = vpop.permute.xlu0 %2934
    %2936 = vrot.lane.b32.xlu0 %v1688, 120
    %v2937 = vpop.permute.xlu0 %2936
    %2938 = vrot.lane.b32.xlu0 %v1700, 120
    %v2939 = vpop.permute.xlu0 %2938
    %2944 = vrot.lane.b32.xlu0 %v1729, 2
    %v2945 = vpop.permute.xlu0 %2944
    %2946 = vrot.lane.b32.xlu0 %v1733, 2
    %v2947 = vpop.permute.xlu0 %2946
    %2948 = vrot.lane.b32.xlu0 %v1736, 2
    %v2949 = vpop.permute.xlu0 %2948
    %2950 = vrot.lane.b32.xlu0 %v1745, 2
    %v2951 = vpop.permute.xlu0 %2950
    %2956 = vrot.lane.b32.xlu0 %v1515, 12
    %v2957 = vpop.permute.xlu0 %2956
    %2958 = vrot.lane.b32.xlu0 %v1692, 12
    %v2959 = vpop.permute.xlu0 %2958
    %2960 = vrot.lane.b32.xlu0 %v1518, 12
    %v2961 = vpop.permute.xlu0 %2960
    %2962 = vrot.lane.b32.xlu0 %v1704, 12
    %v2963 = vpop.permute.xlu0 %2962
    %2968 = vrot.lane.b32.xlu0 %v1426, 22
    %v2969 = vpop.permute.xlu0 %2968
    %2970 = vrot.lane.b32.xlu0 %v1578, 22
    %v2971 = vpop.permute.xlu0 %2970
    %2972 = vrot.lane.b32.xlu0 %v1429, 22
    %v2973 = vpop.permute.xlu0 %2972
    %2974 = vrot.lane.b32.xlu0 %v1610, 22
    %v2975 = vpop.permute.xlu0 %2974
    %v2980 = vsel %vm1935, %v1513, %v2801
    %v2981 = vsel %vm1935, %v1667, %v2803
    %v2982 = vsel %vm1935, %v1516, %v2805
    %v2983 = vsel %vm1935, %v1673, %v2807
    %v2984 = vsel %vm1940, %v2980, %v2813
    %v2985 = vsel %vm1940, %v2981, %v2815
    %v2986 = vsel %vm1940, %v2982, %v2817
    %v2987 = vsel %vm1940, %v2983, %v2819
    %v2988 = vsel %vm1945, %v2984, %v2825
    %v2989 = vsel %vm1945, %v2985, %v2827
    %v2990 = vsel %vm1945, %v2986, %v2829
    %v2991 = vsel %vm1945, %v2987, %v2831
    %v2992 = vsel %vm1950, %v2988, %v2837
    %v2993 = vsel %vm1950, %v2989, %v2839
    %v2994 = vsel %vm1950, %v2990, %v2841
    %v2995 = vsel %vm1950, %v2991, %v2843
    %v2996 = vsel %vm1955, %v2992, %v2849
    %v2997 = vsel %vm1955, %v2993, %v2851
    %v2998 = vsel %vm1955, %v2994, %v2853
    %v2999 = vsel %vm1955, %v2995, %v2855
    %v3000 = vsel %vm1960, %v2996, %v2861
    %v3001 = vsel %vm1960, %v2997, %v2863
    %v3002 = vsel %vm1960, %v2998, %v2865
    %v3003 = vsel %vm1960, %v2999, %v2867
    %v3004 = vsel %vm1965, %v3000, %v2873
    %v3005 = vsel %vm1965, %v3001, %v2875
    %v3006 = vsel %vm1965, %v3002, %v2877
    %v3007 = vsel %vm1965, %v3003, %v2879
    %v3008 = vsel %vm1970, %v3004, %v2885
    %v3009 = vsel %vm1970, %v3005, %v2887
    %v3010 = vsel %vm1970, %v3006, %v2889
    %v3011 = vsel %vm1970, %v3007, %v2891
    %v3012 = vsel %vm1975, %v3008, %v2897
    %v3013 = vsel %vm1975, %v3009, %v2899
    %v3014 = vsel %vm1975, %v3010, %v2901
    %v3015 = vsel %vm1975, %v3011, %v2903
    %v3016 = vsel %vm1980, %v3012, %v2909
    %v3017 = vsel %vm1980, %v3013, %v2911
    %v3018 = vsel %vm1980, %v3014, %v2913
    %v3019 = vsel %vm1980, %v3015, %v2915
    %v3020 = vsel %vm1985, %v3016, %v2921
    %v3021 = vsel %vm1985, %v3017, %v2923
    %v3022 = vsel %vm1985, %v3018, %v2925
    %v3023 = vsel %vm1985, %v3019, %v2927
    %v3024 = vsel %vm1990, %v3020, %v2933
    %v3025 = vsel %vm1990, %v3021, %v2935
    %v3026 = vsel %vm1990, %v3022, %v2937
    %v3027 = vsel %vm1990, %v3023, %v2939
    %v3028 = vsel %vm1995, %v2933, %v2945
    %v3029 = vsel %vm1995, %v2935, %v2947
    %v3030 = vsel %vm1995, %v2937, %v2949
    %v3031 = vsel %vm1995, %v2939, %v2951
    %v3032 = vsel %vm2000, %v3028, %v2957
    %v3033 = vsel %vm2000, %v3029, %v2959
    %v3034 = vsel %vm2000, %v3030, %v2961
    %v3035 = vsel %vm2000, %v3031, %v2963
    %v3036 = vsel %vm2005, %v3032, %v2969
    %v3037 = vsel %vm2005, %v3033, %v2971
    %v3038 = vsel %vm2005, %v3034, %v2973
    %v3039 = vsel %vm2005, %v3035, %v2975
    %3040 = vrot.lane.b32.xlu0 %v1604, 10
    %v3041 = vpop.permute.xlu0 %3040
    %3042 = vrot.lane.b32.xlu0 %v1616, 10
    %v3043 = vpop.permute.xlu0 %3042
    %3046 = vrot.lane.b32.xlu0 %v1652, 20
    %v3047 = vpop.permute.xlu0 %3046
    %3048 = vrot.lane.b32.xlu0 %v1662, 20
    %v3049 = vpop.permute.xlu0 %3048
    %3052 = vrot.lane.b32.xlu0 %v1607, 30
    %v3053 = vpop.permute.xlu0 %3052
    %3054 = vrot.lane.b32.xlu0 %v1431, 30
    %v3055 = vpop.permute.xlu0 %3054
    %3058 = vrot.lane.b32.xlu0 %v1516, 40
    %v3059 = vpop.permute.xlu0 %3058
    %3060 = vrot.lane.b32.xlu0 %v1673, 40
    %v3061 = vpop.permute.xlu0 %3060
    %3062 = vrot.lane.b32.xlu0 %v1519, 40
    %v3063 = vpop.permute.xlu0 %3062
    %3064 = vrot.lane.b32.xlu0 %v1707, 40
    %v3065 = vpop.permute.xlu0 %3064
    %3070 = vrot.lane.b32.xlu0 %v1564, 50
    %v3071 = vpop.permute.xlu0 %3070
    %3072 = vrot.lane.b32.xlu0 %v1751, 50
    %v3073 = vpop.permute.xlu0 %3072
    %3076 = vrot.lane.b32.xlu0 %v1700, 60
    %v3077 = vpop.permute.xlu0 %3076
    %3078 = vrot.lane.b32.xlu0 %v1710, 60
    %v3079 = vpop.permute.xlu0 %3078
    %3082 = vrot.lane.b32.xlu0 %v1745, 70
    %v3083 = vpop.permute.xlu0 %3082
    %3084 = vrot.lane.b32.xlu0 %v1754, 70
    %v3085 = vpop.permute.xlu0 %3084
    %3088 = vrot.lane.b32.xlu0 %v1704, 80
    %v3089 = vpop.permute.xlu0 %3088
    %3090 = vrot.lane.b32.xlu0 %v1521, 80
    %v3091 = vpop.permute.xlu0 %3090
    %v3094 = vsel %vm1935, %v1474, %v3041
    %v3095 = vsel %vm1935, %v1658, %v3043
    %v3096 = vsel %vm1940, %v3094, %v3047
    %v3097 = vsel %vm1940, %v3095, %v3049
    %v3098 = vsel %vm1945, %v3096, %v3053
    %v3099 = vsel %vm1945, %v3097, %v3055
    %v3100 = vsel %vm1950, %v2539, %v3059
    %v3101 = vsel %vm1950, %v2540, %v3061
    %v3102 = vsel %vm1950, %v3098, %v3063
    %v3103 = vsel %vm1950, %v3099, %v3065
    %v3104 = vsel %vm1955, %v3100, %v2402
    %v3105 = vsel %vm1955, %v3101, %v2404
    %v3106 = vsel %vm1955, %v3102, %v3071
    %v3107 = vsel %vm1955, %v3103, %v3073
    %v3108 = vsel %vm1960, %v3104, %v2414
    %v3109 = vsel %vm1960, %v3105, %v2416
    %v3110 = vsel %vm1960, %v3106, %v3077
    %v3111 = vsel %vm1960, %v3107, %v3079
    %v3112 = vsel %vm1965, %v3108, %v2426
    %v3113 = vsel %vm1965, %v3109, %v2428
    %v3114 = vsel %vm1965, %v3110, %v3083
    %v3115 = vsel %vm1965, %v3111, %v3085
    %v3116 = vsel %vm1970, %v3112, %v2438
    %v3117 = vsel %vm1970, %v3113, %v2440
    %v3118 = vsel %vm1970, %v3114, %v3089
    %v3119 = vsel %vm1970, %v3115, %v3091
    %3124 = vrot.lane.b32.xlu0 %v3116, 32
    %v3125 = vpop.permute.xlu0 %3124
    %3126 = vrot.lane.b32.xlu0 %v3117, 32
    %v3127 = vpop.permute.xlu0 %3126
    %3128 = vrot.lane.b32.xlu0 %v3118, 32
    %v3129 = vpop.permute.xlu0 %3128
    %3130 = vrot.lane.b32.xlu0 %v3119, 32
    %v3131 = vpop.permute.xlu0 %3130
    %v3136 = vsel %vm554, %v3036, %v3125
    %v3137 = vsel %vm554, %v3037, %v3127
    %v3138 = vsel %vm554, %v3038, %v3129
    %v3139 = vsel %vm554, %v3039, %v3131
    %v3140 = vpack.c.bf16 %v3025, %v3024
    %v3141 = vpack.c.bf16 %v3137, %v3136
    %v3142 = vpack.c.bf16 %v3027, %v3026
    %v3143 = vpack.c.bf16 %v3139, %v3138
    %v3145 = vsel %vm2289, %v3141, 0
    %v3148 = vsel %vm2289, %v3143, 0
    %3150 = vmatprep.subr.bf16.mxu0 0
    %3151 = vmatpush1.bf16.msra.mxu0 %v2265
    %3152 = vmatprep.subr.bf16.mxu0 0
    %3153 = vmatpush1.bf16.msra.mxu0 %v2264
    %3154 = vmatprep.subr.bf16.mxu0 0
    %3155 = vmatpush1.bf16.msra.mxu0 %v2263
    %3156 = vmatprep.subr.bf16.mxu0 0
    %3157 = vmatpush1.bf16.msra.mxu0 %v2262
    %3158 = vmatprep.subr.bf16.mxu0 0
    %3159 = vmatpush1.bf16.msra.mxu0 %v2261
    %3160 = vmatprep.subr.bf16.mxu0 0
    %3161 = vmatpush1.bf16.msra.mxu0 %v2260
    %3162 = vmatprep.subr.bf16.mxu0 0
    %3163 = vmatpush1.bf16.msra.mxu0 %v2259
    %3164 = vmatprep.subr.bf16.mxu0 0
    %3165 = vmatpush1.bf16.msra.mxu0 %v2258
    %3166 = vmatprep.subr.bf16.mxu0 0
    %3167 = vmatpush2.bf16.msra.mxu0 %v2298
    %3168 = vmatprep.subr.bf16.mxu0 0
    %3169 = vmatpush2.bf16.msra.mxu0 %v2272
    %3170 = vmatprep.subr.bf16.mxu0 0
    %3171 = vmatpush2.bf16.msra.mxu0 %v2271
    %3172 = vmatprep.subr.bf16.mxu0 0
    %3173 = vmatpush2.bf16.msra.mxu0 %v2270
    %3174 = vmatprep.subr.bf16.mxu0 0
    %3175 = vmatpush2.bf16.msra.mxu0 %v2269
    %3176 = vmatprep.subr.bf16.mxu0 0
    %3177 = vmatpush2.bf16.msra.mxu0 %v2268
    %3178 = vmatprep.subr.bf16.mxu0 0
    %3179 = vmatpush2.bf16.msra.mxu0 %v2267
    %3180 = vmatprep.subr.bf16.mxu0 0
    %3181 = vmatpush2.bf16.msra.mxu0 %v2266
    %3182 = vmatprep.mubr.bf16.mxu0 %v3145
    %3183 = vmatmul.mubr.bf16.gmra.mxu0 %v3140
    %v3184 = vpop.f32.mrf.mxu0
    %v3185 = vadd.f32 0.0, %v3184
    %v3186 = vpop.f32.mrf.mxu0
    %v3187 = vpop.f32.mrf.mxu0
    %v3188 = vadd.f32 0.0, %v3187
    %v3189 = vpop.f32.mrf.mxu0
    %3190 = vmatprep.mubr.bf16.mxu0 %v3148
    %3191 = vmatmul.mubr.bf16.gmra.mxu0 %v3142
    %v3192 = vpop.f32.mrf.mxu0
    %v3193 = vadd.f32 0.0, %v3192
    %v3194 = vpop.f32.mrf.mxu0
    %v3195 = vpop.f32.mrf.mxu0
    %v3196 = vadd.f32 0.0, %v3195
    %v3197 = vpop.f32.mrf.mxu0
    %3198 = vdwg.mxu0
    %v3199 = vmax.f32 %v2796, %v3185
    %v3200 = vmax.f32 %v2797, %v3188
    %v3201 = vmax.f32 %v2798, %v3193
    %v3202 = vmax.f32 %v2799, %v3196
    %3203 = vrot.lane.b32.xlu0 %v1678, 10
    %v3204 = vpop.permute.xlu0 %3203
    %3206 = vrot.lane.b32.xlu0 %v1726, 20
    %v3207 = vpop.permute.xlu0 %3206
    %3209 = vrot.lane.b32.xlu0 %v1690, 30
    %v3210 = vpop.permute.xlu0 %3209
    %3212 = vrot.lane.b32.xlu0 %v1738, 40
    %v3213 = vpop.permute.xlu0 %3212
    %3214 = vrot.lane.b32.xlu0 %v1560, 40
    %v3215 = vpop.permute.xlu0 %3214
    %3216 = vrot.lane.b32.xlu0 %v1740, 40
    %v3217 = vpop.permute.xlu0 %3216
    %3218 = vrot.lane.b32.xlu0 %v1563, 40
    %v3219 = vpop.permute.xlu0 %3218
    %3224 = vrot.lane.b32.xlu0 %v1622, 50
    %v3225 = vpop.permute.xlu0 %3224
    %3227 = vrot.lane.b32.xlu0 %v1588, 60
    %v3228 = vpop.permute.xlu0 %3227
    %3230 = vrot.lane.b32.xlu0 %v1636, 70
    %v3231 = vpop.permute.xlu0 %3230
    %3233 = vrot.lane.b32.xlu0 %v1425, 80
    %v3234 = vpop.permute.xlu0 %3233
    %3236 = vrot.lane.b32.xlu0 %v1470, 90
    %v3237 = vpop.permute.xlu0 %3236
    %3238 = vrot.lane.b32.xlu0 %v1647, 90
    %v3239 = vpop.permute.xlu0 %3238
    %3240 = vrot.lane.b32.xlu0 %v1473, 90
    %v3241 = vpop.permute.xlu0 %3240
    %3242 = vrot.lane.b32.xlu0 %v1655, 90
    %v3243 = vpop.permute.xlu0 %3242
    %3248 = vrot.lane.b32.xlu0 %v1715, 100
    %v3249 = vpop.permute.xlu0 %3248
    %3250 = vrot.lane.b32.xlu0 %v1561, 100
    %v3251 = vpop.permute.xlu0 %3250
    %3252 = vrot.lane.b32.xlu0 %v1721, 100
    %v3253 = vpop.permute.xlu0 %3252
    %3254 = vrot.lane.b32.xlu0 %v1564, 100
    %v3255 = vpop.permute.xlu0 %3254
    %3260 = vrot.lane.b32.xlu0 %v1681, 110
    %v3261 = vpop.permute.xlu0 %3260
    %3262 = vrot.lane.b32.xlu0 %v1685, 110
    %v3263 = vpop.permute.xlu0 %3262
    %3264 = vrot.lane.b32.xlu0 %v1688, 110
    %v3265 = vpop.permute.xlu0 %3264
    %3266 = vrot.lane.b32.xlu0 %v1700, 110
    %v3267 = vpop.permute.xlu0 %3266
    %3272 = vrot.lane.b32.xlu0 %v1729, 120
    %v3273 = vpop.permute.xlu0 %3272
    %3274 = vrot.lane.b32.xlu0 %v1733, 120
    %v3275 = vpop.permute.xlu0 %3274
    %3276 = vrot.lane.b32.xlu0 %v1736, 120
    %v3277 = vpop.permute.xlu0 %3276
    %3278 = vrot.lane.b32.xlu0 %v1745, 120
    %v3279 = vpop.permute.xlu0 %3278
    %3284 = vrot.lane.b32.xlu0 %v1515, 2
    %v3285 = vpop.permute.xlu0 %3284
    %3286 = vrot.lane.b32.xlu0 %v1692, 2
    %v3287 = vpop.permute.xlu0 %3286
    %3288 = vrot.lane.b32.xlu0 %v1518, 2
    %v3289 = vpop.permute.xlu0 %3288
    %3290 = vrot.lane.b32.xlu0 %v1704, 2
    %v3291 = vpop.permute.xlu0 %3290
    %3296 = vrot.lane.b32.xlu0 %v1560, 12
    %v3297 = vpop.permute.xlu0 %3296
    %3298 = vrot.lane.b32.xlu0 %v1740, 12
    %v3299 = vpop.permute.xlu0 %3298
    %3300 = vrot.lane.b32.xlu0 %v1563, 12
    %v3301 = vpop.permute.xlu0 %3300
    %3302 = vrot.lane.b32.xlu0 %v1748, 12
    %v3303 = vpop.permute.xlu0 %3302
    %3308 = vrot.lane.b32.xlu0 %v1471, 22
    %v3309 = vpop.permute.xlu0 %3308
    %3310 = vrot.lane.b32.xlu0 %v1628, 22
    %v3311 = vpop.permute.xlu0 %3310
    %3312 = vrot.lane.b32.xlu0 %v1474, 22
    %v3313 = vpop.permute.xlu0 %3312
    %3314 = vrot.lane.b32.xlu0 %v1658, 22
    %v3315 = vpop.permute.xlu0 %3314
    %v3320 = vsel %vm1935, %v1558, %v3204
    %v3321 = vsel %vm1940, %v3320, %v3207
    %v3322 = vsel %vm1945, %v3321, %v3210
    %v3323 = vsel %vm1950, %v3322, %v3213
    %v3324 = vsel %vm1950, %v2114, %v3215
    %v3325 = vsel %vm1950, %v2115, %v3217
    %v3326 = vsel %vm1950, %v2116, %v3219
    %v3327 = vsel %vm1955, %v3323, %v3225
    %v3328 = vsel %vm1955, %v3324, %v2059
    %v3329 = vsel %vm1955, %v3325, %v2061
    %v3330 = vsel %vm1955, %v3326, %v2063
    %v3331 = vsel %vm1960, %v3327, %v3228
    %v3332 = vsel %vm1960, %v3328, %v2071
    %v3333 = vsel %vm1960, %v3329, %v2073
    %v3334 = vsel %vm1960, %v3330, %v2075
    %v3335 = vsel %vm1965, %v3331, %v3231
    %v3336 = vsel %vm1965, %v3332, %v2083
    %v3337 = vsel %vm1965, %v3333, %v2085
    %v3338 = vsel %vm1965, %v3334, %v2087
    %v3339 = vsel %vm1970, %v3335, %v3234
    %v3340 = vsel %vm1970, %v3336, %v2095
    %v3341 = vsel %vm1970, %v3337, %v2097
    %v3342 = vsel %vm1970, %v3338, %v2099
    %v3343 = vsel %vm1975, %v3339, %v3237
    %v3344 = vsel %vm1975, %v3340, %v3239
    %v3345 = vsel %vm1975, %v3341, %v3241
    %v3346 = vsel %vm1975, %v3342, %v3243
    %v3347 = vsel %vm1980, %v3343, %v3249
    %v3348 = vsel %vm1980, %v3344, %v3251
    %v3349 = vsel %vm1980, %v3345, %v3253
    %v3350 = vsel %vm1980, %v3346, %v3255
    %v3351 = vsel %vm1985, %v3347, %v3261
    %v3352 = vsel %vm1985, %v3348, %v3263
    %v3353 = vsel %vm1985, %v3349, %v3265
    %v3354 = vsel %vm1985, %v3350, %v3267
    %v3355 = vsel %vm1990, %v3351, %v3273
    %v3356 = vsel %vm1990, %v3352, %v3275
    %v3357 = vsel %vm1990, %v3353, %v3277
    %v3358 = vsel %vm1990, %v3354, %v3279
    %v3359 = vsel %vm1995, %v3273, %v3285
    %v3360 = vsel %vm1995, %v3275, %v3287
    %v3361 = vsel %vm1995, %v3277, %v3289
    %v3362 = vsel %vm1995, %v3279, %v3291
    %v3363 = vsel %vm2000, %v3359, %v3297
    %v3364 = vsel %vm2000, %v3360, %v3299
    %v3365 = vsel %vm2000, %v3361, %v3301
    %v3366 = vsel %vm2000, %v3362, %v3303
    %v3367 = vsel %vm2005, %v3363, %v3309
    %v3368 = vsel %vm2005, %v3364, %v3311
    %v3369 = vsel %vm2005, %v3365, %v3313
    %v3370 = vsel %vm2005, %v3366, %v3315
    %3371 = vrot.lane.b32.xlu0 %v1640, 10
    %v3372 = vpop.permute.xlu0 %3371
    %3373 = vrot.lane.b32.xlu0 %v1643, 10
    %v3374 = vpop.permute.xlu0 %3373
    %3375 = vrot.lane.b32.xlu0 %v1652, 10
    %v3376 = vpop.permute.xlu0 %3375
    %3377 = vrot.lane.b32.xlu0 %v1662, 10
    %v3378 = vpop.permute.xlu0 %3377
    %3383 = vrot.lane.b32.xlu0 %v1599, 20
    %v3384 = vpop.permute.xlu0 %3383
    %3385 = vrot.lane.b32.xlu0 %v1428, 20
    %v3386 = vpop.permute.xlu0 %3385
    %3387 = vrot.lane.b32.xlu0 %v1607, 20
    %v3388 = vpop.permute.xlu0 %3387
    %3389 = vrot.lane.b32.xlu0 %v1431, 20
    %v3390 = vpop.permute.xlu0 %3389
    %3395 = vrot.lane.b32.xlu0 %v1647, 30
    %v3396 = vpop.permute.xlu0 %3395
    %3397 = vrot.lane.b32.xlu0 %v1473, 30
    %v3398 = vpop.permute.xlu0 %3397
    %3399 = vrot.lane.b32.xlu0 %v1655, 30
    %v3400 = vpop.permute.xlu0 %3399
    %3401 = vrot.lane.b32.xlu0 %v1476, 30
    %v3402 = vpop.permute.xlu0 %3401
    %3407 = vrot.lane.b32.xlu0 %v1561, 40
    %v3408 = vpop.permute.xlu0 %3407
    %3409 = vrot.lane.b32.xlu0 %v1721, 40
    %v3410 = vpop.permute.xlu0 %3409
    %3411 = vrot.lane.b32.xlu0 %v1564, 40
    %v3412 = vpop.permute.xlu0 %3411
    %3413 = vrot.lane.b32.xlu0 %v1751, 40
    %v3414 = vpop.permute.xlu0 %3413
    %3419 = vrot.lane.b32.xlu0 %v1685, 50
    %v3420 = vpop.permute.xlu0 %3419
    %3421 = vrot.lane.b32.xlu0 %v1688, 50
    %v3422 = vpop.permute.xlu0 %3421
    %3423 = vrot.lane.b32.xlu0 %v1700, 50
    %v3424 = vpop.permute.xlu0 %3423
    %3425 = vrot.lane.b32.xlu0 %v1710, 50
    %v3426 = vpop.permute.xlu0 %3425
    %3431 = vrot.lane.b32.xlu0 %v1733, 60
    %v3432 = vpop.permute.xlu0 %3431
    %3433 = vrot.lane.b32.xlu0 %v1736, 60
    %v3434 = vpop.permute.xlu0 %3433
    %3435 = vrot.lane.b32.xlu0 %v1745, 60
    %v3436 = vpop.permute.xlu0 %3435
    %3437 = vrot.lane.b32.xlu0 %v1754, 60
    %v3438 = vpop.permute.xlu0 %3437
    %3443 = vrot.lane.b32.xlu0 %v1692, 70
    %v3444 = vpop.permute.xlu0 %3443
    %3445 = vrot.lane.b32.xlu0 %v1518, 70
    %v3446 = vpop.permute.xlu0 %3445
    %3447 = vrot.lane.b32.xlu0 %v1704, 70
    %v3448 = vpop.permute.xlu0 %3447
    %3449 = vrot.lane.b32.xlu0 %v1521, 70
    %v3450 = vpop.permute.xlu0 %3449
    %3455 = vrot.lane.b32.xlu0 %v1740, 80
    %v3456 = vpop.permute.xlu0 %3455
    %3457 = vrot.lane.b32.xlu0 %v1563, 80
    %v3458 = vpop.permute.xlu0 %3457
    %3459 = vrot.lane.b32.xlu0 %v1748, 80
    %v3460 = vpop.permute.xlu0 %3459
    %3461 = vrot.lane.b32.xlu0 %v1566, 80
    %v3462 = vpop.permute.xlu0 %3461
    %v3467 = vsel %vm1935, %v1592, %v3372
    %v3468 = vsel %vm1935, %v1595, %v3374
    %v3469 = vsel %vm1935, %v1604, %v3376
    %v3470 = vsel %vm1935, %v1616, %v3378
    %v3471 = vsel %vm1940, %v3467, %v3384
    %v3472 = vsel %vm1940, %v3468, %v3386
    %v3473 = vsel %vm1940, %v3469, %v3388
    %v3474 = vsel %vm1940, %v3470, %v3390
    %v3475 = vsel %vm1945, %v3471, %v3396
    %v3476 = vsel %vm1945, %v3472, %v3398
    %v3477 = vsel %vm1945, %v3473, %v3400
    %v3478 = vsel %vm1945, %v3474, %v3402
    %v3479 = vsel %vm1950, %v3475, %v3408
    %v3480 = vsel %vm1950, %v3476, %v3410
    %v3481 = vsel %vm1950, %v3477, %v3412
    %v3482 = vsel %vm1950, %v3478, %v3414
    %v3483 = vsel %vm1955, %v3479, %v3420
    %v3484 = vsel %vm1955, %v3480, %v3422
    %v3485 = vsel %vm1955, %v3481, %v3424
    %v3486 = vsel %vm1955, %v3482, %v3426
    %v3487 = vsel %vm1960, %v3483, %v3432
    %v3488 = vsel %vm1960, %v3484, %v3434
    %v3489 = vsel %vm1960, %v3485, %v3436
    %v3490 = vsel %vm1960, %v3486, %v3438
    %v3491 = vsel %vm1965, %v3487, %v3444
    %v3492 = vsel %vm1965, %v3488, %v3446
    %v3493 = vsel %vm1965, %v3489, %v3448
    %v3494 = vsel %vm1965, %v3490, %v3450
    %v3495 = vsel %vm1970, %v3491, %v3456
    %v3496 = vsel %vm1970, %v3492, %v3458
    %v3497 = vsel %vm1970, %v3493, %v3460
    %v3498 = vsel %vm1970, %v3494, %v3462
    %3503 = vrot.lane.b32.xlu0 %v3495, 32
    %v3504 = vpop.permute.xlu0 %3503
    %3505 = vrot.lane.b32.xlu0 %v3496, 32
    %v3506 = vpop.permute.xlu0 %3505
    %3507 = vrot.lane.b32.xlu0 %v3497, 32
    %v3508 = vpop.permute.xlu0 %3507
    %3509 = vrot.lane.b32.xlu0 %v3498, 32
    %v3510 = vpop.permute.xlu0 %3509
    %v3515 = vsel %vm554, %v3367, %v3504
    %v3516 = vsel %vm554, %v3368, %v3506
    %v3517 = vsel %vm554, %v3369, %v3508
    %v3518 = vsel %vm554, %v3370, %v3510
    %v3519 = vpack.c.bf16 %v3356, %v3355
    %v3520 = vpack.c.bf16 %v3516, %v3515
    %v3521 = vpack.c.bf16 %v3358, %v3357
    %v3522 = vpack.c.bf16 %v3518, %v3517
    %v3524 = vsel %vm2289, %v3520, 0
    %v3527 = vsel %vm2289, %v3522, 0
    %3529 = vmatprep.subr.bf16.mxu0 0
    %3530 = vmatpush1.bf16.msra.mxu0 %v2265
    %3531 = vmatprep.subr.bf16.mxu0 0
    %3532 = vmatpush1.bf16.msra.mxu0 %v2264
    %3533 = vmatprep.subr.bf16.mxu0 0
    %3534 = vmatpush1.bf16.msra.mxu0 %v2263
    %3535 = vmatprep.subr.bf16.mxu0 0
    %3536 = vmatpush1.bf16.msra.mxu0 %v2262
    %3537 = vmatprep.subr.bf16.mxu0 0
    %3538 = vmatpush1.bf16.msra.mxu0 %v2261
    %3539 = vmatprep.subr.bf16.mxu0 0
    %3540 = vmatpush1.bf16.msra.mxu0 %v2260
    %3541 = vmatprep.subr.bf16.mxu0 0
    %3542 = vmatpush1.bf16.msra.mxu0 %v2259
    %3543 = vmatprep.subr.bf16.mxu0 0
    %3544 = vmatpush1.bf16.msra.mxu0 %v2258
    %3545 = vmatprep.subr.bf16.mxu0 0
    %3546 = vmatpush2.bf16.msra.mxu0 %v2298
    %3547 = vmatprep.subr.bf16.mxu0 0
    %3548 = vmatpush2.bf16.msra.mxu0 %v2272
    %3549 = vmatprep.subr.bf16.mxu0 0
    %3550 = vmatpush2.bf16.msra.mxu0 %v2271
    %3551 = vmatprep.subr.bf16.mxu0 0
    %3552 = vmatpush2.bf16.msra.mxu0 %v2270
    %3553 = vmatprep.subr.bf16.mxu0 0
    %3554 = vmatpush2.bf16.msra.mxu0 %v2269
    %3555 = vmatprep.subr.bf16.mxu0 0
    %3556 = vmatpush2.bf16.msra.mxu0 %v2268
    %3557 = vmatprep.subr.bf16.mxu0 0
    %3558 = vmatpush2.bf16.msra.mxu0 %v2267
    %3559 = vmatprep.subr.bf16.mxu0 0
    %3560 = vmatpush2.bf16.msra.mxu0 %v2266
    %3561 = vmatprep.mubr.bf16.mxu0 %v3524
    %3562 = vmatmul.mubr.bf16.gmra.mxu0 %v3519
    %v3563 = vpop.f32.mrf.mxu0
    %v3564 = vadd.f32 0.0, %v3563
    %v3565 = vpop.f32.mrf.mxu0
    %v3566 = vpop.f32.mrf.mxu0
    %v3567 = vadd.f32 0.0, %v3566
    %v3568 = vpop.f32.mrf.mxu0
    %3569 = vmatprep.mubr.bf16.mxu0 %v3527
    %3570 = vmatmul.mubr.bf16.gmra.mxu0 %v3521
    %v3571 = vpop.f32.mrf.mxu0
    %v3572 = vadd.f32 0.0, %v3571
    %v3573 = vpop.f32.mrf.mxu0
    %v3574 = vpop.f32.mrf.mxu0
    %v3575 = vadd.f32 0.0, %v3574
    %v3576 = vpop.f32.mrf.mxu0
    %3577 = vdwg.mxu0
    %v3578 = vmax.f32 %v3199, %v3564
    %v3579 = vmax.f32 %v3200, %v3567
    %v3580 = vmax.f32 %v3201, %v3572
    %v3581 = vmax.f32 %v3202, %v3575
    %v3582 = vld [vmem:[%s4] sm:$0x1]
    %v3584 = vlaneseq
    %v3585 = vshrl.u32 %v3584, 7
    %v3586 = vsub.s32 0, %v3585
    %v3587 = vrot.slane %v3582, %v3586
    %v3589 = vadd.f32 %v3578, %v3587
    %v3590 = vadd.f32 %v3579, %v3587
    %v3591 = vadd.f32 %v3580, %v3587
    %v3592 = vadd.f32 %v3581, %v3587
    %v3593 = vmax.f32 %v3589, 0.0
    %v3594 = vmax.f32 %v3590, 0.0
    %v3595 = vmax.f32 %v3591, 0.0
    %v3596 = vmax.f32 %v3592, 0.0
    %v3598 = vrot.slane %v3593, 2
    %3599 = vrot.lane.b32.xlu0 %v3598, 20
    %v3600 = vpop.permute.xlu0 %3599
    %v3602 = vrot.slane %v3593, 4
    %3603 = vrot.lane.b32.xlu0 %v3602, 40
    %v3604 = vpop.permute.xlu0 %3603
    %v3606 = vrot.slane %v3593, 6
    %3607 = vrot.lane.b32.xlu0 %v3606, 60
    %v3608 = vpop.permute.xlu0 %3607
    %3611 = vrot.lane.b32.xlu0 %v3594, 80
    %v3612 = vpop.permute.xlu0 %3611
    %v3614 = vrot.slane %v3594, 2
    %3615 = vrot.lane.b32.xlu0 %v3614, 100
    %v3616 = vpop.permute.xlu0 %3615
    %v3618 = vrot.slane %v3594, 4
    %3619 = vrot.lane.b32.xlu0 %v3618, 120
    %v3620 = vpop.permute.xlu0 %3619
    %v3622 = vrot.slane %v3594, 6
    %3623 = vrot.lane.b32.xlu0 %v3622, 12
    %v3624 = vpop.permute.xlu0 %3623
    %3627 = vrot.lane.b32.xlu0 %v3595, 32
    %v3628 = vpop.permute.xlu0 %3627
    %v3630 = vrot.slane %v3595, 2
    %3631 = vrot.lane.b32.xlu0 %v3630, 52
    %v3632 = vpop.permute.xlu0 %3631
    %v3634 = vrot.slane %v3595, 4
    %3635 = vrot.lane.b32.xlu0 %v3634, 72
    %v3636 = vpop.permute.xlu0 %3635
    %v3638 = vrot.slane %v3595, 6
    %3639 = vrot.lane.b32.xlu0 %v3638, 92
    %v3640 = vpop.permute.xlu0 %3639
    %3643 = vrot.lane.b32.xlu0 %v3596, 112
    %v3644 = vpop.permute.xlu0 %3643
    %v3646 = vrot.slane %v3596, 2
    %3647 = vrot.lane.b32.xlu0 %v3646, 4
    %v3648 = vpop.permute.xlu0 %3647
    %v3650 = vrot.slane %v3596, 4
    %3651 = vrot.lane.b32.xlu0 %v3650, 24
    %v3652 = vpop.permute.xlu0 %3651
    %v3654 = vrot.slane %v3596, 6
    %3655 = vrot.lane.b32.xlu0 %v3654, 44
    %v3656 = vpop.permute.xlu0 %3655
    %v3658 = vsel %vm1940, %v3593, %v3600
    %v3659 = vsel %vm1950, %v3658, %v3604
    %v3660 = vsel %vm1960, %v3659, %v3608
    %v3661 = vsel %vm1970, %v3660, %v3612
    %v3662 = vsel %vm1980, %v3661, %v3616
    %v3663 = vsel %vm1990, %v3662, %v3620
    %v3664 = vsel %vm2000, %v3620, %v3624
    %v3665 = vsel %vm554, %v3664, %v3628
    %vm3666 = vcmask 424960
    %v3667 = vsel %vm3666, %v3665, %v3632
    %vm3668 = vcmask 588800
    %v3669 = vsel %vm3668, %v3667, %v3636
    %vm3670 = vcmask 752640
    %v3671 = vsel %vm3670, %v3669, %v3640
    %vm3672 = vcmask 916480
    %v3673 = vsel %vm3672, %v3671, %v3644
    %vm3674 = vcmask 31744
    %v3675 = vsel %vm3674, %v3644, %v3648
    %vm3676 = vcmask 195584
    %v3677 = vsel %vm3676, %v3675, %v3652
    %vm3678 = vcmask 359424
    %v3679 = vsel %vm3678, %v3677, %v3656
    %v3680 = vpack.c.bf16 %v3663, %v3663
    %v3681 = vpack.c.bf16 %v3673, %v3673
    %v3682 = vpack.c.bf16 %v3679, %v3679
    %v3683 = vld [vmem:[%s5] sm:$0xf]
    %v3684 = vld [vmem:[%s5 + $0x4] sm:$0xf]
    %v3685 = vld [vmem:[%s5 + $0x8] sm:$0xf]
    %v3686 = vld [vmem:[%s5 + $0xc] sm:$0xf]
    %v3687 = vld [vmem:[%s5 + $0x10] sm:$0xf]
    %v3688 = vld [vmem:[%s5 + $0x14] sm:$0xf]
    %v3689 = vld [vmem:[%s5 + $0x18] sm:$0xf]
    %v3690 = vld [vmem:[%s5 + $0x1c] sm:$0xf]
    %v3691 = vld [vmem:[%s5 + $0x20] sm:$0xf]
    %v3692 = vld [vmem:[%s5 + $0x24] sm:$0xf]
    %v3693 = vld [vmem:[%s5 + $0x28] sm:$0xf]
    %v3694 = vld [vmem:[%s5 + $0x2c] sm:$0xf]
    %v3695 = vld [vmem:[%s5 + $0x30] sm:$0xf]
    %v3696 = vld [vmem:[%s5 + $0x34] sm:$0xf]
    %v3697 = vld [vmem:[%s5 + $0x38] sm:$0xf]
    %v3698 = vld [vmem:[%s5 + $0x3c] sm:$0xf]
    %v3699 = vld [vmem:[%s5 + $0x40] sm:$0xf]
    %v3700 = vld [vmem:[%s5 + $0x44] sm:$0xf]
    %v3701 = vld [vmem:[%s5 + $0x48] sm:$0xf]
    %v3702 = vld [vmem:[%s5 + $0x4c] sm:$0xf]
    %v3703 = vld [vmem:[%s5 + $0x50] sm:$0xf]
    %v3704 = vld [vmem:[%s5 + $0x54] sm:$0xf]
    %v3705 = vld [vmem:[%s5 + $0x58] sm:$0xf]
    %v3706 = vld [vmem:[%s5 + $0x5c] sm:$0xf]
    %v3707 = vld [vmem:[%s5 + $0x60] sm:$0xf]
    %v3708 = vld [vmem:[%s5 + $0x64] sm:$0xf]
    %v3709 = vld [vmem:[%s5 + $0x68] sm:$0xf]
    %v3710 = vld [vmem:[%s5 + $0x6c] sm:$0xf]
    %v3711 = vld [vmem:[%s5 + $0x70] sm:$0xf]
    %v3712 = vld [vmem:[%s5 + $0x74] sm:$0xf]
    %v3713 = vld [vmem:[%s5 + $0x78] sm:$0xf]
    %v3714 = vld [vmem:[%s5 + $0x7c] sm:$0xf]
    %v3715 = vld [vmem:[%s5 + $0x80] sm:$0xf]
    %v3716 = vld [vmem:[%s5 + $0x84] sm:$0xf]
    %v3717 = vld [vmem:[%s5 + $0x88] sm:$0xf]
    %v3718 = vld [vmem:[%s5 + $0x8c] sm:$0xf]
    %v3719 = vld [vmem:[%s5 + $0x90] sm:$0xf]
    %v3720 = vld [vmem:[%s5 + $0x94] sm:$0xf]
    %v3721 = vld [vmem:[%s5 + $0x98] sm:$0xf]
    %v3722 = vld [vmem:[%s5 + $0x9c] sm:$0xf]
    %v3723 = vld [vmem:[%s6] sm:$0x1]
    %v3725 = vlaneseq
    %v3726 = vshrl.u32 %v3725, 7
    %v3727 = vsub.s32 0, %v3726
    %v3728 = vrot.slane %v3723, %v3727
    %v3770 = vunpack.c.l.b16 %v3683
    %v3771 = vunpack.c.l.b16 %v3684
    %v3772 = vunpack.c.l.b16 %v3685
    %v3773 = vunpack.c.l.b16 %v3686
    %v3774 = vunpack.c.l.b16 %v3687
    %v3775 = vunpack.c.l.b16 %v3688
    %v3776 = vunpack.c.l.b16 %v3689
    %v3777 = vunpack.c.l.b16 %v3690
    %v3778 = vunpack.c.l.b16 %v3691
    %v3779 = vunpack.c.l.b16 %v3692
    %v3780 = vunpack.c.l.b16 %v3693
    %v3781 = vunpack.c.l.b16 %v3694
    %v3782 = vunpack.c.l.b16 %v3695
    %v3783 = vunpack.c.l.b16 %v3696
    %v3784 = vunpack.c.l.b16 %v3697
    %v3785 = vunpack.c.l.b16 %v3698
    %v3786 = vunpack.c.l.b16 %v3699
    %v3787 = vunpack.c.l.b16 %v3700
    %v3788 = vunpack.c.l.b16 %v3701
    %v3789 = vunpack.c.l.b16 %v3702
    %v3790 = vunpack.c.l.b16 %v3703
    %v3791 = vunpack.c.l.b16 %v3704
    %v3792 = vunpack.c.l.b16 %v3705
    %v3793 = vunpack.c.l.b16 %v3706
    %v3794 = vunpack.c.l.b16 %v3707
    %v3795 = vunpack.c.l.b16 %v3708
    %v3796 = vunpack.c.l.b16 %v3709
    %v3797 = vunpack.c.l.b16 %v3710
    %v3798 = vunpack.c.l.b16 %v3711
    %v3799 = vunpack.c.l.b16 %v3712
    %v3800 = vunpack.c.l.b16 %v3713
    %v3801 = vunpack.c.l.b16 %v3714
    %v3802 = vunpack.c.l.b16 %v3715
    %v3803 = vunpack.c.l.b16 %v3716
    %v3804 = vunpack.c.l.b16 %v3717
    %v3805 = vunpack.c.l.b16 %v3718
    %v3806 = vunpack.c.l.b16 %v3719
    %v3807 = vunpack.c.l.b16 %v3720
    %v3808 = vunpack.c.l.b16 %v3721
    %v3809 = vunpack.c.l.b16 %v3722
    %v3810 = vpack.c.b16 %v3771, %v3770
    %v3811 = vpack.c.b16 %v3773, %v3772
    %v3812 = vpack.c.b16 %v3775, %v3774
    %v3813 = vpack.c.b16 %v3777, %v3776
    %v3814 = vpack.c.b16 %v3779, %v3778
    %v3815 = vpack.c.b16 %v3781, %v3780
    %v3816 = vpack.c.b16 %v3783, %v3782
    %v3817 = vpack.c.b16 %v3785, %v3784
    %v3818 = vpack.c.b16 %v3787, %v3786
    %v3819 = vpack.c.b16 %v3789, %v3788
    %v3820 = vpack.c.b16 %v3791, %v3790
    %v3821 = vpack.c.b16 %v3793, %v3792
    %v3822 = vpack.c.b16 %v3795, %v3794
    %v3823 = vpack.c.b16 %v3797, %v3796
    %v3824 = vpack.c.b16 %v3799, %v3798
    %v3825 = vpack.c.b16 %v3801, %v3800
    %v3826 = vpack.c.b16 %v3803, %v3802
    %v3827 = vpack.c.b16 %v3805, %v3804
    %v3828 = vpack.c.b16 %v3807, %v3806
    %v3829 = vpack.c.b16 %v3809, %v3808
    %vm3850 = vcmask 523264
    %v3852 = vsel %vm3850, %v3682, 0
    %3854 = vmatprep.subr.bf16.mxu0 0
    %3855 = vmatpush1.bf16.msra.mxu0 %v3817
    %3856 = vmatprep.subr.bf16.mxu0 0
    %3857 = vmatpush1.bf16.msra.mxu0 %v3816
    %3858 = vmatprep.subr.bf16.mxu0 0
    %3859 = vmatpush1.bf16.msra.mxu0 %v3815
    %3860 = vmatprep.subr.bf16.mxu0 0
    %3861 = vmatpush1.bf16.msra.mxu0 %v3814
    %3862 = vmatprep.subr.bf16.mxu0 0
    %3863 = vmatpush1.bf16.msra.mxu0 %v3813
    %3864 = vmatprep.subr.bf16.mxu0 0
    %3865 = vmatpush1.bf16.msra.mxu0 %v3812
    %3866 = vmatprep.subr.bf16.mxu0 0
    %3867 = vmatpush1.bf16.msra.mxu0 %v3811
    %3868 = vmatprep.subr.bf16.mxu0 0
    %3869 = vmatpush1.bf16.msra.mxu0 %v3810
    %3870 = vmatprep.subr.bf16.mxu0 0
    %3871 = vmatpush2.bf16.msra.mxu0 %v3825
    %3872 = vmatprep.subr.bf16.mxu0 0
    %3873 = vmatpush2.bf16.msra.mxu0 %v3824
    %3874 = vmatprep.subr.bf16.mxu0 0
    %3875 = vmatpush2.bf16.msra.mxu0 %v3823
    %3876 = vmatprep.subr.bf16.mxu0 0
    %3877 = vmatpush2.bf16.msra.mxu0 %v3822
    %3878 = vmatprep.subr.bf16.mxu0 0
    %3879 = vmatpush2.bf16.msra.mxu0 %v3821
    %3880 = vmatprep.subr.bf16.mxu0 0
    %3881 = vmatpush2.bf16.msra.mxu0 %v3820
    %3882 = vmatprep.subr.bf16.mxu0 0
    %3883 = vmatpush2.bf16.msra.mxu0 %v3819
    %3884 = vmatprep.subr.bf16.mxu0 0
    %3885 = vmatpush2.bf16.msra.mxu0 %v3818
    %3886 = vmatprep.mubr.bf16.mxu0 %v3681
    %3887 = vmatmul.mubr.bf16.gmra.mxu0 %v3680
    %v3888 = vpop.f32.mrf.mxu0
    %v3889 = vadd.f32 %v3728, %v3888
    %v3890 = vpop.f32.mrf.mxu0
    %v3891 = vpop.f32.mrf.mxu0
    %v3892 = vpop.f32.mrf.mxu0
    %3893 = vdwg.mxu0
    %3894 = vmatprep.subr.bf16.mxu0 0
    %3895 = vmatpush1.bf16.msra.mxu0 0
    %3896 = vmatprep.subr.bf16.mxu0 0
    %3897 = vmatpush1.bf16.msra.mxu0 0
    %3898 = vmatprep.subr.bf16.mxu0 0
    %3899 = vmatpush1.bf16.msra.mxu0 0
    %3900 = vmatprep.subr.bf16.mxu0 0
    %3901 = vmatpush1.bf16.msra.mxu0 0
    %3902 = vmatprep.subr.bf16.mxu0 0
    %3903 = vmatpush1.bf16.msra.mxu0 %v3829
    %3904 = vmatprep.subr.bf16.mxu0 0
    %3905 = vmatpush1.bf16.msra.mxu0 %v3828
    %3906 = vmatprep.subr.bf16.mxu0 0
    %3907 = vmatpush1.bf16.msra.mxu0 %v3827
    %3908 = vmatprep.subr.bf16.mxu0 0
    %3909 = vmatpush1.bf16.msra.mxu0 %v3826
    %3910 = vmatprep.subr.bf16.mxu0 0
    %3911 = vmatpush2.bf16.msra.mxu0 0
    %3912 = vmatprep.subr.bf16.mxu0 0
    %3913 = vmatpush2.bf16.msra.mxu0 0
    %3914 = vmatprep.subr.bf16.mxu0 0
    %3915 = vmatpush2.bf16.msra.mxu0 0
    %3916 = vmatprep.subr.bf16.mxu0 0
    %3917 = vmatpush2.bf16.msra.mxu0 0
    %3918 = vmatprep.subr.bf16.mxu0 0
    %3919 = vmatpush2.bf16.msra.mxu0 0
    %3920 = vmatprep.subr.bf16.mxu0 0
    %3921 = vmatpush2.bf16.msra.mxu0 0
    %3922 = vmatprep.subr.bf16.mxu0 0
    %3923 = vmatpush2.bf16.msra.mxu0 0
    %3924 = vmatprep.subr.bf16.mxu0 0
    %3925 = vmatpush2.bf16.msra.mxu0 0
    %3926 = vmatprep.mubr.bf16.mxu0 0
    %3927 = vmatmul.mubr.bf16.gmra.mxu0 %v3852
    %v3928 = vpop.f32.mrf.mxu0
    %v3929 = vadd.f32 %v3889, %v3928
    %v3930 = vpop.f32.mrf.mxu0
    %v3931 = vpop.f32.mrf.mxu0
    %v3932 = vpop.f32.mrf.mxu0
    %3933 = vdwg.mxu0
    %v3934 = vmax.f32 %v3929, 0.0
    %v3935 = vpack.c.bf16 %v3934, %v3934
    %v3936 = vld [vmem:[%s7] sm:$0xf]
    %v3937 = vld [vmem:[%s7 + $0x4] sm:$0xf]
    %v3938 = vld [vmem:[%s7 + $0x8] sm:$0xf]
    %v3939 = vld [vmem:[%s7 + $0xc] sm:$0xf]
    %v3940 = vld [vmem:[%s7 + $0x10] sm:$0xf]
    %v3941 = vld [vmem:[%s7 + $0x14] sm:$0xf]
    %v3942 = vld [vmem:[%s7 + $0x18] sm:$0x1]
    %v3943 = vld [vmem:[%s8] sm:$0x1]
    %v3945 = vlaneseq
    %v3946 = vshrl.u32 %v3945, 7
    %v3947 = vsub.s32 0, %v3946
    %v3948 = vrot.slane %v3943, %v3947
    %v3957 = vunpack.c.l.b16 %v3936
    %v3958 = vunpack.c.l.b16 %v3937
    %v3959 = vunpack.c.l.b16 %v3938
    %v3960 = vunpack.c.l.b16 %v3939
    %v3961 = vunpack.c.l.b16 %v3940
    %v3962 = vunpack.c.l.b16 %v3941
    %v3963 = vunpack.c.l.b16 %v3942
    %v3964 = vpack.c.b16 %v3958, %v3957
    %v3965 = vpack.c.b16 %v3960, %v3959
    %v3966 = vpack.c.b16 %v3962, %v3961
    %v3967 = vpack.c.b16 %v3963, %v3963
    %v3972 = vsel %vm1955, %v3935, 0
    %vm3974 = vcmask 1040384
    %v3976 = vsel %vm3974, %v3967, 0
    %3978 = vmatprep.subr.bf16.mxu0 0
    %3979 = vmatpush1.bf16.msra.mxu0 0
    %3980 = vmatprep.subr.bf16.mxu0 0
    %3981 = vmatpush1.bf16.msra.mxu0 0
    %3982 = vmatprep.subr.bf16.mxu0 0
    %3983 = vmatpush1.bf16.msra.mxu0 0
    %3984 = vmatprep.subr.bf16.mxu0 0
    %3985 = vmatpush1.bf16.msra.mxu0 0
    %3986 = vmatprep.subr.bf16.mxu0 0
    %3987 = vmatpush1.bf16.msra.mxu0 %v3976
    %3988 = vmatprep.subr.bf16.mxu0 0
    %3989 = vmatpush1.bf16.msra.mxu0 %v3966
    %3990 = vmatprep.subr.bf16.mxu0 0
    %3991 = vmatpush1.bf16.msra.mxu0 %v3965
    %3992 = vmatprep.subr.bf16.mxu0 0
    %3993 = vmatpush1.bf16.msra.mxu0 %v3964
    %3994 = vmatprep.subr.bf16.mxu0 0
    %3995 = vmatpush2.bf16.msra.mxu0 0
    %3996 = vmatprep.subr.bf16.mxu0 0
    %3997 = vmatpush2.bf16.msra.mxu0 0
    %3998 = vmatprep.subr.bf16.mxu0 0
    %3999 = vmatpush2.bf16.msra.mxu0 0
    %4000 = vmatprep.subr.bf16.mxu0 0
    %4001 = vmatpush2.bf16.msra.mxu0 0
    %4002 = vmatprep.subr.bf16.mxu0 0
    %4003 = vmatpush2.bf16.msra.mxu0 0
    %4004 = vmatprep.subr.bf16.mxu0 0
    %4005 = vmatpush2.bf16.msra.mxu0 0
    %4006 = vmatprep.subr.bf16.mxu0 0
    %4007 = vmatpush2.bf16.msra.mxu0 0
    %4008 = vmatprep.subr.bf16.mxu0 0
    %4009 = vmatpush2.bf16.msra.mxu0 0
    %4010 = vmatprep.mubr.bf16.mxu0 0
    %4011 = vmatmul.mubr.bf16.gmra.mxu0 %v3972
    %v4012 = vpop.f32.mrf.mxu0
    %v4013 = vadd.f32 %v3948, %v4012
    %v4014 = vpop.f32.mrf.mxu0
    %v4015 = vpop.f32.mrf.mxu0
    %v4016 = vpop.f32.mrf.mxu0
    %4017 = vdwg.mxu0
    %vm4018 = vcmask 74752
    %v4019 = vsel %vm4018, %v4013, -inf
    %4020 = vmax.xlane.f32.xlu0 %v4019
    %v4021 = vpop.xlane.xlu0 %4020
    %v4022 = vsub.f32 %v4013, %v4021
    %v4023 = vmul.f32 %v4022, 1.442695
    %v4024 = vpow.pop %v4023
    %v4025 = vsel %vm4018, %v4024, 0.0
    %4026 = vadd.xlane.f32.xlu0 %v4025
    %v4027 = vpop.xlane.xlu0 %4026
    %v4028 = vlog2.pop %v4027
    %v4029 = vmul.f32 %v4028, 0.6931472
    %v4030 = vsub.f32 %v4022, %v4029
    %4031 = vst.msk [vmem:[#allocation2] sm:$0x3] %vm4018, %v4030
    // Predicated region
    $region38: #{lenet_forward.1} parent=1 // pred_check
      _
    $region39: #{lenet_forward.1} parent=1 // pred_check_branch
      %4033 = sbr.rel (0) target = $region41
    $region40: #{lenet_forward.1} parent=1 // pred_region
      %s4035 = ssub.s32 32, 32
      %4036 = vsyncadd [#allocation3], %s4035
      %s4038 = sshll.u32 [#allocation2], 4
      %s4039 = int_to_ptr.vmem [resolvable:$true] %s4038
      %4041 = dma.vmem_to_hbm [thread:$0]  %s4039, 32, %s9, [#allocation3]
    $region41: #{lenet_forward.1} parent=1 // pred_fallthru
      _
    // Predicated region
    $region42: #{lenet_forward.1} parent=1 // pred_check
      _
    $region43: #{lenet_forward.1} parent=1 // pred_check_branch
      %4043 = sbr.rel (0) target = $region45
    $region44: #{lenet_forward.1} parent=1 // pred_region
      %4044 = dma.done [#allocation3], 32
    $region45: #{lenet_forward.1} parent=1 // pred_fallthru
      _
    %4045 = vsyncpa [#allocation3], 1

</llo_original>
